<compile_context>
chip_gen: v6e
topology: v6e:2x2x1
jax: 0.10.0
libtpu: 0.0.40
codegen_flags: <defaults>
</compile_context>

<pallas_src>
import functools

import jax
import jax.numpy as jnp
from jax.experimental import pallas as pl
from jax.experimental.pallas import tpu as pltpu


def _conv_block_kernel(x_ref, w1_ref, b1_ref, w2_ref, b2_ref, o_ref,
                       xpad_ref, mid_ref, *, H, W, Cin, Cout):
    """One grid step = one image; both convs fused.

    x_ref  : (1, H, W, Cin)      un-padded NHWC input
    w1_ref : (9*Cin, Cout)       conv1 weights, im2col layout (tap-major, cin-minor)
    b1_ref : (1, Cout)
    w2_ref : (Cout, 9*Cout)      conv2 weights, transposed im2col layout
    b2_ref : (Cout, 1)
    o_ref  : (1, Cout, H*W)      NCHW-flattened output (lane-dense store)
    xpad_ref : VMEM (H+2, W+2, Cin)   zero-padded input scratch
    mid_ref  : VMEM (H+2, W+2, Cout)  zero-padded conv1 activation scratch
    """
    f32 = jnp.float32

    # Zero the scratches every step so the halo is always zero.  (Do NOT gate
    # this on program_id==0: the batch axis is "parallel" and may be split
    # across TensorCores, each with its own scratch.)
    xpad_ref[...] = jnp.zeros_like(xpad_ref)
    mid_ref[...] = jnp.zeros_like(mid_ref)

    # In-kernel zero padding (padding=1, zeros): interior write, halo stays 0.
    xpad_ref[1:H + 1, 1:W + 1, :] = x_ref[0, ...].astype(f32)

    def im2col(src_ref, C):
        # 9 shifted (H, W, C) windows -> (H*W, 9*C).  The reshapes preserve the
        # minor (channel) dim, so they are cheap; the shifted slices are
        # materialised copies either way.
        taps = []
        for dy in range(3):
            for dx in range(3):
                taps.append(src_ref[dy:dy + H, dx:dx + W, :].reshape(H * W, C))
        return jnp.concatenate(taps, axis=1)

    def elu(v):
        # ELU(alpha=1); clamp the exp argument so the discarded branch never
        # produces inf.
        return jnp.where(v > 0, v, jnp.exp(jnp.minimum(v, 0.0)) - 1.0)

    # ---- conv1 + ELU: one (H*W, 9*Cin) x (9*Cin, Cout) MXU contraction ----
    patch1 = im2col(xpad_ref, Cin)                               # (H*W, 9*Cin)
    act1 = jax.lax.dot_general(
        patch1, w1_ref[...].astype(f32),
        dimension_numbers=(((1,), (0,)), ((), ())),
        preferred_element_type=f32)                              # (H*W, Cout)
    act1 = elu(act1 + b1_ref[...])

    # Stage the intermediate activation in VMEM (never touches HBM).
    mid_ref[1:H + 1, 1:W + 1, :] = act1.reshape(H, W, Cout)

    # ---- conv2 + ELU, computed transposed: result is (Cout, H*W) ----
    # act2[co, m] = sum_k w2[co, k] * patch2[m, k]   (A @ B^T contraction)
    patch2 = im2col(mid_ref, Cout)                               # (H*W, 9*Cout)
    act2 = jax.lax.dot_general(
        w2_ref[...].astype(f32), patch2,
        dimension_numbers=(((1,), (1,)), ((), ())),
        preferred_element_type=f32)                              # (Cout, H*W)
    act2 = elu(act2 + b2_ref[...])

    o_ref[0, ...] = act2.astype(o_ref.dtype)


def conv_block_forward(x_nchw, params):
    """Reproduces ConvBlock.forward: elu(conv3x3(elu(conv3x3(x))))."""
    w1, b1, w2, b2 = params
    N, Cin, H, W = x_nchw.shape
    Cout = w1.shape[-1]

    # NCHW -> NHWC for the channel-minor im2col inside the kernel.
    # TODO(synk): if the surrounding model kept NHWC end-to-end this transpose
    # (one HBM pass) would disappear; the kernel already emits NCHW directly on
    # the output side, so there is no output transpose.
    x_nhwc = jnp.transpose(x_nchw, (0, 2, 3, 1))

    # Weight / bias repack (tiny; free at trace time).
    w1f = w1.reshape(9 * Cin, Cout)            # (kh*kw*Cin, Cout)
    w2t = w2.reshape(9 * Cout, Cout).T         # (Cout, kh*kw*Cout)
    b1r = b1.reshape(1, Cout)
    b2r = b2.reshape(Cout, 1)

    kernel = functools.partial(_conv_block_kernel, H=H, W=W, Cin=Cin, Cout=Cout)

    # TODO(synk): for large images, add a row-tiled grid axis with a 2-row halo
    # so a full image slab never has to fit v7x's 32/64 MiB VMEM budget.
    out_flat = pl.pallas_call(
        kernel,
        out_shape=jax.ShapeDtypeStruct((N, Cout, H * W), x_nchw.dtype),
        grid_spec=pltpu.PrefetchScalarGridSpec(
            num_scalar_prefetch=0,
            grid=(N,),
            in_specs=[
                pl.BlockSpec((1, H, W, Cin), lambda b: (b, 0, 0, 0)),
                pl.BlockSpec((9 * Cin, Cout), lambda b: (0, 0)),
                pl.BlockSpec((1, Cout), lambda b: (0, 0)),
                pl.BlockSpec((Cout, 9 * Cout), lambda b: (0, 0)),
                pl.BlockSpec((Cout, 1), lambda b: (0, 0)),
            ],
            out_specs=pl.BlockSpec((1, Cout, H * W), lambda b: (b, 0, 0)),
            scratch_shapes=[
                pltpu.VMEM((H + 2, W + 2, Cin), jnp.float32),
                pltpu.VMEM((H + 2, W + 2, Cout), jnp.float32),
            ],
        ),
        compiler_params=pltpu.CompilerParams(
            dimension_semantics=("parallel",),
            vmem_limit_bytes=32 * 1024 * 1024,
        ),
    )(x_nhwc, w1f, b1r, w2t, b2r)

    # (N, Cout, H*W) is NCHW-contiguous; this reshape is free.
    return out_flat.reshape(N, Cout, H, W)


def init_params(key, in_channels, out_channels, dtype=jnp.float32):
    """Deterministic init matching nn.Conv2d shapes.

    PyTorch weight shape is (Cout, Cin, 3, 3); we store (3, 3, Cin, Cout)."""
    k1, k2, k3, k4 = jax.random.split(key, 4)
    fan1 = in_channels * 9
    fan2 = out_channels * 9
    bound1 = 1.0 / jnp.sqrt(fan1)
    bound2 = 1.0 / jnp.sqrt(fan2)
    w1_torch = jax.random.uniform(k1, (out_channels, in_channels, 3, 3),
                                  dtype, -bound1, bound1)
    b1 = jax.random.uniform(k2, (out_channels,), dtype, -bound1, bound1)
    w2_torch = jax.random.uniform(k3, (out_channels, out_channels, 3, 3),
                                  dtype, -bound2, bound2)
    b2 = jax.random.uniform(k4, (out_channels,), dtype, -bound2, bound2)
    # (Cout, Cin, kh, kw) -> (kh, kw, Cin, Cout)
    w1 = jnp.transpose(w1_torch, (2, 3, 1, 0))
    w2 = jnp.transpose(w2_torch, (2, 3, 1, 0))
    return (w1, b1, w2, b2)


def _reference(x_nchw, params):
    """Pure-JAX reference (lax.conv) for a correctness check."""
    w1, b1, w2, b2 = params

    def conv(x, w, b):
        y = jax.lax.conv_general_dilated(
            x, w, window_strides=(1, 1), padding=((1, 1), (1, 1)),
            dimension_numbers=("NCHW", "HWIO", "NCHW"))
        y = y + b[None, :, None, None]
        return jnp.where(y > 0, y, jnp.exp(jnp.minimum(y, 0.0)) - 1.0)

    return conv(conv(x_nchw, w1, b1), w2, b2)


if __name__ == "__main__":
    key = jax.random.PRNGKey(0)
    k_x, k_p = jax.random.split(key)

    N, Cin, Cout, H, W = 2, 4, 8, 16, 16
    x = jax.random.normal(k_x, (N, Cin, H, W), jnp.float32)
    params = init_params(k_p, Cin, Cout)

    fwd = jax.jit(conv_block_forward)
    out = jax.block_until_ready(fwd(x, params))

    ref = jax.block_until_ready(_reference(x, params))
    assert out.shape == (N, Cout, H, W)
    assert jnp.allclose(out, ref, atol=1e-4, rtol=1e-4)

    print("KERNEL_OK")
</pallas_src>

<mosaic_0001>
module attributes {stable_mosaic.version = 11 : i64} {
  func.func @_conv_block_kernel(%arg0: i32, %arg1: memref<1x16x16x4xf32, #tpu.memory_space<vmem>>, %arg2: memref<36x8xf32, #tpu.memory_space<vmem>>, %arg3: memref<1x8xf32, #tpu.memory_space<vmem>>, %arg4: memref<8x72xf32, #tpu.memory_space<vmem>>, %arg5: memref<8x1xf32, #tpu.memory_space<vmem>>, %arg6: memref<1x8x256xf32, #tpu.memory_space<vmem>>, %arg7: memref<18x18x4xf32, #tpu.memory_space<vmem>>, %arg8: memref<18x18x8xf32, #tpu.memory_space<vmem>>) attributes {dimension_semantics = [#tpu.dimension_semantics<parallel>], iteration_bounds = array<i64: 2>, scalar_prefetch = 0 : i64, scratch_operands = 2 : i64, tpu.core_type = #tpu.core_type<tc>, window_params = [{transform_indices = @transform_0, window_bounds = array<i64: 1, 16, 16, 4>}, {pipeline_mode = #tpu.pipeline_mode<synchronous>, transform_indices = @transform_1, window_bounds = array<i64: 36, 8>}, {pipeline_mode = #tpu.pipeline_mode<synchronous>, transform_indices = @transform_2, window_bounds = array<i64: 1, 8>}, {pipeline_mode = #tpu.pipeline_mode<synchronous>, transform_indices = @transform_3, window_bounds = array<i64: 8, 72>}, {pipeline_mode = #tpu.pipeline_mode<synchronous>, transform_indices = @transform_4, window_bounds = array<i64: 8, 1>}, {transform_indices = @transform_5, window_bounds = array<i64: 1, 8, 256>}]} {
    %cst = arith.constant 0.000000e+00 : f32
    %0 = vector.broadcast %cst : f32 to vector<18x18x4xf32>
    %c0 = arith.constant 0 : index
    %c0_0 = arith.constant 0 : index
    %c0_1 = arith.constant 0 : index
    %1 = vector.load %arg7[%c0, %c0_0, %c0_1] : memref<18x18x4xf32, #tpu.memory_space<vmem>>, vector<18x18x4xf32>
    tpu.vector_store %arg7[%c0, %c0_0, %c0_1], %0 {strides = array<i32>} : memref<18x18x4xf32, #tpu.memory_space<vmem>>, vector<18x18x4xf32>,
    %cst_2 = arith.constant 0.000000e+00 : f32
    %2 = vector.broadcast %cst_2 : f32 to vector<18x18x8xf32>
    %c0_3 = arith.constant 0 : index
    %c0_4 = arith.constant 0 : index
    %c0_5 = arith.constant 0 : index
    %3 = vector.load %arg8[%c0_3, %c0_4, %c0_5] : memref<18x18x8xf32, #tpu.memory_space<vmem>>, vector<18x18x8xf32>
    tpu.vector_store %arg8[%c0_3, %c0_4, %c0_5], %2 {strides = array<i32>} : memref<18x18x8xf32, #tpu.memory_space<vmem>>, vector<18x18x8xf32>,
    %c0_6 = arith.constant 0 : index
    %c0_7 = arith.constant 0 : index
    %c0_8 = arith.constant 0 : index
    %c0_9 = arith.constant 0 : index
    %4 = vector.load %arg1[%c0_6, %c0_7, %c0_8, %c0_9] : memref<1x16x16x4xf32, #tpu.memory_space<vmem>>, vector<1x16x16x4xf32>
    %5 = vector.shape_cast %4 : vector<1x16x16x4xf32> to vector<16x16x4xf32>
    %c1 = arith.constant 1 : index
    %c1_10 = arith.constant 1 : index
    %c0_11 = arith.constant 0 : index
    %6 = vector.load %arg7[%c1, %c1_10, %c0_11] : memref<18x18x4xf32, #tpu.memory_space<vmem>>, vector<16x16x4xf32>
    tpu.vector_store %arg7[%c1, %c1_10, %c0_11], %5 {strides = array<i32>} : memref<18x18x4xf32, #tpu.memory_space<vmem>>, vector<16x16x4xf32>,
    %c0_12 = arith.constant 0 : index
    %c0_13 = arith.constant 0 : index
    %c0_14 = arith.constant 0 : index
    %7 = vector.load %arg7[%c0_12, %c0_13, %c0_14] : memref<18x18x4xf32, #tpu.memory_space<vmem>>, vector<16x16x4xf32>
    %8 = vector.shape_cast %7 : vector<16x16x4xf32> to vector<256x4xf32>
    %c0_15 = arith.constant 0 : index
    %c1_16 = arith.constant 1 : index
    %c0_17 = arith.constant 0 : index
    %9 = vector.load %arg7[%c0_15, %c1_16, %c0_17] : memref<18x18x4xf32, #tpu.memory_space<vmem>>, vector<16x16x4xf32>
    %10 = vector.shape_cast %9 : vector<16x16x4xf32> to vector<256x4xf32>
    %c0_18 = arith.constant 0 : index
    %c2 = arith.constant 2 : index
    %c0_19 = arith.constant 0 : index
    %11 = vector.load %arg7[%c0_18, %c2, %c0_19] : memref<18x18x4xf32, #tpu.memory_space<vmem>>, vector<16x16x4xf32>
    %12 = vector.shape_cast %11 : vector<16x16x4xf32> to vector<256x4xf32>
    %c1_20 = arith.constant 1 : index
    %c0_21 = arith.constant 0 : index
    %c0_22 = arith.constant 0 : index
    %13 = vector.load %arg7[%c1_20, %c0_21, %c0_22] : memref<18x18x4xf32, #tpu.memory_space<vmem>>, vector<16x16x4xf32>
    %14 = vector.shape_cast %13 : vector<16x16x4xf32> to vector<256x4xf32>
    %c1_23 = arith.constant 1 : index
    %c1_24 = arith.constant 1 : index
    %c0_25 = arith.constant 0 : index
    %15 = vector.load %arg7[%c1_23, %c1_24, %c0_25] : memref<18x18x4xf32, #tpu.memory_space<vmem>>, vector<16x16x4xf32>
    %16 = vector.shape_cast %15 : vector<16x16x4xf32> to vector<256x4xf32>
    %c1_26 = arith.constant 1 : index
    %c2_27 = arith.constant 2 : index
    %c0_28 = arith.constant 0 : index
    %17 = vector.load %arg7[%c1_26, %c2_27, %c0_28] : memref<18x18x4xf32, #tpu.memory_space<vmem>>, vector<16x16x4xf32>
    %18 = vector.shape_cast %17 : vector<16x16x4xf32> to vector<256x4xf32>
    %c2_29 = arith.constant 2 : index
    %c0_30 = arith.constant 0 : index
    %c0_31 = arith.constant 0 : index
    %19 = vector.load %arg7[%c2_29, %c0_30, %c0_31] : memref<18x18x4xf32, #tpu.memory_space<vmem>>, vector<16x16x4xf32>
    %20 = vector.shape_cast %19 : vector<16x16x4xf32> to vector<256x4xf32>
    %c2_32 = arith.constant 2 : index
    %c1_33 = arith.constant 1 : index
    %c0_34 = arith.constant 0 : index
    %21 = vector.load %arg7[%c2_32, %c1_33, %c0_34] : memref<18x18x4xf32, #tpu.memory_space<vmem>>, vector<16x16x4xf32>
    %22 = vector.shape_cast %21 : vector<16x16x4xf32> to vector<256x4xf32>
    %c2_35 = arith.constant 2 : index
    %c2_36 = arith.constant 2 : index
    %c0_37 = arith.constant 0 : index
    %23 = vector.load %arg7[%c2_35, %c2_36, %c0_37] : memref<18x18x4xf32, #tpu.memory_space<vmem>>, vector<16x16x4xf32>
    %24 = vector.shape_cast %23 : vector<16x16x4xf32> to vector<256x4xf32>
    %25 = tpu.concatenate %8, %10, %12, %14, %16, %18, %20, %22, %24 in 1 : vector<256x4xf32>, vector<256x4xf32>, vector<256x4xf32>, vector<256x4xf32>, vector<256x4xf32>, vector<256x4xf32>, vector<256x4xf32>, vector<256x4xf32>, vector<256x4xf32> -> vector<256x36xf32>
    %c0_38 = arith.constant 0 : index
    %c0_39 = arith.constant 0 : index
    %26 = vector.load %arg2[%c0_38, %c0_39] : memref<36x8xf32, #tpu.memory_space<vmem>>, vector<36x8xf32>
    %cst_40 = arith.constant dense<0.000000e+00> : vector<256x8xf32>
    %27 = tpu.matmul %25, %26, %cst_40 {dimension_numbers = #tpu.dot_dimension_numbers<[1], [0], [0], [1], [0, 0, 1, 1], [], []>} : vector<256x36xf32>, vector<36x8xf32>, vector<256x8xf32> -> vector<256x8xf32>
    %c0_41 = arith.constant 0 : index
    %c0_42 = arith.constant 0 : index
    %28 = vector.load %arg3[%c0_41, %c0_42] : memref<1x8xf32, #tpu.memory_space<vmem>>, vector<1x8xf32>
    %29 = vector.broadcast %28 : vector<1x8xf32> to vector<256x8xf32>
    %30 = arith.addf %27, %29 : vector<256x8xf32>
    %cst_43 = arith.constant 0.000000e+00 : f32
    %31 = vector.broadcast %cst_43 : f32 to vector<256x8xf32>
    %32 = arith.cmpf ogt, %30, %31 : vector<256x8xf32>
    %cst_44 = arith.constant 0.000000e+00 : f32
    %33 = vector.broadcast %cst_44 : f32 to vector<256x8xf32>
    %34 = arith.minimumf %30, %33 : vector<256x8xf32>
    %35 = math.exp %34 : vector<256x8xf32>
    %cst_45 = arith.constant 1.000000e+00 : f32
    %36 = vector.broadcast %cst_45 : f32 to vector<256x8xf32>
    %37 = arith.subf %35, %36 : vector<256x8xf32>
    %38 = arith.select %32, %30, %37 : vector<256x8xi1>, vector<256x8xf32>
    %39 = vector.shape_cast %38 : vector<256x8xf32> to vector<16x16x8xf32>
    %c1_46 = arith.constant 1 : index
    %c1_47 = arith.constant 1 : index
    %c0_48 = arith.constant 0 : index
    %40 = vector.load %arg8[%c1_46, %c1_47, %c0_48] : memref<18x18x8xf32, #tpu.memory_space<vmem>>, vector<16x16x8xf32>
    tpu.vector_store %arg8[%c1_46, %c1_47, %c0_48], %39 {strides = array<i32>} : memref<18x18x8xf32, #tpu.memory_space<vmem>>, vector<16x16x8xf32>,
    %c0_49 = arith.constant 0 : index
    %c0_50 = arith.constant 0 : index
    %c0_51 = arith.constant 0 : index
    %41 = vector.load %arg8[%c0_49, %c0_50, %c0_51] : memref<18x18x8xf32, #tpu.memory_space<vmem>>, vector<16x16x8xf32>
    %42 = vector.shape_cast %41 : vector<16x16x8xf32> to vector<256x8xf32>
    %c0_52 = arith.constant 0 : index
    %c1_53 = arith.constant 1 : index
    %c0_54 = arith.constant 0 : index
    %43 = vector.load %arg8[%c0_52, %c1_53, %c0_54] : memref<18x18x8xf32, #tpu.memory_space<vmem>>, vector<16x16x8xf32>
    %44 = vector.shape_cast %43 : vector<16x16x8xf32> to vector<256x8xf32>
    %c0_55 = arith.constant 0 : index
    %c2_56 = arith.constant 2 : index
    %c0_57 = arith.constant 0 : index
    %45 = vector.load %arg8[%c0_55, %c2_56, %c0_57] : memref<18x18x8xf32, #tpu.memory_space<vmem>>, vector<16x16x8xf32>
    %46 = vector.shape_cast %45 : vector<16x16x8xf32> to vector<256x8xf32>
    %c1_58 = arith.constant 1 : index
    %c0_59 = arith.constant 0 : index
    %c0_60 = arith.constant 0 : index
    %47 = vector.load %arg8[%c1_58, %c0_59, %c0_60] : memref<18x18x8xf32, #tpu.memory_space<vmem>>, vector<16x16x8xf32>
    %48 = vector.shape_cast %47 : vector<16x16x8xf32> to vector<256x8xf32>
    %c1_61 = arith.constant 1 : index
    %c1_62 = arith.constant 1 : index
    %c0_63 = arith.constant 0 : index
    %49 = vector.load %arg8[%c1_61, %c1_62, %c0_63] : memref<18x18x8xf32, #tpu.memory_space<vmem>>, vector<16x16x8xf32>
    %50 = vector.shape_cast %49 : vector<16x16x8xf32> to vector<256x8xf32>
    %c1_64 = arith.constant 1 : index
    %c2_65 = arith.constant 2 : index
    %c0_66 = arith.constant 0 : index
    %51 = vector.load %arg8[%c1_64, %c2_65, %c0_66] : memref<18x18x8xf32, #tpu.memory_space<vmem>>, vector<16x16x8xf32>
    %52 = vector.shape_cast %51 : vector<16x16x8xf32> to vector<256x8xf32>
    %c2_67 = arith.constant 2 : index
    %c0_68 = arith.constant 0 : index
    %c0_69 = arith.constant 0 : index
    %53 = vector.load %arg8[%c2_67, %c0_68, %c0_69] : memref<18x18x8xf32, #tpu.memory_space<vmem>>, vector<16x16x8xf32>
    %54 = vector.shape_cast %53 : vector<16x16x8xf32> to vector<256x8xf32>
    %c2_70 = arith.constant 2 : index
    %c1_71 = arith.constant 1 : index
    %c0_72 = arith.constant 0 : index
    %55 = vector.load %arg8[%c2_70, %c1_71, %c0_72] : memref<18x18x8xf32, #tpu.memory_space<vmem>>, vector<16x16x8xf32>
    %56 = vector.shape_cast %55 : vector<16x16x8xf32> to vector<256x8xf32>
    %c2_73 = arith.constant 2 : index
    %c2_74 = arith.constant 2 : index
    %c0_75 = arith.constant 0 : index
    %57 = vector.load %arg8[%c2_73, %c2_74, %c0_75] : memref<18x18x8xf32, #tpu.memory_space<vmem>>, vector<16x16x8xf32>
    %58 = vector.shape_cast %57 : vector<16x16x8xf32> to vector<256x8xf32>
    %59 = tpu.concatenate %42, %44, %46, %48, %50, %52, %54, %56, %58 in 1 : vector<256x8xf32>, vector<256x8xf32>, vector<256x8xf32>, vector<256x8xf32>, vector<256x8xf32>, vector<256x8xf32>, vector<256x8xf32>, vector<256x8xf32>, vector<256x8xf32> -> vector<256x72xf32>
    %c0_76 = arith.constant 0 : index
    %c0_77 = arith.constant 0 : index
    %60 = vector.load %arg4[%c0_76, %c0_77] : memref<8x72xf32, #tpu.memory_space<vmem>>, vector<8x72xf32>
    %cst_78 = arith.constant dense<0.000000e+00> : vector<8x256xf32>
    %61 = tpu.matmul %60, %59, %cst_78 {dimension_numbers = #tpu.dot_dimension_numbers<[1], [1], [0], [0], [0, 0, 1, 0], [], []>} : vector<8x72xf32>, vector<256x72xf32>, vector<8x256xf32> -> vector<8x256xf32>
    %c0_79 = arith.constant 0 : index
    %c0_80 = arith.constant 0 : index
    %62 = vector.load %arg5[%c0_79, %c0_80] : memref<8x1xf32, #tpu.memory_space<vmem>>, vector<8x1xf32>
    %63 = vector.broadcast %62 : vector<8x1xf32> to vector<8x256xf32>
    %64 = arith.addf %61, %63 : vector<8x256xf32>
    %cst_81 = arith.constant 0.000000e+00 : f32
    %65 = vector.broadcast %cst_81 : f32 to vector<8x256xf32>
    %66 = arith.cmpf ogt, %64, %65 : vector<8x256xf32>
    %cst_82 = arith.constant 0.000000e+00 : f32
    %67 = vector.broadcast %cst_82 : f32 to vector<8x256xf32>
    %68 = arith.minimumf %64, %67 : vector<8x256xf32>
    %69 = math.exp %68 : vector<8x256xf32>
    %cst_83 = arith.constant 1.000000e+00 : f32
    %70 = vector.broadcast %cst_83 : f32 to vector<8x256xf32>
    %71 = arith.subf %69, %70 : vector<8x256xf32>
    %72 = arith.select %66, %64, %71 : vector<8x256xi1>, vector<8x256xf32>
    %c0_84 = arith.constant 0 : index
    %c0_85 = arith.constant 0 : index
    %c0_86 = arith.constant 0 : index
    %73 = vector.load %arg6[%c0_84, %c0_85, %c0_86] : memref<1x8x256xf32, #tpu.memory_space<vmem>>, vector<1x8x256xf32>
    %74 = vector.shape_cast %73 : vector<1x8x256xf32> to vector<8x256xf32>
    %75 = vector.shape_cast %72 : vector<8x256xf32> to vector<1x8x256xf32>
    tpu.vector_store %arg6[%c0_84, %c0_85, %c0_86], %75 {strides = array<i32>} : memref<1x8x256xf32, #tpu.memory_space<vmem>>, vector<1x8x256xf32>,
    return
  }
  func.func @transform_0(%arg0: i32) -> (i32, i32, i32, i32) {
    %c0_i32 = arith.constant 0 : i32
    %c0_i32_0 = arith.constant 0 : i32
    %c0_i32_1 = arith.constant 0 : i32
    %c0_i32_2 = arith.constant 0 : i32
    return %arg0, %c0_i32, %c0_i32_0, %c0_i32_1 : i32, i32, i32, i32
  }
  func.func @transform_1(%arg0: i32) -> (i32, i32) {
    %c0_i32 = arith.constant 0 : i32
    %c0_i32_0 = arith.constant 0 : i32
    %c0_i32_1 = arith.constant 0 : i32
    return %c0_i32, %c0_i32_0 : i32, i32
  }
  func.func @transform_2(%arg0: i32) -> (i32, i32) {
    %c0_i32 = arith.constant 0 : i32
    %c0_i32_0 = arith.constant 0 : i32
    %c0_i32_1 = arith.constant 0 : i32
    return %c0_i32, %c0_i32_0 : i32, i32
  }
  func.func @transform_3(%arg0: i32) -> (i32, i32) {
    %c0_i32 = arith.constant 0 : i32
    %c0_i32_0 = arith.constant 0 : i32
    %c0_i32_1 = arith.constant 0 : i32
    return %c0_i32, %c0_i32_0 : i32, i32
  }
  func.func @transform_4(%arg0: i32) -> (i32, i32) {
    %c0_i32 = arith.constant 0 : i32
    %c0_i32_0 = arith.constant 0 : i32
    %c0_i32_1 = arith.constant 0 : i32
    return %c0_i32, %c0_i32_0 : i32, i32
  }
  func.func @transform_5(%arg0: i32) -> (i32, i32, i32) {
    %c0_i32 = arith.constant 0 : i32
    %c0_i32_0 = arith.constant 0 : i32
    %c0_i32_1 = arith.constant 0 : i32
    return %arg0, %c0_i32, %c0_i32_0 : i32, i32, i32
  }
}

</mosaic_0001>

<llo_original>
// kernel: conv_block_forward.1
$region0: #{conv_block_forward.1}
  #allocation0 [shape = 'u32[]', space=smem, size = 0x4, offset = 0x4, fixed_abs, tag = 'smem constant byte address 0x4 - core index']
  #allocation1 [shape = 'u32[144,128]{1,0:T(1,128)}', space=vmem, size = 0x12000, scoped, tag = 'internal scratch']
  #allocation2 [shape = 'f32[18,18,4]{2,1,0:T(8,128)}', space=vmem, size = 0x36000, scoped, tag = 'scratch operand']
  #allocation3 [shape = 'f32[18,18,8]{2,1,0:T(8,128)}', space=vmem, size = 0x36000, scoped, tag = 'scratch operand']
  %s0 = inlined_call_operand.vmem [shape: f32[2,16,16,4], index: 0, kind: input, shape index: {}]
  %s1 = inlined_call_operand.vmem [shape: f32[36,8], index: 1, kind: input, shape index: {}]
  %s2 = inlined_call_operand.vmem [shape: f32[1,8], index: 2, kind: input, shape index: {}]
  %s3 = inlined_call_operand.vmem [shape: f32[8,72], index: 3, kind: input, shape index: {}]
  %s4 = inlined_call_operand.vmem [shape: f32[8,1], index: 4, kind: input, shape index: {}]
  %s5 = inlined_call_operand.vmem [shape: f32[2,8,256], index: 5, kind: output, shape index: {}]
  %s6 = sld [smem:[#allocation0]]
  $region53: #{conv_block_forward.1} parent=0
    _
  %s8 = ssub.s32 1, %s6
  %s9 = scalar_select 0, %s8, %s6
  loop: start=0, step=1, limit=4
  $region2: #{conv_block_forward.1} parent=0 // loop_pre_header
    _
  $region3: #{conv_block_forward.1} parent=0 // loop_header
    %s11 = sphi 0, %s15
    %p12 = scmp.ge.s32.totalorder %s11, 4
    %s21 = sphi 0, %s23
    %s24 = sphi 0, %s21
    %s25 = sphi 0, %s24
    %s41 = sphi 0, %s25
    %s45 = sphi 0, %s45
    %s47 = sphi 0, %s45
    %s48 = sphi 0, %s47
    %s62 = sphi 0, %s48
    %s66 = sphi 0, %s66
    %s68 = sphi 0, %s66
    %s69 = sphi 0, %s68
    %s83 = sphi 0, %s69
    %s87 = sphi 0, %s87
    %s89 = sphi 0, %s87
    %s90 = sphi 0, %s89
    %s104 = sphi 0, %s90
    %s108 = sphi 0, %s108
    %s110 = sphi 0, %s108
    %s111 = sphi 0, %s110
    %s125 = sphi 0, %s111
    %s131 = sphi 0, %s133
    %s134 = sphi 0, %s131
    %s135 = sphi 0, %s134
    %s151 = sphi 0, %s135
  $region4: #{conv_block_forward.1} parent=0 // loop_header_branch
    %14 = sbr.rel (%p12) target = $region8
  $region5: #{conv_block_forward.1} parent=0 // loop_body
    %s16 = ssub.s32 %s11, 1
    %s17 = ssub.s32 %s11, 2
    %s18 = sadd.s32 %s11, 1
    %s19 = ssub.s32 %s11, %s18
    %p20 = scmp.eq.s32.totalorder %s19, 0
    %s22 = sadd.s32 %s21, 1
    %s23 = scalar_select %p20, %s21, %s22
    %p26 = pneg %p20
    %p27 = scmp.eq.s32.totalorder %s11, 1
    %p28 = por %p26, %p27
    %p29 = scmp.ne.s32.totalorder %s21, %s24
    %p30 = scmp.eq.s32.totalorder %s11, 0
    %p31 = por %p29, %p30
    %p32 = scmp.ne.s32.totalorder %s21, %s24
    %p33 = scmp.eq.s32.totalorder %s16, 1
    %p34 = por %p32, %p33
    %p35 = scmp.ne.s32.totalorder %s24, %s25
    %p36 = scmp.eq.s32.totalorder %s16, 0
    %p37 = por %p35, %p36
    %p38 = scmp.ne.s32.totalorder %s24, %s25
    %p39 = scmp.eq.s32.totalorder %s17, 1
    %p40 = por %p38, %p39
    %p42 = scmp.ne.s32.totalorder %s25, %s41
    %p43 = scmp.eq.s32.totalorder %s17, 0
    %p44 = por %p42, %p43
    %s46 = sadd.s32 %s45, 1
    %p49 = scmp.eq.s32.totalorder %s11, 1
    %p50 = scmp.ne.s32.totalorder %s45, %s47
    %p51 = scmp.eq.s32.totalorder %s11, 0
    %p52 = por %p50, %p51
    %p53 = scmp.ne.s32.totalorder %s45, %s47
    %p54 = scmp.eq.s32.totalorder %s16, 1
    %p55 = por %p53, %p54
    %p56 = scmp.ne.s32.totalorder %s47, %s48
    %p57 = scmp.eq.s32.totalorder %s16, 0
    %p58 = por %p56, %p57
    %p59 = scmp.ne.s32.totalorder %s47, %s48
    %p60 = scmp.eq.s32.totalorder %s17, 1
    %p61 = por %p59, %p60
    %p63 = scmp.ne.s32.totalorder %s48, %s62
    %p64 = scmp.eq.s32.totalorder %s17, 0
    %p65 = por %p63, %p64
    %s67 = sadd.s32 %s66, 1
    %p70 = scmp.eq.s32.totalorder %s11, 1
    %p71 = scmp.ne.s32.totalorder %s66, %s68
    %p72 = scmp.eq.s32.totalorder %s11, 0
    %p73 = por %p71, %p72
    %p74 = scmp.ne.s32.totalorder %s66, %s68
    %p75 = scmp.eq.s32.totalorder %s16, 1
    %p76 = por %p74, %p75
    %p77 = scmp.ne.s32.totalorder %s68, %s69
    %p78 = scmp.eq.s32.totalorder %s16, 0
    %p79 = por %p77, %p78
    %p80 = scmp.ne.s32.totalorder %s68, %s69
    %p81 = scmp.eq.s32.totalorder %s17, 1
    %p82 = por %p80, %p81
    %p84 = scmp.ne.s32.totalorder %s69, %s83
    %p85 = scmp.eq.s32.totalorder %s17, 0
    %p86 = por %p84, %p85
    %s88 = sadd.s32 %s87, 1
    %p91 = scmp.eq.s32.totalorder %s11, 1
    %p92 = scmp.ne.s32.totalorder %s87, %s89
    %p93 = scmp.eq.s32.totalorder %s11, 0
    %p94 = por %p92, %p93
    %p95 = scmp.ne.s32.totalorder %s87, %s89
    %p96 = scmp.eq.s32.totalorder %s16, 1
    %p97 = por %p95, %p96
    %p98 = scmp.ne.s32.totalorder %s89, %s90
    %p99 = scmp.eq.s32.totalorder %s16, 0
    %p100 = por %p98, %p99
    %p101 = scmp.ne.s32.totalorder %s89, %s90
    %p102 = scmp.eq.s32.totalorder %s17, 1
    %p103 = por %p101, %p102
    %p105 = scmp.ne.s32.totalorder %s90, %s104
    %p106 = scmp.eq.s32.totalorder %s17, 0
    %p107 = por %p105, %p106
    %s109 = sadd.s32 %s108, 1
    %p112 = scmp.eq.s32.totalorder %s11, 1
    %p113 = scmp.ne.s32.totalorder %s108, %s110
    %p114 = scmp.eq.s32.totalorder %s11, 0
    %p115 = por %p113, %p114
    %p116 = scmp.ne.s32.totalorder %s108, %s110
    %p117 = scmp.eq.s32.totalorder %s16, 1
    %p118 = por %p116, %p117
    %p119 = scmp.ne.s32.totalorder %s110, %s111
    %p120 = scmp.eq.s32.totalorder %s16, 0
    %p121 = por %p119, %p120
    %p122 = scmp.ne.s32.totalorder %s110, %s111
    %p123 = scmp.eq.s32.totalorder %s17, 1
    %p124 = por %p122, %p123
    %p126 = scmp.ne.s32.totalorder %s111, %s125
    %p127 = scmp.eq.s32.totalorder %s17, 0
    %p128 = por %p126, %p127
    %s129 = ssub.s32 %s11, %s18
    %p130 = scmp.eq.s32.totalorder %s129, 0
    %s132 = sadd.s32 %s131, 1
    %s133 = scalar_select %p130, %s131, %s132
    %p136 = pneg %p130
    %p137 = scmp.eq.s32.totalorder %s11, 1
    %p138 = por %p136, %p137
    %p139 = scmp.ne.s32.totalorder %s131, %s134
    %p140 = scmp.eq.s32.totalorder %s11, 0
    %p141 = por %p139, %p140
    %p142 = scmp.ne.s32.totalorder %s131, %s134
    %p143 = scmp.eq.s32.totalorder %s16, 1
    %p144 = por %p142, %p143
    %p145 = scmp.ne.s32.totalorder %s134, %s135
    %p146 = scmp.eq.s32.totalorder %s16, 0
    %p147 = por %p145, %p146
    %p148 = scmp.ne.s32.totalorder %s134, %s135
    %p149 = scmp.eq.s32.totalorder %s17, 1
    %p150 = por %p148, %p149
    %p152 = scmp.ne.s32.totalorder %s135, %s151
    %p153 = scmp.eq.s32.totalorder %s17, 0
    %p154 = por %p152, %p153
    %p155 = scmp.le.s32.totalorder 1, %s11
    %p156 = scmp.lt.s32.totalorder %s11, 3
    %p157 = pnand %p155, %p156
    %p158 = pneg %p157
    // Predicated region
    $region9: #{conv_block_forward.1} parent=5 // pred_check
      _
    $region10: #{conv_block_forward.1} parent=5 // pred_check_branch
      %160 = sbr.rel (%p157) target = $region12
    $region11: #{conv_block_forward.1} parent=5 // pred_region
      %s161 = ssub.s32 %s11, 1
      // Predicated region
      $region13: #{conv_block_forward.1} parent=11 // pred_check
        %p162 = pneg %p58
      $region14: #{conv_block_forward.1} parent=11 // pred_check_branch
        %164 = sbr.rel (%p162) target = $region16
      $region15: #{conv_block_forward.1} parent=11 // pred_region
        _
      $region16: #{conv_block_forward.1} parent=11 // pred_fallthru
        _
      // Predicated region
      $region17: #{conv_block_forward.1} parent=11 // pred_check
        %p165 = pneg %p79
      $region18: #{conv_block_forward.1} parent=11 // pred_check_branch
        %167 = sbr.rel (%p165) target = $region20
      $region19: #{conv_block_forward.1} parent=11 // pred_region
        _
      $region20: #{conv_block_forward.1} parent=11 // pred_fallthru
        _
      // Predicated region
      $region21: #{conv_block_forward.1} parent=11 // pred_check
        %p168 = pneg %p100
      $region22: #{conv_block_forward.1} parent=11 // pred_check_branch
        %170 = sbr.rel (%p168) target = $region24
      $region23: #{conv_block_forward.1} parent=11 // pred_region
        _
      $region24: #{conv_block_forward.1} parent=11 // pred_fallthru
        _
      // Predicated region
      $region25: #{conv_block_forward.1} parent=11 // pred_check
        %p171 = pneg %p121
      $region26: #{conv_block_forward.1} parent=11 // pred_check_branch
        %173 = sbr.rel (%p171) target = $region28
      $region27: #{conv_block_forward.1} parent=11 // pred_region
        _
      $region28: #{conv_block_forward.1} parent=11 // pred_fallthru
        _
    $region12: #{conv_block_forward.1} parent=5 // pred_fallthru
      _
    %p174 = scmp.lt.s32.totalorder %s11, 2
    // Predicated region
    $region29: #{conv_block_forward.1} parent=5 // pred_check
      %p175 = pneg %p174
    $region30: #{conv_block_forward.1} parent=5 // pred_check_branch
      %177 = sbr.rel (%p175) target = $region32
    $region31: #{conv_block_forward.1} parent=5 // pred_region
      // Predicated region
      $region33: #{conv_block_forward.1} parent=31 // pred_check
        %p178 = pneg %p31
      $region34: #{conv_block_forward.1} parent=31 // pred_check_branch
        %180 = sbr.rel (%p178) target = $region36
      $region35: #{conv_block_forward.1} parent=31 // pred_region
        %p181 = scmp.lt.s32.totalorder %s11, 1
        %s182 = scalar_select %p181, %s11, 1
        %s183 = smul.addr %s182, 32
        %s184 = smul.addr %s183, 8
        %s185 = scalar_lea.vmem %s0, %s184
      $region36: #{conv_block_forward.1} parent=31 // pred_fallthru
        _
    $region32: #{conv_block_forward.1} parent=5 // pred_fallthru
      _
    %p186 = scmp.le.s32.totalorder 1, %s11
    %p187 = scmp.lt.s32.totalorder %s11, 3
    %p188 = pnand %p186, %p187
    %p189 = pneg %p188
    // Predicated region
    $region37: #{conv_block_forward.1} parent=5 // pred_check
      _
    $region38: #{conv_block_forward.1} parent=5 // pred_check_branch
      %191 = sbr.rel (%p188) target = $region40
    $region39: #{conv_block_forward.1} parent=5 // pred_region
      %s192 = ssub.s32 %s11, 1
      %p193 = scmp.lt.s32.totalorder %s16, 1
      %s194 = scalar_select %p193, %s16, 1
      %s195 = smul.addr %s194, 32
      %s196 = smul.addr %s195, 8
      %s197 = scalar_lea.vmem %s0, %s196
      %p198 = pneg %p37
      %p199 = pneg %p34
      %p200 = pneg %p58
      %p201 = pneg %p55
      %p202 = pneg %p79
      %p203 = pneg %p76
      %p204 = pneg %p100
      %p205 = pneg %p97
      %p206 = pneg %p121
      %p207 = pneg %p118
      %p208 = pneg %p147
      %p209 = pneg %p144
      %p210 = scmp.lt.s32.totalorder %s16, 1
      %s211 = scalar_select %p210, %s16, 1
      %s212 = smul.addr %s211, 2
      %s213 = smul.addr %s212, 8
      %s214 = scalar_lea.vmem %s5, %s213
      %p215 = scmp.lt.s32.totalorder %s16, 1
      %s216 = scalar_select %p215, %s16, 1
      %s217 = smul.addr %s216, 32
      %s218 = smul.addr %s217, 8
      %s219 = scalar_lea.vmem %s0, %s218
      %p220 = scmp.lt.s32.totalorder %s16, 1
      %s221 = scalar_select %p220, %s16, 1
      %s222 = smul.addr %s221, 2
      %s223 = smul.addr %s222, 8
      %s224 = scalar_lea.vmem %s5, %s223
      %vm225 = vcmask 31744
      %226 = vst.msk [vmem:[#allocation2] sm:$0xff] %vm225, 0.0
      %227 = vst.msk [vmem:[#allocation2 + $0x8] sm:$0xff] %vm225, 0.0
      %vm228 = vcmask 25600
      %229 = vst.msk [vmem:[#allocation2 + $0x10] sm:$0x3] %vm228, 0.0
      %230 = vst.msk [vmem:[#allocation2 + $0x18] sm:$0xff] %vm225, 0.0
      %231 = vst.msk [vmem:[#allocation2 + $0x20] sm:$0xff] %vm225, 0.0
      %232 = vst.msk [vmem:[#allocation2 + $0x28] sm:$0x3] %vm228, 0.0
      %233 = vst.msk [vmem:[#allocation2 + $0x30] sm:$0xff] %vm225, 0.0
      %234 = vst.msk [vmem:[#allocation2 + $0x38] sm:$0xff] %vm225, 0.0
      %235 = vst.msk [vmem:[#allocation2 + $0x40] sm:$0x3] %vm228, 0.0
      %236 = vst.msk [vmem:[#allocation2 + $0x48] sm:$0xff] %vm225, 0.0
      %237 = vst.msk [vmem:[#allocation2 + $0x50] sm:$0xff] %vm225, 0.0
      %238 = vst.msk [vmem:[#allocation2 + $0x58] sm:$0x3] %vm228, 0.0
      %239 = vst.msk [vmem:[#allocation2 + $0x60] sm:$0xff] %vm225, 0.0
      %240 = vst.msk [vmem:[#allocation2 + $0x68] sm:$0xff] %vm225, 0.0
      %241 = vst.msk [vmem:[#allocation2 + $0x70] sm:$0x3] %vm228, 0.0
      %242 = vst.msk [vmem:[#allocation2 + $0x78] sm:$0xff] %vm225, 0.0
      %243 = vst.msk [vmem:[#allocation2 + $0x80] sm:$0xff] %vm225, 0.0
      %244 = vst.msk [vmem:[#allocation2 + $0x88] sm:$0x3] %vm228, 0.0
      %245 = vst.msk [vmem:[#allocation2 + $0x90] sm:$0xff] %vm225, 0.0
      %246 = vst.msk [vmem:[#allocation2 + $0x98] sm:$0xff] %vm225, 0.0
      %247 = vst.msk [vmem:[#allocation2 + $0xa0] sm:$0x3] %vm228, 0.0
      %248 = vst.msk [vmem:[#allocation2 + $0xa8] sm:$0xff] %vm225, 0.0
      %249 = vst.msk [vmem:[#allocation2 + $0xb0] sm:$0xff] %vm225, 0.0
      %250 = vst.msk [vmem:[#allocation2 + $0xb8] sm:$0x3] %vm228, 0.0
      %251 = vst.msk [vmem:[#allocation2 + $0xc0] sm:$0xff] %vm225, 0.0
      %252 = vst.msk [vmem:[#allocation2 + $0xc8] sm:$0xff] %vm225, 0.0
      %253 = vst.msk [vmem:[#allocation2 + $0xd0] sm:$0x3] %vm228, 0.0
      %254 = vst.msk [vmem:[#allocation2 + $0xd8] sm:$0xff] %vm225, 0.0
      %255 = vst.msk [vmem:[#allocation2 + $0xe0] sm:$0xff] %vm225, 0.0
      %256 = vst.msk [vmem:[#allocation2 + $0xe8] sm:$0x3] %vm228, 0.0
      %257 = vst.msk [vmem:[#allocation2 + $0xf0] sm:$0xff] %vm225, 0.0
      %258 = vst.msk [vmem:[#allocation2 + $0xf8] sm:$0xff] %vm225, 0.0
      %259 = vst.msk [vmem:[#allocation2 + $0x100] sm:$0x3] %vm228, 0.0
      %260 = vst.msk [vmem:[#allocation2 + $0x108] sm:$0xff] %vm225, 0.0
      %261 = vst.msk [vmem:[#allocation2 + $0x110] sm:$0xff] %vm225, 0.0
      %262 = vst.msk [vmem:[#allocation2 + $0x118] sm:$0x3] %vm228, 0.0
      %263 = vst.msk [vmem:[#allocation2 + $0x120] sm:$0xff] %vm225, 0.0
      %264 = vst.msk [vmem:[#allocation2 + $0x128] sm:$0xff] %vm225, 0.0
      %265 = vst.msk [vmem:[#allocation2 + $0x130] sm:$0x3] %vm228, 0.0
      %266 = vst.msk [vmem:[#allocation2 + $0x138] sm:$0xff] %vm225, 0.0
      %267 = vst.msk [vmem:[#allocation2 + $0x140] sm:$0xff] %vm225, 0.0
      %268 = vst.msk [vmem:[#allocation2 + $0x148] sm:$0x3] %vm228, 0.0
      %269 = vst.msk [vmem:[#allocation2 + $0x150] sm:$0xff] %vm225, 0.0
      %270 = vst.msk [vmem:[#allocation2 + $0x158] sm:$0xff] %vm225, 0.0
      %271 = vst.msk [vmem:[#allocation2 + $0x160] sm:$0x3] %vm228, 0.0
      %272 = vst.msk [vmem:[#allocation2 + $0x168] sm:$0xff] %vm225, 0.0
      %273 = vst.msk [vmem:[#allocation2 + $0x170] sm:$0xff] %vm225, 0.0
      %274 = vst.msk [vmem:[#allocation2 + $0x178] sm:$0x3] %vm228, 0.0
      %275 = vst.msk [vmem:[#allocation2 + $0x180] sm:$0xff] %vm225, 0.0
      %276 = vst.msk [vmem:[#allocation2 + $0x188] sm:$0xff] %vm225, 0.0
      %277 = vst.msk [vmem:[#allocation2 + $0x190] sm:$0x3] %vm228, 0.0
      %278 = vst.msk [vmem:[#allocation2 + $0x198] sm:$0xff] %vm225, 0.0
      %279 = vst.msk [vmem:[#allocation2 + $0x1a0] sm:$0xff] %vm225, 0.0
      %280 = vst.msk [vmem:[#allocation2 + $0x1a8] sm:$0x3] %vm228, 0.0
      %vm281 = vcmask 64512
      %282 = vst.msk [vmem:[#allocation3] sm:$0xff] %vm281, 0.0
      %283 = vst.msk [vmem:[#allocation3 + $0x8] sm:$0xff] %vm281, 0.0
      %vm284 = vcmask 58368
      %285 = vst.msk [vmem:[#allocation3 + $0x10] sm:$0x3] %vm284, 0.0
      %286 = vst.msk [vmem:[#allocation3 + $0x18] sm:$0xff] %vm281, 0.0
      %287 = vst.msk [vmem:[#allocation3 + $0x20] sm:$0xff] %vm281, 0.0
      %288 = vst.msk [vmem:[#allocation3 + $0x28] sm:$0x3] %vm284, 0.0
      %289 = vst.msk [vmem:[#allocation3 + $0x30] sm:$0xff] %vm281, 0.0
      %290 = vst.msk [vmem:[#allocation3 + $0x38] sm:$0xff] %vm281, 0.0
      %291 = vst.msk [vmem:[#allocation3 + $0x40] sm:$0x3] %vm284, 0.0
      %292 = vst.msk [vmem:[#allocation3 + $0x48] sm:$0xff] %vm281, 0.0
      %293 = vst.msk [vmem:[#allocation3 + $0x50] sm:$0xff] %vm281, 0.0
      %294 = vst.msk [vmem:[#allocation3 + $0x58] sm:$0x3] %vm284, 0.0
      %295 = vst.msk [vmem:[#allocation3 + $0x60] sm:$0xff] %vm281, 0.0
      %296 = vst.msk [vmem:[#allocation3 + $0x68] sm:$0xff] %vm281, 0.0
      %297 = vst.msk [vmem:[#allocation3 + $0x70] sm:$0x3] %vm284, 0.0
      %298 = vst.msk [vmem:[#allocation3 + $0x78] sm:$0xff] %vm281, 0.0
      %299 = vst.msk [vmem:[#allocation3 + $0x80] sm:$0xff] %vm281, 0.0
      %300 = vst.msk [vmem:[#allocation3 + $0x88] sm:$0x3] %vm284, 0.0
      %301 = vst.msk [vmem:[#allocation3 + $0x90] sm:$0xff] %vm281, 0.0
      %302 = vst.msk [vmem:[#allocation3 + $0x98] sm:$0xff] %vm281, 0.0
      %303 = vst.msk [vmem:[#allocation3 + $0xa0] sm:$0x3] %vm284, 0.0
      %304 = vst.msk [vmem:[#allocation3 + $0xa8] sm:$0xff] %vm281, 0.0
      %305 = vst.msk [vmem:[#allocation3 + $0xb0] sm:$0xff] %vm281, 0.0
      %306 = vst.msk [vmem:[#allocation3 + $0xb8] sm:$0x3] %vm284, 0.0
      %307 = vst.msk [vmem:[#allocation3 + $0xc0] sm:$0xff] %vm281, 0.0
      %308 = vst.msk [vmem:[#allocation3 + $0xc8] sm:$0xff] %vm281, 0.0
      %309 = vst.msk [vmem:[#allocation3 + $0xd0] sm:$0x3] %vm284, 0.0
      %310 = vst.msk [vmem:[#allocation3 + $0xd8] sm:$0xff] %vm281, 0.0
      %311 = vst.msk [vmem:[#allocation3 + $0xe0] sm:$0xff] %vm281, 0.0
      %312 = vst.msk [vmem:[#allocation3 + $0xe8] sm:$0x3] %vm284, 0.0
      %313 = vst.msk [vmem:[#allocation3 + $0xf0] sm:$0xff] %vm281, 0.0
      %314 = vst.msk [vmem:[#allocation3 + $0xf8] sm:$0xff] %vm281, 0.0
      %315 = vst.msk [vmem:[#allocation3 + $0x100] sm:$0x3] %vm284, 0.0
      %316 = vst.msk [vmem:[#allocation3 + $0x108] sm:$0xff] %vm281, 0.0
      %317 = vst.msk [vmem:[#allocation3 + $0x110] sm:$0xff] %vm281, 0.0
      %318 = vst.msk [vmem:[#allocation3 + $0x118] sm:$0x3] %vm284, 0.0
      %319 = vst.msk [vmem:[#allocation3 + $0x120] sm:$0xff] %vm281, 0.0
      %320 = vst.msk [vmem:[#allocation3 + $0x128] sm:$0xff] %vm281, 0.0
      %321 = vst.msk [vmem:[#allocation3 + $0x130] sm:$0x3] %vm284, 0.0
      %322 = vst.msk [vmem:[#allocation3 + $0x138] sm:$0xff] %vm281, 0.0
      %323 = vst.msk [vmem:[#allocation3 + $0x140] sm:$0xff] %vm281, 0.0
      %324 = vst.msk [vmem:[#allocation3 + $0x148] sm:$0x3] %vm284, 0.0
      %325 = vst.msk [vmem:[#allocation3 + $0x150] sm:$0xff] %vm281, 0.0
      %326 = vst.msk [vmem:[#allocation3 + $0x158] sm:$0xff] %vm281, 0.0
      %327 = vst.msk [vmem:[#allocation3 + $0x160] sm:$0x3] %vm284, 0.0
      %328 = vst.msk [vmem:[#allocation3 + $0x168] sm:$0xff] %vm281, 0.0
      %329 = vst.msk [vmem:[#allocation3 + $0x170] sm:$0xff] %vm281, 0.0
      %330 = vst.msk [vmem:[#allocation3 + $0x178] sm:$0x3] %vm284, 0.0
      %331 = vst.msk [vmem:[#allocation3 + $0x180] sm:$0xff] %vm281, 0.0
      %332 = vst.msk [vmem:[#allocation3 + $0x188] sm:$0xff] %vm281, 0.0
      %333 = vst.msk [vmem:[#allocation3 + $0x190] sm:$0x3] %vm284, 0.0
      %334 = vst.msk [vmem:[#allocation3 + $0x198] sm:$0xff] %vm281, 0.0
      %335 = vst.msk [vmem:[#allocation3 + $0x1a0] sm:$0xff] %vm281, 0.0
      %336 = vst.msk [vmem:[#allocation3 + $0x1a8] sm:$0x3] %vm284, 0.0
      %v337 = vld [vmem:[%s219] sm:$0xff]
      %v338 = vld [vmem:[%s219 + $0x8] sm:$0xff]
      %v339 = vld [vmem:[%s219 + $0x10] sm:$0xff]
      %v340 = vld [vmem:[%s219 + $0x18] sm:$0xff]
      %v341 = vld [vmem:[%s219 + $0x20] sm:$0xff]
      %v342 = vld [vmem:[%s219 + $0x28] sm:$0xff]
      %v343 = vld [vmem:[%s219 + $0x30] sm:$0xff]
      %v344 = vld [vmem:[%s219 + $0x38] sm:$0xff]
      %v345 = vld [vmem:[%s219 + $0x40] sm:$0xff]
      %v346 = vld [vmem:[%s219 + $0x48] sm:$0xff]
      %v347 = vld [vmem:[%s219 + $0x50] sm:$0xff]
      %v348 = vld [vmem:[%s219 + $0x58] sm:$0xff]
      %v349 = vld [vmem:[%s219 + $0x60] sm:$0xff]
      %v350 = vld [vmem:[%s219 + $0x68] sm:$0xff]
      %v351 = vld [vmem:[%s219 + $0x70] sm:$0xff]
      %v352 = vld [vmem:[%s219 + $0x78] sm:$0xff]
      %v353 = vld [vmem:[%s219 + $0x80] sm:$0xff]
      %v354 = vld [vmem:[%s219 + $0x88] sm:$0xff]
      %v355 = vld [vmem:[%s219 + $0x90] sm:$0xff]
      %v356 = vld [vmem:[%s219 + $0x98] sm:$0xff]
      %v357 = vld [vmem:[%s219 + $0xa0] sm:$0xff]
      %v358 = vld [vmem:[%s219 + $0xa8] sm:$0xff]
      %v359 = vld [vmem:[%s219 + $0xb0] sm:$0xff]
      %v360 = vld [vmem:[%s219 + $0xb8] sm:$0xff]
      %v361 = vld [vmem:[%s219 + $0xc0] sm:$0xff]
      %v362 = vld [vmem:[%s219 + $0xc8] sm:$0xff]
      %v363 = vld [vmem:[%s219 + $0xd0] sm:$0xff]
      %v364 = vld [vmem:[%s219 + $0xd8] sm:$0xff]
      %v365 = vld [vmem:[%s219 + $0xe0] sm:$0xff]
      %v366 = vld [vmem:[%s219 + $0xe8] sm:$0xff]
      %v367 = vld [vmem:[%s219 + $0xf0] sm:$0xff]
      %v368 = vld [vmem:[%s219 + $0xf8] sm:$0xff]
      %s369 = scalar_lea.vmem [#allocation2], 24
      %370 = vst.msk [vmem:[%s369 + $0x1] sm:$0xff] %vm225, %v337
      %371 = vst.msk [vmem:[%s369 + $0x9] sm:$0xff] %vm225, %v338
      %372 = vst.msk [vmem:[%s369 + $0x19] sm:$0xff] %vm225, %v339
      %373 = vst.msk [vmem:[%s369 + $0x21] sm:$0xff] %vm225, %v340
      %374 = vst.msk [vmem:[%s369 + $0x31] sm:$0xff] %vm225, %v341
      %375 = vst.msk [vmem:[%s369 + $0x39] sm:$0xff] %vm225, %v342
      %376 = vst.msk [vmem:[%s369 + $0x49] sm:$0xff] %vm225, %v343
      %377 = vst.msk [vmem:[%s369 + $0x51] sm:$0xff] %vm225, %v344
      %378 = vst.msk [vmem:[%s369 + $0x61] sm:$0xff] %vm225, %v345
      %379 = vst.msk [vmem:[%s369 + $0x69] sm:$0xff] %vm225, %v346
      %380 = vst.msk [vmem:[%s369 + $0x79] sm:$0xff] %vm225, %v347
      %381 = vst.msk [vmem:[%s369 + $0x81] sm:$0xff] %vm225, %v348
      %382 = vst.msk [vmem:[%s369 + $0x91] sm:$0xff] %vm225, %v349
      %383 = vst.msk [vmem:[%s369 + $0x99] sm:$0xff] %vm225, %v350
      %384 = vst.msk [vmem:[%s369 + $0xa9] sm:$0xff] %vm225, %v351
      %385 = vst.msk [vmem:[%s369 + $0xb1] sm:$0xff] %vm225, %v352
      %386 = vst.msk [vmem:[%s369 + $0xc1] sm:$0xff] %vm225, %v353
      %387 = vst.msk [vmem:[%s369 + $0xc9] sm:$0xff] %vm225, %v354
      %388 = vst.msk [vmem:[%s369 + $0xd9] sm:$0xff] %vm225, %v355
      %389 = vst.msk [vmem:[%s369 + $0xe1] sm:$0xff] %vm225, %v356
      %390 = vst.msk [vmem:[%s369 + $0xf1] sm:$0xff] %vm225, %v357
      %391 = vst.msk [vmem:[%s369 + $0xf9] sm:$0xff] %vm225, %v358
      %392 = vst.msk [vmem:[%s369 + $0x109] sm:$0xff] %vm225, %v359
      %393 = vst.msk [vmem:[%s369 + $0x111] sm:$0xff] %vm225, %v360
      %394 = vst.msk [vmem:[%s369 + $0x121] sm:$0xff] %vm225, %v361
      %395 = vst.msk [vmem:[%s369 + $0x129] sm:$0xff] %vm225, %v362
      %396 = vst.msk [vmem:[%s369 + $0x139] sm:$0xff] %vm225, %v363
      %397 = vst.msk [vmem:[%s369 + $0x141] sm:$0xff] %vm225, %v364
      %398 = vst.msk [vmem:[%s369 + $0x151] sm:$0xff] %vm225, %v365
      %399 = vst.msk [vmem:[%s369 + $0x159] sm:$0xff] %vm225, %v366
      %400 = vst.msk [vmem:[%s369 + $0x169] sm:$0xff] %vm225, %v367
      %401 = vst.msk [vmem:[%s369 + $0x171] sm:$0xff] %vm225, %v368
      %v402 = vld [vmem:[#allocation2] sm:$0xff]
      %v403 = vld [vmem:[#allocation2 + $0x8] sm:$0xff]
      %v404 = vld [vmem:[#allocation2 + $0x18] sm:$0xff]
      %v405 = vld [vmem:[#allocation2 + $0x20] sm:$0xff]
      %v406 = vld [vmem:[#allocation2 + $0x30] sm:$0xff]
      %v407 = vld [vmem:[#allocation2 + $0x38] sm:$0xff]
      %v408 = vld [vmem:[#allocation2 + $0x48] sm:$0xff]
      %v409 = vld [vmem:[#allocation2 + $0x50] sm:$0xff]
      %v410 = vld [vmem:[#allocation2 + $0x60] sm:$0xff]
      %v411 = vld [vmem:[#allocation2 + $0x68] sm:$0xff]
      %v412 = vld [vmem:[#allocation2 + $0x78] sm:$0xff]
      %v413 = vld [vmem:[#allocation2 + $0x80] sm:$0xff]
      %v414 = vld [vmem:[#allocation2 + $0x90] sm:$0xff]
      %v415 = vld [vmem:[#allocation2 + $0x98] sm:$0xff]
      %v416 = vld [vmem:[#allocation2 + $0xa8] sm:$0xff]
      %v417 = vld [vmem:[#allocation2 + $0xb0] sm:$0xff]
      %v418 = vld [vmem:[#allocation2 + $0xc0] sm:$0xff]
      %v419 = vld [vmem:[#allocation2 + $0xc8] sm:$0xff]
      %v420 = vld [vmem:[#allocation2 + $0xd8] sm:$0xff]
      %v421 = vld [vmem:[#allocation2 + $0xe0] sm:$0xff]
      %v422 = vld [vmem:[#allocation2 + $0xf0] sm:$0xff]
      %v423 = vld [vmem:[#allocation2 + $0xf8] sm:$0xff]
      %v424 = vld [vmem:[#allocation2 + $0x108] sm:$0xff]
      %v425 = vld [vmem:[#allocation2 + $0x110] sm:$0xff]
      %v426 = vld [vmem:[#allocation2 + $0x120] sm:$0xff]
      %v427 = vld [vmem:[#allocation2 + $0x128] sm:$0xff]
      %v428 = vld [vmem:[#allocation2 + $0x138] sm:$0xff]
      %v429 = vld [vmem:[#allocation2 + $0x140] sm:$0xff]
      %v430 = vld [vmem:[#allocation2 + $0x150] sm:$0xff]
      %v431 = vld [vmem:[#allocation2 + $0x158] sm:$0xff]
      %v432 = vld [vmem:[#allocation2 + $0x168] sm:$0xff]
      %v433 = vld [vmem:[#allocation2 + $0x170] sm:$0xff]
      %v434 = vld [vmem:[#allocation2 + $0x1] sm:$0xff]
      %v435 = vld [vmem:[#allocation2 + $0x9] sm:$0xff]
      %v436 = vld [vmem:[#allocation2 + $0x19] sm:$0xff]
      %v437 = vld [vmem:[#allocation2 + $0x21] sm:$0xff]
      %v438 = vld [vmem:[#allocation2 + $0x31] sm:$0xff]
      %v439 = vld [vmem:[#allocation2 + $0x39] sm:$0xff]
      %v440 = vld [vmem:[#allocation2 + $0x49] sm:$0xff]
      %v441 = vld [vmem:[#allocation2 + $0x51] sm:$0xff]
      %v442 = vld [vmem:[#allocation2 + $0x61] sm:$0xff]
      %v443 = vld [vmem:[#allocation2 + $0x69] sm:$0xff]
      %v444 = vld [vmem:[#allocation2 + $0x79] sm:$0xff]
      %v445 = vld [vmem:[#allocation2 + $0x81] sm:$0xff]
      %v446 = vld [vmem:[#allocation2 + $0x91] sm:$0xff]
      %v447 = vld [vmem:[#allocation2 + $0x99] sm:$0xff]
      %v448 = vld [vmem:[#allocation2 + $0xa9] sm:$0xff]
      %v449 = vld [vmem:[#allocation2 + $0xb1] sm:$0xff]
      %v450 = vld [vmem:[#allocation2 + $0xc1] sm:$0xff]
      %v451 = vld [vmem:[#allocation2 + $0xc9] sm:$0xff]
      %v452 = vld [vmem:[#allocation2 + $0xd9] sm:$0xff]
      %v453 = vld [vmem:[#allocation2 + $0xe1] sm:$0xff]
      %v454 = vld [vmem:[#allocation2 + $0xf1] sm:$0xff]
      %v455 = vld [vmem:[#allocation2 + $0xf9] sm:$0xff]
      %v456 = vld [vmem:[#allocation2 + $0x109] sm:$0xff]
      %v457 = vld [vmem:[#allocation2 + $0x111] sm:$0xff]
      %v458 = vld [vmem:[#allocation2 + $0x121] sm:$0xff]
      %v459 = vld [vmem:[#allocation2 + $0x129] sm:$0xff]
      %v460 = vld [vmem:[#allocation2 + $0x139] sm:$0xff]
      %v461 = vld [vmem:[#allocation2 + $0x141] sm:$0xff]
      %v462 = vld [vmem:[#allocation2 + $0x151] sm:$0xff]
      %v463 = vld [vmem:[#allocation2 + $0x159] sm:$0xff]
      %v464 = vld [vmem:[#allocation2 + $0x169] sm:$0xff]
      %v465 = vld [vmem:[#allocation2 + $0x171] sm:$0xff]
      %v466 = vld [vmem:[#allocation2 + $0x2] sm:$0xff]
      %v467 = vld [vmem:[#allocation2 + $0xa] sm:$0xff]
      %v468 = vld [vmem:[#allocation2 + $0x1a] sm:$0xff]
      %v469 = vld [vmem:[#allocation2 + $0x22] sm:$0xff]
      %v470 = vld [vmem:[#allocation2 + $0x32] sm:$0xff]
      %v471 = vld [vmem:[#allocation2 + $0x3a] sm:$0xff]
      %v472 = vld [vmem:[#allocation2 + $0x4a] sm:$0xff]
      %v473 = vld [vmem:[#allocation2 + $0x52] sm:$0xff]
      %v474 = vld [vmem:[#allocation2 + $0x62] sm:$0xff]
      %v475 = vld [vmem:[#allocation2 + $0x6a] sm:$0xff]
      %v476 = vld [vmem:[#allocation2 + $0x7a] sm:$0xff]
      %v477 = vld [vmem:[#allocation2 + $0x82] sm:$0xff]
      %v478 = vld [vmem:[#allocation2 + $0x92] sm:$0xff]
      %v479 = vld [vmem:[#allocation2 + $0x9a] sm:$0xff]
      %v480 = vld [vmem:[#allocation2 + $0xaa] sm:$0xff]
      %v481 = vld [vmem:[#allocation2 + $0xb2] sm:$0xff]
      %v482 = vld [vmem:[#allocation2 + $0xc2] sm:$0xff]
      %v483 = vld [vmem:[#allocation2 + $0xca] sm:$0xff]
      %v484 = vld [vmem:[#allocation2 + $0xda] sm:$0xff]
      %v485 = vld [vmem:[#allocation2 + $0xe2] sm:$0xff]
      %v486 = vld [vmem:[#allocation2 + $0xf2] sm:$0xff]
      %v487 = vld [vmem:[#allocation2 + $0xfa] sm:$0xff]
      %v488 = vld [vmem:[#allocation2 + $0x10a] sm:$0xff]
      %v489 = vld [vmem:[#allocation2 + $0x112] sm:$0xff]
      %v490 = vld [vmem:[#allocation2 + $0x122] sm:$0xff]
      %v491 = vld [vmem:[#allocation2 + $0x12a] sm:$0xff]
      %v492 = vld [vmem:[#allocation2 + $0x13a] sm:$0xff]
      %v493 = vld [vmem:[#allocation2 + $0x142] sm:$0xff]
      %v494 = vld [vmem:[#allocation2 + $0x152] sm:$0xff]
      %v495 = vld [vmem:[#allocation2 + $0x15a] sm:$0xff]
      %v496 = vld [vmem:[#allocation2 + $0x16a] sm:$0xff]
      %v497 = vld [vmem:[#allocation2 + $0x172] sm:$0xff]
      %v498 = vld [vmem:[%s369] sm:$0xff]
      %v499 = vld [vmem:[%s369 + $0x8] sm:$0xff]
      %v500 = vld [vmem:[%s369 + $0x18] sm:$0xff]
      %v501 = vld [vmem:[%s369 + $0x20] sm:$0xff]
      %v502 = vld [vmem:[%s369 + $0x30] sm:$0xff]
      %v503 = vld [vmem:[%s369 + $0x38] sm:$0xff]
      %v504 = vld [vmem:[%s369 + $0x48] sm:$0xff]
      %v505 = vld [vmem:[%s369 + $0x50] sm:$0xff]
      %v506 = vld [vmem:[%s369 + $0x60] sm:$0xff]
      %v507 = vld [vmem:[%s369 + $0x68] sm:$0xff]
      %v508 = vld [vmem:[%s369 + $0x78] sm:$0xff]
      %v509 = vld [vmem:[%s369 + $0x80] sm:$0xff]
      %v510 = vld [vmem:[%s369 + $0x90] sm:$0xff]
      %v511 = vld [vmem:[%s369 + $0x98] sm:$0xff]
      %v512 = vld [vmem:[%s369 + $0xa8] sm:$0xff]
      %v513 = vld [vmem:[%s369 + $0xb0] sm:$0xff]
      %v514 = vld [vmem:[%s369 + $0xc0] sm:$0xff]
      %v515 = vld [vmem:[%s369 + $0xc8] sm:$0xff]
      %v516 = vld [vmem:[%s369 + $0xd8] sm:$0xff]
      %v517 = vld [vmem:[%s369 + $0xe0] sm:$0xff]
      %v518 = vld [vmem:[%s369 + $0xf0] sm:$0xff]
      %v519 = vld [vmem:[%s369 + $0xf8] sm:$0xff]
      %v520 = vld [vmem:[%s369 + $0x108] sm:$0xff]
      %v521 = vld [vmem:[%s369 + $0x110] sm:$0xff]
      %v522 = vld [vmem:[%s369 + $0x120] sm:$0xff]
      %v523 = vld [vmem:[%s369 + $0x128] sm:$0xff]
      %v524 = vld [vmem:[%s369 + $0x138] sm:$0xff]
      %v525 = vld [vmem:[%s369 + $0x140] sm:$0xff]
      %v526 = vld [vmem:[%s369 + $0x150] sm:$0xff]
      %v527 = vld [vmem:[%s369 + $0x158] sm:$0xff]
      %v528 = vld [vmem:[%s369 + $0x168] sm:$0xff]
      %v529 = vld [vmem:[%s369 + $0x170] sm:$0xff]
      %v530 = vld [vmem:[%s369 + $0x1] sm:$0xff]
      %v531 = vld [vmem:[%s369 + $0x9] sm:$0xff]
      %v532 = vld [vmem:[%s369 + $0x19] sm:$0xff]
      %v533 = vld [vmem:[%s369 + $0x21] sm:$0xff]
      %v534 = vld [vmem:[%s369 + $0x31] sm:$0xff]
      %v535 = vld [vmem:[%s369 + $0x39] sm:$0xff]
      %v536 = vld [vmem:[%s369 + $0x49] sm:$0xff]
      %v537 = vld [vmem:[%s369 + $0x51] sm:$0xff]
      %v538 = vld [vmem:[%s369 + $0x61] sm:$0xff]
      %v539 = vld [vmem:[%s369 + $0x69] sm:$0xff]
      %v540 = vld [vmem:[%s369 + $0x79] sm:$0xff]
      %v541 = vld [vmem:[%s369 + $0x81] sm:$0xff]
      %v542 = vld [vmem:[%s369 + $0x91] sm:$0xff]
      %v543 = vld [vmem:[%s369 + $0x99] sm:$0xff]
      %v544 = vld [vmem:[%s369 + $0xa9] sm:$0xff]
      %v545 = vld [vmem:[%s369 + $0xb1] sm:$0xff]
      %v546 = vld [vmem:[%s369 + $0xc1] sm:$0xff]
      %v547 = vld [vmem:[%s369 + $0xc9] sm:$0xff]
      %v548 = vld [vmem:[%s369 + $0xd9] sm:$0xff]
      %v549 = vld [vmem:[%s369 + $0xe1] sm:$0xff]
      %v550 = vld [vmem:[%s369 + $0xf1] sm:$0xff]
      %v551 = vld [vmem:[%s369 + $0xf9] sm:$0xff]
      %v552 = vld [vmem:[%s369 + $0x109] sm:$0xff]
      %v553 = vld [vmem:[%s369 + $0x111] sm:$0xff]
      %v554 = vld [vmem:[%s369 + $0x121] sm:$0xff]
      %v555 = vld [vmem:[%s369 + $0x129] sm:$0xff]
      %v556 = vld [vmem:[%s369 + $0x139] sm:$0xff]
      %v557 = vld [vmem:[%s369 + $0x141] sm:$0xff]
      %v558 = vld [vmem:[%s369 + $0x151] sm:$0xff]
      %v559 = vld [vmem:[%s369 + $0x159] sm:$0xff]
      %v560 = vld [vmem:[%s369 + $0x169] sm:$0xff]
      %v561 = vld [vmem:[%s369 + $0x171] sm:$0xff]
      %v562 = vld [vmem:[%s369 + $0x2] sm:$0xff]
      %v563 = vld [vmem:[%s369 + $0xa] sm:$0xff]
      %v564 = vld [vmem:[%s369 + $0x1a] sm:$0xff]
      %v565 = vld [vmem:[%s369 + $0x22] sm:$0xff]
      %v566 = vld [vmem:[%s369 + $0x32] sm:$0xff]
      %v567 = vld [vmem:[%s369 + $0x3a] sm:$0xff]
      %v568 = vld [vmem:[%s369 + $0x4a] sm:$0xff]
      %v569 = vld [vmem:[%s369 + $0x52] sm:$0xff]
      %v570 = vld [vmem:[%s369 + $0x62] sm:$0xff]
      %v571 = vld [vmem:[%s369 + $0x6a] sm:$0xff]
      %v572 = vld [vmem:[%s369 + $0x7a] sm:$0xff]
      %v573 = vld [vmem:[%s369 + $0x82] sm:$0xff]
      %v574 = vld [vmem:[%s369 + $0x92] sm:$0xff]
      %v575 = vld [vmem:[%s369 + $0x9a] sm:$0xff]
      %v576 = vld [vmem:[%s369 + $0xaa] sm:$0xff]
      %v577 = vld [vmem:[%s369 + $0xb2] sm:$0xff]
      %v578 = vld [vmem:[%s369 + $0xc2] sm:$0xff]
      %v579 = vld [vmem:[%s369 + $0xca] sm:$0xff]
      %v580 = vld [vmem:[%s369 + $0xda] sm:$0xff]
      %v581 = vld [vmem:[%s369 + $0xe2] sm:$0xff]
      %v582 = vld [vmem:[%s369 + $0xf2] sm:$0xff]
      %v583 = vld [vmem:[%s369 + $0xfa] sm:$0xff]
      %v584 = vld [vmem:[%s369 + $0x10a] sm:$0xff]
      %v585 = vld [vmem:[%s369 + $0x112] sm:$0xff]
      %v586 = vld [vmem:[%s369 + $0x122] sm:$0xff]
      %v587 = vld [vmem:[%s369 + $0x12a] sm:$0xff]
      %v588 = vld [vmem:[%s369 + $0x13a] sm:$0xff]
      %v589 = vld [vmem:[%s369 + $0x142] sm:$0xff]
      %v590 = vld [vmem:[%s369 + $0x152] sm:$0xff]
      %v591 = vld [vmem:[%s369 + $0x15a] sm:$0xff]
      %v592 = vld [vmem:[%s369 + $0x16a] sm:$0xff]
      %v593 = vld [vmem:[%s369 + $0x172] sm:$0xff]
      %s594 = scalar_lea.vmem [#allocation2], 48
      %v595 = vld [vmem:[%s594] sm:$0xff]
      %v596 = vld [vmem:[%s594 + $0x8] sm:$0xff]
      %v597 = vld [vmem:[%s594 + $0x18] sm:$0xff]
      %v598 = vld [vmem:[%s594 + $0x20] sm:$0xff]
      %v599 = vld [vmem:[%s594 + $0x30] sm:$0xff]
      %v600 = vld [vmem:[%s594 + $0x38] sm:$0xff]
      %v601 = vld [vmem:[%s594 + $0x48] sm:$0xff]
      %v602 = vld [vmem:[%s594 + $0x50] sm:$0xff]
      %v603 = vld [vmem:[%s594 + $0x60] sm:$0xff]
      %v604 = vld [vmem:[%s594 + $0x68] sm:$0xff]
      %v605 = vld [vmem:[%s594 + $0x78] sm:$0xff]
      %v606 = vld [vmem:[%s594 + $0x80] sm:$0xff]
      %v607 = vld [vmem:[%s594 + $0x90] sm:$0xff]
      %v608 = vld [vmem:[%s594 + $0x98] sm:$0xff]
      %v609 = vld [vmem:[%s594 + $0xa8] sm:$0xff]
      %v610 = vld [vmem:[%s594 + $0xb0] sm:$0xff]
      %v611 = vld [vmem:[%s594 + $0xc0] sm:$0xff]
      %v612 = vld [vmem:[%s594 + $0xc8] sm:$0xff]
      %v613 = vld [vmem:[%s594 + $0xd8] sm:$0xff]
      %v614 = vld [vmem:[%s594 + $0xe0] sm:$0xff]
      %v615 = vld [vmem:[%s594 + $0xf0] sm:$0xff]
      %v616 = vld [vmem:[%s594 + $0xf8] sm:$0xff]
      %v617 = vld [vmem:[%s594 + $0x108] sm:$0xff]
      %v618 = vld [vmem:[%s594 + $0x110] sm:$0xff]
      %v619 = vld [vmem:[%s594 + $0x120] sm:$0xff]
      %v620 = vld [vmem:[%s594 + $0x128] sm:$0xff]
      %v621 = vld [vmem:[%s594 + $0x138] sm:$0xff]
      %v622 = vld [vmem:[%s594 + $0x140] sm:$0xff]
      %v623 = vld [vmem:[%s594 + $0x150] sm:$0xff]
      %v624 = vld [vmem:[%s594 + $0x158] sm:$0xff]
      %v625 = vld [vmem:[%s594 + $0x168] sm:$0xff]
      %v626 = vld [vmem:[%s594 + $0x170] sm:$0xff]
      %v627 = vld [vmem:[%s594 + $0x1] sm:$0xff]
      %v628 = vld [vmem:[%s594 + $0x9] sm:$0xff]
      %v629 = vld [vmem:[%s594 + $0x19] sm:$0xff]
      %v630 = vld [vmem:[%s594 + $0x21] sm:$0xff]
      %v631 = vld [vmem:[%s594 + $0x31] sm:$0xff]
      %v632 = vld [vmem:[%s594 + $0x39] sm:$0xff]
      %v633 = vld [vmem:[%s594 + $0x49] sm:$0xff]
      %v634 = vld [vmem:[%s594 + $0x51] sm:$0xff]
      %v635 = vld [vmem:[%s594 + $0x61] sm:$0xff]
      %v636 = vld [vmem:[%s594 + $0x69] sm:$0xff]
      %v637 = vld [vmem:[%s594 + $0x79] sm:$0xff]
      %v638 = vld [vmem:[%s594 + $0x81] sm:$0xff]
      %v639 = vld [vmem:[%s594 + $0x91] sm:$0xff]
      %v640 = vld [vmem:[%s594 + $0x99] sm:$0xff]
      %v641 = vld [vmem:[%s594 + $0xa9] sm:$0xff]
      %v642 = vld [vmem:[%s594 + $0xb1] sm:$0xff]
      %v643 = vld [vmem:[%s594 + $0xc1] sm:$0xff]
      %v644 = vld [vmem:[%s594 + $0xc9] sm:$0xff]
      %v645 = vld [vmem:[%s594 + $0xd9] sm:$0xff]
      %v646 = vld [vmem:[%s594 + $0xe1] sm:$0xff]
      %v647 = vld [vmem:[%s594 + $0xf1] sm:$0xff]
      %v648 = vld [vmem:[%s594 + $0xf9] sm:$0xff]
      %v649 = vld [vmem:[%s594 + $0x109] sm:$0xff]
      %v650 = vld [vmem:[%s594 + $0x111] sm:$0xff]
      %v651 = vld [vmem:[%s594 + $0x121] sm:$0xff]
      %v652 = vld [vmem:[%s594 + $0x129] sm:$0xff]
      %v653 = vld [vmem:[%s594 + $0x139] sm:$0xff]
      %v654 = vld [vmem:[%s594 + $0x141] sm:$0xff]
      %v655 = vld [vmem:[%s594 + $0x151] sm:$0xff]
      %v656 = vld [vmem:[%s594 + $0x159] sm:$0xff]
      %v657 = vld [vmem:[%s594 + $0x169] sm:$0xff]
      %v658 = vld [vmem:[%s594 + $0x171] sm:$0xff]
      %v659 = vld [vmem:[%s594 + $0x2] sm:$0xff]
      %v660 = vld [vmem:[%s594 + $0xa] sm:$0xff]
      %v661 = vld [vmem:[%s594 + $0x1a] sm:$0xff]
      %v662 = vld [vmem:[%s594 + $0x22] sm:$0xff]
      %v663 = vld [vmem:[%s594 + $0x32] sm:$0xff]
      %v664 = vld [vmem:[%s594 + $0x3a] sm:$0xff]
      %v665 = vld [vmem:[%s594 + $0x4a] sm:$0xff]
      %v666 = vld [vmem:[%s594 + $0x52] sm:$0xff]
      %v667 = vld [vmem:[%s594 + $0x62] sm:$0xff]
      %v668 = vld [vmem:[%s594 + $0x6a] sm:$0xff]
      %v669 = vld [vmem:[%s594 + $0x7a] sm:$0xff]
      %v670 = vld [vmem:[%s594 + $0x82] sm:$0xff]
      %v671 = vld [vmem:[%s594 + $0x92] sm:$0xff]
      %v672 = vld [vmem:[%s594 + $0x9a] sm:$0xff]
      %v673 = vld [vmem:[%s594 + $0xaa] sm:$0xff]
      %v674 = vld [vmem:[%s594 + $0xb2] sm:$0xff]
      %v675 = vld [vmem:[%s594 + $0xc2] sm:$0xff]
      %v676 = vld [vmem:[%s594 + $0xca] sm:$0xff]
      %v677 = vld [vmem:[%s594 + $0xda] sm:$0xff]
      %v678 = vld [vmem:[%s594 + $0xe2] sm:$0xff]
      %v679 = vld [vmem:[%s594 + $0xf2] sm:$0xff]
      %v680 = vld [vmem:[%s594 + $0xfa] sm:$0xff]
      %v681 = vld [vmem:[%s594 + $0x10a] sm:$0xff]
      %v682 = vld [vmem:[%s594 + $0x112] sm:$0xff]
      %v683 = vld [vmem:[%s594 + $0x122] sm:$0xff]
      %v684 = vld [vmem:[%s594 + $0x12a] sm:$0xff]
      %v685 = vld [vmem:[%s594 + $0x13a] sm:$0xff]
      %v686 = vld [vmem:[%s594 + $0x142] sm:$0xff]
      %v687 = vld [vmem:[%s594 + $0x152] sm:$0xff]
      %v688 = vld [vmem:[%s594 + $0x15a] sm:$0xff]
      %v689 = vld [vmem:[%s594 + $0x16a] sm:$0xff]
      %v690 = vld [vmem:[%s594 + $0x172] sm:$0xff]
      %723 = vrot.lane.b32.xlu0 %v434, 4
      %v724 = vpop.permute.xlu0 %723
      %725 = vrot.lane.b32.xlu0 %v435, 4
      %v726 = vpop.permute.xlu0 %725
      %727 = vrot.lane.b32.xlu0 %v436, 4
      %v728 = vpop.permute.xlu0 %727
      %729 = vrot.lane.b32.xlu0 %v437, 4
      %v730 = vpop.permute.xlu0 %729
      %731 = vrot.lane.b32.xlu0 %v438, 4
      %v732 = vpop.permute.xlu0 %731
      %733 = vrot.lane.b32.xlu0 %v439, 4
      %v734 = vpop.permute.xlu0 %733
      %735 = vrot.lane.b32.xlu0 %v440, 4
      %v736 = vpop.permute.xlu0 %735
      %737 = vrot.lane.b32.xlu0 %v441, 4
      %v738 = vpop.permute.xlu0 %737
      %739 = vrot.lane.b32.xlu0 %v442, 4
      %v740 = vpop.permute.xlu0 %739
      %741 = vrot.lane.b32.xlu0 %v443, 4
      %v742 = vpop.permute.xlu0 %741
      %743 = vrot.lane.b32.xlu0 %v444, 4
      %v744 = vpop.permute.xlu0 %743
      %745 = vrot.lane.b32.xlu0 %v445, 4
      %v746 = vpop.permute.xlu0 %745
      %747 = vrot.lane.b32.xlu0 %v446, 4
      %v748 = vpop.permute.xlu0 %747
      %749 = vrot.lane.b32.xlu0 %v447, 4
      %v750 = vpop.permute.xlu0 %749
      %751 = vrot.lane.b32.xlu0 %v448, 4
      %v752 = vpop.permute.xlu0 %751
      %753 = vrot.lane.b32.xlu0 %v449, 4
      %v754 = vpop.permute.xlu0 %753
      %755 = vrot.lane.b32.xlu0 %v450, 4
      %v756 = vpop.permute.xlu0 %755
      %757 = vrot.lane.b32.xlu0 %v451, 4
      %v758 = vpop.permute.xlu0 %757
      %759 = vrot.lane.b32.xlu0 %v452, 4
      %v760 = vpop.permute.xlu0 %759
      %761 = vrot.lane.b32.xlu0 %v453, 4
      %v762 = vpop.permute.xlu0 %761
      %763 = vrot.lane.b32.xlu0 %v454, 4
      %v764 = vpop.permute.xlu0 %763
      %765 = vrot.lane.b32.xlu0 %v455, 4
      %v766 = vpop.permute.xlu0 %765
      %767 = vrot.lane.b32.xlu0 %v456, 4
      %v768 = vpop.permute.xlu0 %767
      %769 = vrot.lane.b32.xlu0 %v457, 4
      %v770 = vpop.permute.xlu0 %769
      %771 = vrot.lane.b32.xlu0 %v458, 4
      %v772 = vpop.permute.xlu0 %771
      %773 = vrot.lane.b32.xlu0 %v459, 4
      %v774 = vpop.permute.xlu0 %773
      %775 = vrot.lane.b32.xlu0 %v460, 4
      %v776 = vpop.permute.xlu0 %775
      %777 = vrot.lane.b32.xlu0 %v461, 4
      %v778 = vpop.permute.xlu0 %777
      %779 = vrot.lane.b32.xlu0 %v462, 4
      %v780 = vpop.permute.xlu0 %779
      %781 = vrot.lane.b32.xlu0 %v463, 4
      %v782 = vpop.permute.xlu0 %781
      %783 = vrot.lane.b32.xlu0 %v464, 4
      %v784 = vpop.permute.xlu0 %783
      %785 = vrot.lane.b32.xlu0 %v465, 4
      %v786 = vpop.permute.xlu0 %785
      %851 = vrot.lane.b32.xlu0 %v466, 8
      %v852 = vpop.permute.xlu0 %851
      %853 = vrot.lane.b32.xlu0 %v467, 8
      %v854 = vpop.permute.xlu0 %853
      %855 = vrot.lane.b32.xlu0 %v468, 8
      %v856 = vpop.permute.xlu0 %855
      %857 = vrot.lane.b32.xlu0 %v469, 8
      %v858 = vpop.permute.xlu0 %857
      %859 = vrot.lane.b32.xlu0 %v470, 8
      %v860 = vpop.permute.xlu0 %859
      %861 = vrot.lane.b32.xlu0 %v471, 8
      %v862 = vpop.permute.xlu0 %861
      %863 = vrot.lane.b32.xlu0 %v472, 8
      %v864 = vpop.permute.xlu0 %863
      %865 = vrot.lane.b32.xlu0 %v473, 8
      %v866 = vpop.permute.xlu0 %865
      %867 = vrot.lane.b32.xlu0 %v474, 8
      %v868 = vpop.permute.xlu0 %867
      %869 = vrot.lane.b32.xlu0 %v475, 8
      %v870 = vpop.permute.xlu0 %869
      %871 = vrot.lane.b32.xlu0 %v476, 8
      %v872 = vpop.permute.xlu0 %871
      %873 = vrot.lane.b32.xlu0 %v477, 8
      %v874 = vpop.permute.xlu0 %873
      %875 = vrot.lane.b32.xlu0 %v478, 8
      %v876 = vpop.permute.xlu0 %875
      %877 = vrot.lane.b32.xlu0 %v479, 8
      %v878 = vpop.permute.xlu0 %877
      %879 = vrot.lane.b32.xlu0 %v480, 8
      %v880 = vpop.permute.xlu0 %879
      %881 = vrot.lane.b32.xlu0 %v481, 8
      %v882 = vpop.permute.xlu0 %881
      %883 = vrot.lane.b32.xlu0 %v482, 8
      %v884 = vpop.permute.xlu0 %883
      %885 = vrot.lane.b32.xlu0 %v483, 8
      %v886 = vpop.permute.xlu0 %885
      %887 = vrot.lane.b32.xlu0 %v484, 8
      %v888 = vpop.permute.xlu0 %887
      %889 = vrot.lane.b32.xlu0 %v485, 8
      %v890 = vpop.permute.xlu0 %889
      %891 = vrot.lane.b32.xlu0 %v486, 8
      %v892 = vpop.permute.xlu0 %891
      %893 = vrot.lane.b32.xlu0 %v487, 8
      %v894 = vpop.permute.xlu0 %893
      %895 = vrot.lane.b32.xlu0 %v488, 8
      %v896 = vpop.permute.xlu0 %895
      %897 = vrot.lane.b32.xlu0 %v489, 8
      %v898 = vpop.permute.xlu0 %897
      %899 = vrot.lane.b32.xlu0 %v490, 8
      %v900 = vpop.permute.xlu0 %899
      %901 = vrot.lane.b32.xlu0 %v491, 8
      %v902 = vpop.permute.xlu0 %901
      %903 = vrot.lane.b32.xlu0 %v492, 8
      %v904 = vpop.permute.xlu0 %903
      %905 = vrot.lane.b32.xlu0 %v493, 8
      %v906 = vpop.permute.xlu0 %905
      %907 = vrot.lane.b32.xlu0 %v494, 8
      %v908 = vpop.permute.xlu0 %907
      %909 = vrot.lane.b32.xlu0 %v495, 8
      %v910 = vpop.permute.xlu0 %909
      %911 = vrot.lane.b32.xlu0 %v496, 8
      %v912 = vpop.permute.xlu0 %911
      %913 = vrot.lane.b32.xlu0 %v497, 8
      %v914 = vpop.permute.xlu0 %913
      %979 = vrot.lane.b32.xlu0 %v498, 12
      %v980 = vpop.permute.xlu0 %979
      %981 = vrot.lane.b32.xlu0 %v499, 12
      %v982 = vpop.permute.xlu0 %981
      %983 = vrot.lane.b32.xlu0 %v500, 12
      %v984 = vpop.permute.xlu0 %983
      %985 = vrot.lane.b32.xlu0 %v501, 12
      %v986 = vpop.permute.xlu0 %985
      %987 = vrot.lane.b32.xlu0 %v502, 12
      %v988 = vpop.permute.xlu0 %987
      %989 = vrot.lane.b32.xlu0 %v503, 12
      %v990 = vpop.permute.xlu0 %989
      %991 = vrot.lane.b32.xlu0 %v504, 12
      %v992 = vpop.permute.xlu0 %991
      %993 = vrot.lane.b32.xlu0 %v505, 12
      %v994 = vpop.permute.xlu0 %993
      %995 = vrot.lane.b32.xlu0 %v506, 12
      %v996 = vpop.permute.xlu0 %995
      %997 = vrot.lane.b32.xlu0 %v507, 12
      %v998 = vpop.permute.xlu0 %997
      %999 = vrot.lane.b32.xlu0 %v508, 12
      %v1000 = vpop.permute.xlu0 %999
      %1001 = vrot.lane.b32.xlu0 %v509, 12
      %v1002 = vpop.permute.xlu0 %1001
      %1003 = vrot.lane.b32.xlu0 %v510, 12
      %v1004 = vpop.permute.xlu0 %1003
      %1005 = vrot.lane.b32.xlu0 %v511, 12
      %v1006 = vpop.permute.xlu0 %1005
      %1007 = vrot.lane.b32.xlu0 %v512, 12
      %v1008 = vpop.permute.xlu0 %1007
      %1009 = vrot.lane.b32.xlu0 %v513, 12
      %v1010 = vpop.permute.xlu0 %1009
      %1011 = vrot.lane.b32.xlu0 %v514, 12
      %v1012 = vpop.permute.xlu0 %1011
      %1013 = vrot.lane.b32.xlu0 %v515, 12
      %v1014 = vpop.permute.xlu0 %1013
      %1015 = vrot.lane.b32.xlu0 %v516, 12
      %v1016 = vpop.permute.xlu0 %1015
      %1017 = vrot.lane.b32.xlu0 %v517, 12
      %v1018 = vpop.permute.xlu0 %1017
      %1019 = vrot.lane.b32.xlu0 %v518, 12
      %v1020 = vpop.permute.xlu0 %1019
      %1021 = vrot.lane.b32.xlu0 %v519, 12
      %v1022 = vpop.permute.xlu0 %1021
      %1023 = vrot.lane.b32.xlu0 %v520, 12
      %v1024 = vpop.permute.xlu0 %1023
      %1025 = vrot.lane.b32.xlu0 %v521, 12
      %v1026 = vpop.permute.xlu0 %1025
      %1027 = vrot.lane.b32.xlu0 %v522, 12
      %v1028 = vpop.permute.xlu0 %1027
      %1029 = vrot.lane.b32.xlu0 %v523, 12
      %v1030 = vpop.permute.xlu0 %1029
      %1031 = vrot.lane.b32.xlu0 %v524, 12
      %v1032 = vpop.permute.xlu0 %1031
      %1033 = vrot.lane.b32.xlu0 %v525, 12
      %v1034 = vpop.permute.xlu0 %1033
      %1035 = vrot.lane.b32.xlu0 %v526, 12
      %v1036 = vpop.permute.xlu0 %1035
      %1037 = vrot.lane.b32.xlu0 %v527, 12
      %v1038 = vpop.permute.xlu0 %1037
      %1039 = vrot.lane.b32.xlu0 %v528, 12
      %v1040 = vpop.permute.xlu0 %1039
      %1041 = vrot.lane.b32.xlu0 %v529, 12
      %v1042 = vpop.permute.xlu0 %1041
      %1107 = vrot.lane.b32.xlu0 %v530, 16
      %v1108 = vpop.permute.xlu0 %1107
      %1109 = vrot.lane.b32.xlu0 %v531, 16
      %v1110 = vpop.permute.xlu0 %1109
      %1111 = vrot.lane.b32.xlu0 %v532, 16
      %v1112 = vpop.permute.xlu0 %1111
      %1113 = vrot.lane.b32.xlu0 %v533, 16
      %v1114 = vpop.permute.xlu0 %1113
      %1115 = vrot.lane.b32.xlu0 %v534, 16
      %v1116 = vpop.permute.xlu0 %1115
      %1117 = vrot.lane.b32.xlu0 %v535, 16
      %v1118 = vpop.permute.xlu0 %1117
      %1119 = vrot.lane.b32.xlu0 %v536, 16
      %v1120 = vpop.permute.xlu0 %1119
      %1121 = vrot.lane.b32.xlu0 %v537, 16
      %v1122 = vpop.permute.xlu0 %1121
      %1123 = vrot.lane.b32.xlu0 %v538, 16
      %v1124 = vpop.permute.xlu0 %1123
      %1125 = vrot.lane.b32.xlu0 %v539, 16
      %v1126 = vpop.permute.xlu0 %1125
      %1127 = vrot.lane.b32.xlu0 %v540, 16
      %v1128 = vpop.permute.xlu0 %1127
      %1129 = vrot.lane.b32.xlu0 %v541, 16
      %v1130 = vpop.permute.xlu0 %1129
      %1131 = vrot.lane.b32.xlu0 %v542, 16
      %v1132 = vpop.permute.xlu0 %1131
      %1133 = vrot.lane.b32.xlu0 %v543, 16
      %v1134 = vpop.permute.xlu0 %1133
      %1135 = vrot.lane.b32.xlu0 %v544, 16
      %v1136 = vpop.permute.xlu0 %1135
      %1137 = vrot.lane.b32.xlu0 %v545, 16
      %v1138 = vpop.permute.xlu0 %1137
      %1139 = vrot.lane.b32.xlu0 %v546, 16
      %v1140 = vpop.permute.xlu0 %1139
      %1141 = vrot.lane.b32.xlu0 %v547, 16
      %v1142 = vpop.permute.xlu0 %1141
      %1143 = vrot.lane.b32.xlu0 %v548, 16
      %v1144 = vpop.permute.xlu0 %1143
      %1145 = vrot.lane.b32.xlu0 %v549, 16
      %v1146 = vpop.permute.xlu0 %1145
      %1147 = vrot.lane.b32.xlu0 %v550, 16
      %v1148 = vpop.permute.xlu0 %1147
      %1149 = vrot.lane.b32.xlu0 %v551, 16
      %v1150 = vpop.permute.xlu0 %1149
      %1151 = vrot.lane.b32.xlu0 %v552, 16
      %v1152 = vpop.permute.xlu0 %1151
      %1153 = vrot.lane.b32.xlu0 %v553, 16
      %v1154 = vpop.permute.xlu0 %1153
      %1155 = vrot.lane.b32.xlu0 %v554, 16
      %v1156 = vpop.permute.xlu0 %1155
      %1157 = vrot.lane.b32.xlu0 %v555, 16
      %v1158 = vpop.permute.xlu0 %1157
      %1159 = vrot.lane.b32.xlu0 %v556, 16
      %v1160 = vpop.permute.xlu0 %1159
      %1161 = vrot.lane.b32.xlu0 %v557, 16
      %v1162 = vpop.permute.xlu0 %1161
      %1163 = vrot.lane.b32.xlu0 %v558, 16
      %v1164 = vpop.permute.xlu0 %1163
      %1165 = vrot.lane.b32.xlu0 %v559, 16
      %v1166 = vpop.permute.xlu0 %1165
      %1167 = vrot.lane.b32.xlu0 %v560, 16
      %v1168 = vpop.permute.xlu0 %1167
      %1169 = vrot.lane.b32.xlu0 %v561, 16
      %v1170 = vpop.permute.xlu0 %1169
      %1235 = vrot.lane.b32.xlu0 %v562, 20
      %v1236 = vpop.permute.xlu0 %1235
      %1237 = vrot.lane.b32.xlu0 %v563, 20
      %v1238 = vpop.permute.xlu0 %1237
      %1239 = vrot.lane.b32.xlu0 %v564, 20
      %v1240 = vpop.permute.xlu0 %1239
      %1241 = vrot.lane.b32.xlu0 %v565, 20
      %v1242 = vpop.permute.xlu0 %1241
      %1243 = vrot.lane.b32.xlu0 %v566, 20
      %v1244 = vpop.permute.xlu0 %1243
      %1245 = vrot.lane.b32.xlu0 %v567, 20
      %v1246 = vpop.permute.xlu0 %1245
      %1247 = vrot.lane.b32.xlu0 %v568, 20
      %v1248 = vpop.permute.xlu0 %1247
      %1249 = vrot.lane.b32.xlu0 %v569, 20
      %v1250 = vpop.permute.xlu0 %1249
      %1251 = vrot.lane.b32.xlu0 %v570, 20
      %v1252 = vpop.permute.xlu0 %1251
      %1253 = vrot.lane.b32.xlu0 %v571, 20
      %v1254 = vpop.permute.xlu0 %1253
      %1255 = vrot.lane.b32.xlu0 %v572, 20
      %v1256 = vpop.permute.xlu0 %1255
      %1257 = vrot.lane.b32.xlu0 %v573, 20
      %v1258 = vpop.permute.xlu0 %1257
      %1259 = vrot.lane.b32.xlu0 %v574, 20
      %v1260 = vpop.permute.xlu0 %1259
      %1261 = vrot.lane.b32.xlu0 %v575, 20
      %v1262 = vpop.permute.xlu0 %1261
      %1263 = vrot.lane.b32.xlu0 %v576, 20
      %v1264 = vpop.permute.xlu0 %1263
      %1265 = vrot.lane.b32.xlu0 %v577, 20
      %v1266 = vpop.permute.xlu0 %1265
      %1267 = vrot.lane.b32.xlu0 %v578, 20
      %v1268 = vpop.permute.xlu0 %1267
      %1269 = vrot.lane.b32.xlu0 %v579, 20
      %v1270 = vpop.permute.xlu0 %1269
      %1271 = vrot.lane.b32.xlu0 %v580, 20
      %v1272 = vpop.permute.xlu0 %1271
      %1273 = vrot.lane.b32.xlu0 %v581, 20
      %v1274 = vpop.permute.xlu0 %1273
      %1275 = vrot.lane.b32.xlu0 %v582, 20
      %v1276 = vpop.permute.xlu0 %1275
      %1277 = vrot.lane.b32.xlu0 %v583, 20
      %v1278 = vpop.permute.xlu0 %1277
      %1279 = vrot.lane.b32.xlu0 %v584, 20
      %v1280 = vpop.permute.xlu0 %1279
      %1281 = vrot.lane.b32.xlu0 %v585, 20
      %v1282 = vpop.permute.xlu0 %1281
      %1283 = vrot.lane.b32.xlu0 %v586, 20
      %v1284 = vpop.permute.xlu0 %1283
      %1285 = vrot.lane.b32.xlu0 %v587, 20
      %v1286 = vpop.permute.xlu0 %1285
      %1287 = vrot.lane.b32.xlu0 %v588, 20
      %v1288 = vpop.permute.xlu0 %1287
      %1289 = vrot.lane.b32.xlu0 %v589, 20
      %v1290 = vpop.permute.xlu0 %1289
      %1291 = vrot.lane.b32.xlu0 %v590, 20
      %v1292 = vpop.permute.xlu0 %1291
      %1293 = vrot.lane.b32.xlu0 %v591, 20
      %v1294 = vpop.permute.xlu0 %1293
      %1295 = vrot.lane.b32.xlu0 %v592, 20
      %v1296 = vpop.permute.xlu0 %1295
      %1297 = vrot.lane.b32.xlu0 %v593, 20
      %v1298 = vpop.permute.xlu0 %1297
      %1363 = vrot.lane.b32.xlu0 %v595, 24
      %v1364 = vpop.permute.xlu0 %1363
      %1365 = vrot.lane.b32.xlu0 %v596, 24
      %v1366 = vpop.permute.xlu0 %1365
      %1367 = vrot.lane.b32.xlu0 %v597, 24
      %v1368 = vpop.permute.xlu0 %1367
      %1369 = vrot.lane.b32.xlu0 %v598, 24
      %v1370 = vpop.permute.xlu0 %1369
      %1371 = vrot.lane.b32.xlu0 %v599, 24
      %v1372 = vpop.permute.xlu0 %1371
      %1373 = vrot.lane.b32.xlu0 %v600, 24
      %v1374 = vpop.permute.xlu0 %1373
      %1375 = vrot.lane.b32.xlu0 %v601, 24
      %v1376 = vpop.permute.xlu0 %1375
      %1377 = vrot.lane.b32.xlu0 %v602, 24
      %v1378 = vpop.permute.xlu0 %1377
      %1379 = vrot.lane.b32.xlu0 %v603, 24
      %v1380 = vpop.permute.xlu0 %1379
      %1381 = vrot.lane.b32.xlu0 %v604, 24
      %v1382 = vpop.permute.xlu0 %1381
      %1383 = vrot.lane.b32.xlu0 %v605, 24
      %v1384 = vpop.permute.xlu0 %1383
      %1385 = vrot.lane.b32.xlu0 %v606, 24
      %v1386 = vpop.permute.xlu0 %1385
      %1387 = vrot.lane.b32.xlu0 %v607, 24
      %v1388 = vpop.permute.xlu0 %1387
      %1389 = vrot.lane.b32.xlu0 %v608, 24
      %v1390 = vpop.permute.xlu0 %1389
      %1391 = vrot.lane.b32.xlu0 %v609, 24
      %v1392 = vpop.permute.xlu0 %1391
      %1393 = vrot.lane.b32.xlu0 %v610, 24
      %v1394 = vpop.permute.xlu0 %1393
      %1395 = vrot.lane.b32.xlu0 %v611, 24
      %v1396 = vpop.permute.xlu0 %1395
      %1397 = vrot.lane.b32.xlu0 %v612, 24
      %v1398 = vpop.permute.xlu0 %1397
      %1399 = vrot.lane.b32.xlu0 %v613, 24
      %v1400 = vpop.permute.xlu0 %1399
      %1401 = vrot.lane.b32.xlu0 %v614, 24
      %v1402 = vpop.permute.xlu0 %1401
      %1403 = vrot.lane.b32.xlu0 %v615, 24
      %v1404 = vpop.permute.xlu0 %1403
      %1405 = vrot.lane.b32.xlu0 %v616, 24
      %v1406 = vpop.permute.xlu0 %1405
      %1407 = vrot.lane.b32.xlu0 %v617, 24
      %v1408 = vpop.permute.xlu0 %1407
      %1409 = vrot.lane.b32.xlu0 %v618, 24
      %v1410 = vpop.permute.xlu0 %1409
      %1411 = vrot.lane.b32.xlu0 %v619, 24
      %v1412 = vpop.permute.xlu0 %1411
      %1413 = vrot.lane.b32.xlu0 %v620, 24
      %v1414 = vpop.permute.xlu0 %1413
      %1415 = vrot.lane.b32.xlu0 %v621, 24
      %v1416 = vpop.permute.xlu0 %1415
      %1417 = vrot.lane.b32.xlu0 %v622, 24
      %v1418 = vpop.permute.xlu0 %1417
      %1419 = vrot.lane.b32.xlu0 %v623, 24
      %v1420 = vpop.permute.xlu0 %1419
      %1421 = vrot.lane.b32.xlu0 %v624, 24
      %v1422 = vpop.permute.xlu0 %1421
      %1423 = vrot.lane.b32.xlu0 %v625, 24
      %v1424 = vpop.permute.xlu0 %1423
      %1425 = vrot.lane.b32.xlu0 %v626, 24
      %v1426 = vpop.permute.xlu0 %1425
      %1491 = vrot.lane.b32.xlu0 %v627, 28
      %v1492 = vpop.permute.xlu0 %1491
      %1493 = vrot.lane.b32.xlu0 %v628, 28
      %v1494 = vpop.permute.xlu0 %1493
      %1495 = vrot.lane.b32.xlu0 %v629, 28
      %v1496 = vpop.permute.xlu0 %1495
      %1497 = vrot.lane.b32.xlu0 %v630, 28
      %v1498 = vpop.permute.xlu0 %1497
      %1499 = vrot.lane.b32.xlu0 %v631, 28
      %v1500 = vpop.permute.xlu0 %1499
      %1501 = vrot.lane.b32.xlu0 %v632, 28
      %v1502 = vpop.permute.xlu0 %1501
      %1503 = vrot.lane.b32.xlu0 %v633, 28
      %v1504 = vpop.permute.xlu0 %1503
      %1505 = vrot.lane.b32.xlu0 %v634, 28
      %v1506 = vpop.permute.xlu0 %1505
      %1507 = vrot.lane.b32.xlu0 %v635, 28
      %v1508 = vpop.permute.xlu0 %1507
      %1509 = vrot.lane.b32.xlu0 %v636, 28
      %v1510 = vpop.permute.xlu0 %1509
      %1511 = vrot.lane.b32.xlu0 %v637, 28
      %v1512 = vpop.permute.xlu0 %1511
      %1513 = vrot.lane.b32.xlu0 %v638, 28
      %v1514 = vpop.permute.xlu0 %1513
      %1515 = vrot.lane.b32.xlu0 %v639, 28
      %v1516 = vpop.permute.xlu0 %1515
      %1517 = vrot.lane.b32.xlu0 %v640, 28
      %v1518 = vpop.permute.xlu0 %1517
      %1519 = vrot.lane.b32.xlu0 %v641, 28
      %v1520 = vpop.permute.xlu0 %1519
      %1521 = vrot.lane.b32.xlu0 %v642, 28
      %v1522 = vpop.permute.xlu0 %1521
      %1523 = vrot.lane.b32.xlu0 %v643, 28
      %v1524 = vpop.permute.xlu0 %1523
      %1525 = vrot.lane.b32.xlu0 %v644, 28
      %v1526 = vpop.permute.xlu0 %1525
      %1527 = vrot.lane.b32.xlu0 %v645, 28
      %v1528 = vpop.permute.xlu0 %1527
      %1529 = vrot.lane.b32.xlu0 %v646, 28
      %v1530 = vpop.permute.xlu0 %1529
      %1531 = vrot.lane.b32.xlu0 %v647, 28
      %v1532 = vpop.permute.xlu0 %1531
      %1533 = vrot.lane.b32.xlu0 %v648, 28
      %v1534 = vpop.permute.xlu0 %1533
      %1535 = vrot.lane.b32.xlu0 %v649, 28
      %v1536 = vpop.permute.xlu0 %1535
      %1537 = vrot.lane.b32.xlu0 %v650, 28
      %v1538 = vpop.permute.xlu0 %1537
      %1539 = vrot.lane.b32.xlu0 %v651, 28
      %v1540 = vpop.permute.xlu0 %1539
      %1541 = vrot.lane.b32.xlu0 %v652, 28
      %v1542 = vpop.permute.xlu0 %1541
      %1543 = vrot.lane.b32.xlu0 %v653, 28
      %v1544 = vpop.permute.xlu0 %1543
      %1545 = vrot.lane.b32.xlu0 %v654, 28
      %v1546 = vpop.permute.xlu0 %1545
      %1547 = vrot.lane.b32.xlu0 %v655, 28
      %v1548 = vpop.permute.xlu0 %1547
      %1549 = vrot.lane.b32.xlu0 %v656, 28
      %v1550 = vpop.permute.xlu0 %1549
      %1551 = vrot.lane.b32.xlu0 %v657, 28
      %v1552 = vpop.permute.xlu0 %1551
      %1553 = vrot.lane.b32.xlu0 %v658, 28
      %v1554 = vpop.permute.xlu0 %1553
      %1619 = vrot.lane.b32.xlu0 %v659, 32
      %v1620 = vpop.permute.xlu0 %1619
      %1621 = vrot.lane.b32.xlu0 %v660, 32
      %v1622 = vpop.permute.xlu0 %1621
      %1623 = vrot.lane.b32.xlu0 %v661, 32
      %v1624 = vpop.permute.xlu0 %1623
      %1625 = vrot.lane.b32.xlu0 %v662, 32
      %v1626 = vpop.permute.xlu0 %1625
      %1627 = vrot.lane.b32.xlu0 %v663, 32
      %v1628 = vpop.permute.xlu0 %1627
      %1629 = vrot.lane.b32.xlu0 %v664, 32
      %v1630 = vpop.permute.xlu0 %1629
      %1631 = vrot.lane.b32.xlu0 %v665, 32
      %v1632 = vpop.permute.xlu0 %1631
      %1633 = vrot.lane.b32.xlu0 %v666, 32
      %v1634 = vpop.permute.xlu0 %1633
      %1635 = vrot.lane.b32.xlu0 %v667, 32
      %v1636 = vpop.permute.xlu0 %1635
      %1637 = vrot.lane.b32.xlu0 %v668, 32
      %v1638 = vpop.permute.xlu0 %1637
      %1639 = vrot.lane.b32.xlu0 %v669, 32
      %v1640 = vpop.permute.xlu0 %1639
      %1641 = vrot.lane.b32.xlu0 %v670, 32
      %v1642 = vpop.permute.xlu0 %1641
      %1643 = vrot.lane.b32.xlu0 %v671, 32
      %v1644 = vpop.permute.xlu0 %1643
      %1645 = vrot.lane.b32.xlu0 %v672, 32
      %v1646 = vpop.permute.xlu0 %1645
      %1647 = vrot.lane.b32.xlu0 %v673, 32
      %v1648 = vpop.permute.xlu0 %1647
      %1649 = vrot.lane.b32.xlu0 %v674, 32
      %v1650 = vpop.permute.xlu0 %1649
      %1651 = vrot.lane.b32.xlu0 %v675, 32
      %v1652 = vpop.permute.xlu0 %1651
      %1653 = vrot.lane.b32.xlu0 %v676, 32
      %v1654 = vpop.permute.xlu0 %1653
      %1655 = vrot.lane.b32.xlu0 %v677, 32
      %v1656 = vpop.permute.xlu0 %1655
      %1657 = vrot.lane.b32.xlu0 %v678, 32
      %v1658 = vpop.permute.xlu0 %1657
      %1659 = vrot.lane.b32.xlu0 %v679, 32
      %v1660 = vpop.permute.xlu0 %1659
      %1661 = vrot.lane.b32.xlu0 %v680, 32
      %v1662 = vpop.permute.xlu0 %1661
      %1663 = vrot.lane.b32.xlu0 %v681, 32
      %v1664 = vpop.permute.xlu0 %1663
      %1665 = vrot.lane.b32.xlu0 %v682, 32
      %v1666 = vpop.permute.xlu0 %1665
      %1667 = vrot.lane.b32.xlu0 %v683, 32
      %v1668 = vpop.permute.xlu0 %1667
      %1669 = vrot.lane.b32.xlu0 %v684, 32
      %v1670 = vpop.permute.xlu0 %1669
      %1671 = vrot.lane.b32.xlu0 %v685, 32
      %v1672 = vpop.permute.xlu0 %1671
      %1673 = vrot.lane.b32.xlu0 %v686, 32
      %v1674 = vpop.permute.xlu0 %1673
      %1675 = vrot.lane.b32.xlu0 %v687, 32
      %v1676 = vpop.permute.xlu0 %1675
      %1677 = vrot.lane.b32.xlu0 %v688, 32
      %v1678 = vpop.permute.xlu0 %1677
      %1679 = vrot.lane.b32.xlu0 %v689, 32
      %v1680 = vpop.permute.xlu0 %1679
      %1681 = vrot.lane.b32.xlu0 %v690, 32
      %v1682 = vpop.permute.xlu0 %1681
      %v1715 = vsel %vm225, %v402, %v724
      %v1716 = vsel %vm225, %v403, %v726
      %v1717 = vsel %vm225, %v404, %v728
      %v1718 = vsel %vm225, %v405, %v730
      %v1719 = vsel %vm225, %v406, %v732
      %v1720 = vsel %vm225, %v407, %v734
      %v1721 = vsel %vm225, %v408, %v736
      %v1722 = vsel %vm225, %v409, %v738
      %v1723 = vsel %vm225, %v410, %v740
      %v1724 = vsel %vm225, %v411, %v742
      %v1725 = vsel %vm225, %v412, %v744
      %v1726 = vsel %vm225, %v413, %v746
      %v1727 = vsel %vm225, %v414, %v748
      %v1728 = vsel %vm225, %v415, %v750
      %v1729 = vsel %vm225, %v416, %v752
      %v1730 = vsel %vm225, %v417, %v754
      %v1731 = vsel %vm225, %v418, %v756
      %v1732 = vsel %vm225, %v419, %v758
      %v1733 = vsel %vm225, %v420, %v760
      %v1734 = vsel %vm225, %v421, %v762
      %v1735 = vsel %vm225, %v422, %v764
      %v1736 = vsel %vm225, %v423, %v766
      %v1737 = vsel %vm225, %v424, %v768
      %v1738 = vsel %vm225, %v425, %v770
      %v1739 = vsel %vm225, %v426, %v772
      %v1740 = vsel %vm225, %v427, %v774
      %v1741 = vsel %vm225, %v428, %v776
      %v1742 = vsel %vm225, %v429, %v778
      %v1743 = vsel %vm225, %v430, %v780
      %v1744 = vsel %vm225, %v431, %v782
      %v1745 = vsel %vm225, %v432, %v784
      %v1746 = vsel %vm225, %v433, %v786
      %v1747 = vsel %vm281, %v1715, %v852
      %v1748 = vsel %vm281, %v1716, %v854
      %v1749 = vsel %vm281, %v1717, %v856
      %v1750 = vsel %vm281, %v1718, %v858
      %v1751 = vsel %vm281, %v1719, %v860
      %v1752 = vsel %vm281, %v1720, %v862
      %v1753 = vsel %vm281, %v1721, %v864
      %v1754 = vsel %vm281, %v1722, %v866
      %v1755 = vsel %vm281, %v1723, %v868
      %v1756 = vsel %vm281, %v1724, %v870
      %v1757 = vsel %vm281, %v1725, %v872
      %v1758 = vsel %vm281, %v1726, %v874
      %v1759 = vsel %vm281, %v1727, %v876
      %v1760 = vsel %vm281, %v1728, %v878
      %v1761 = vsel %vm281, %v1729, %v880
      %v1762 = vsel %vm281, %v1730, %v882
      %v1763 = vsel %vm281, %v1731, %v884
      %v1764 = vsel %vm281, %v1732, %v886
      %v1765 = vsel %vm281, %v1733, %v888
      %v1766 = vsel %vm281, %v1734, %v890
      %v1767 = vsel %vm281, %v1735, %v892
      %v1768 = vsel %vm281, %v1736, %v894
      %v1769 = vsel %vm281, %v1737, %v896
      %v1770 = vsel %vm281, %v1738, %v898
      %v1771 = vsel %vm281, %v1739, %v900
      %v1772 = vsel %vm281, %v1740, %v902
      %v1773 = vsel %vm281, %v1741, %v904
      %v1774 = vsel %vm281, %v1742, %v906
      %v1775 = vsel %vm281, %v1743, %v908
      %v1776 = vsel %vm281, %v1744, %v910
      %v1777 = vsel %vm281, %v1745, %v912
      %v1778 = vsel %vm281, %v1746, %v914
      %vm1779 = vcmask 97280
      %v1780 = vsel %vm1779, %v1747, %v980
      %v1781 = vsel %vm1779, %v1748, %v982
      %v1782 = vsel %vm1779, %v1749, %v984
      %v1783 = vsel %vm1779, %v1750, %v986
      %v1784 = vsel %vm1779, %v1751, %v988
      %v1785 = vsel %vm1779, %v1752, %v990
      %v1786 = vsel %vm1779, %v1753, %v992
      %v1787 = vsel %vm1779, %v1754, %v994
      %v1788 = vsel %vm1779, %v1755, %v996
      %v1789 = vsel %vm1779, %v1756, %v998
      %v1790 = vsel %vm1779, %v1757, %v1000
      %v1791 = vsel %vm1779, %v1758, %v1002
      %v1792 = vsel %vm1779, %v1759, %v1004
      %v1793 = vsel %vm1779, %v1760, %v1006
      %v1794 = vsel %vm1779, %v1761, %v1008
      %v1795 = vsel %vm1779, %v1762, %v1010
      %v1796 = vsel %vm1779, %v1763, %v1012
      %v1797 = vsel %vm1779, %v1764, %v1014
      %v1798 = vsel %vm1779, %v1765, %v1016
      %v1799 = vsel %vm1779, %v1766, %v1018
      %v1800 = vsel %vm1779, %v1767, %v1020
      %v1801 = vsel %vm1779, %v1768, %v1022
      %v1802 = vsel %vm1779, %v1769, %v1024
      %v1803 = vsel %vm1779, %v1770, %v1026
      %v1804 = vsel %vm1779, %v1771, %v1028
      %v1805 = vsel %vm1779, %v1772, %v1030
      %v1806 = vsel %vm1779, %v1773, %v1032
      %v1807 = vsel %vm1779, %v1774, %v1034
      %v1808 = vsel %vm1779, %v1775, %v1036
      %v1809 = vsel %vm1779, %v1776, %v1038
      %v1810 = vsel %vm1779, %v1777, %v1040
      %v1811 = vsel %vm1779, %v1778, %v1042
      %vm1812 = vcmask 130048
      %v1813 = vsel %vm1812, %v1780, %v1108
      %v1814 = vsel %vm1812, %v1781, %v1110
      %v1815 = vsel %vm1812, %v1782, %v1112
      %v1816 = vsel %vm1812, %v1783, %v1114
      %v1817 = vsel %vm1812, %v1784, %v1116
      %v1818 = vsel %vm1812, %v1785, %v1118
      %v1819 = vsel %vm1812, %v1786, %v1120
      %v1820 = vsel %vm1812, %v1787, %v1122
      %v1821 = vsel %vm1812, %v1788, %v1124
      %v1822 = vsel %vm1812, %v1789, %v1126
      %v1823 = vsel %vm1812, %v1790, %v1128
      %v1824 = vsel %vm1812, %v1791, %v1130
      %v1825 = vsel %vm1812, %v1792, %v1132
      %v1826 = vsel %vm1812, %v1793, %v1134
      %v1827 = vsel %vm1812, %v1794, %v1136
      %v1828 = vsel %vm1812, %v1795, %v1138
      %v1829 = vsel %vm1812, %v1796, %v1140
      %v1830 = vsel %vm1812, %v1797, %v1142
      %v1831 = vsel %vm1812, %v1798, %v1144
      %v1832 = vsel %vm1812, %v1799, %v1146
      %v1833 = vsel %vm1812, %v1800, %v1148
      %v1834 = vsel %vm1812, %v1801, %v1150
      %v1835 = vsel %vm1812, %v1802, %v1152
      %v1836 = vsel %vm1812, %v1803, %v1154
      %v1837 = vsel %vm1812, %v1804, %v1156
      %v1838 = vsel %vm1812, %v1805, %v1158
      %v1839 = vsel %vm1812, %v1806, %v1160
      %v1840 = vsel %vm1812, %v1807, %v1162
      %v1841 = vsel %vm1812, %v1808, %v1164
      %v1842 = vsel %vm1812, %v1809, %v1166
      %v1843 = vsel %vm1812, %v1810, %v1168
      %v1844 = vsel %vm1812, %v1811, %v1170
      %vm1845 = vcmask 162816
      %v1846 = vsel %vm1845, %v1813, %v1236
      %v1847 = vsel %vm1845, %v1814, %v1238
      %v1848 = vsel %vm1845, %v1815, %v1240
      %v1849 = vsel %vm1845, %v1816, %v1242
      %v1850 = vsel %vm1845, %v1817, %v1244
      %v1851 = vsel %vm1845, %v1818, %v1246
      %v1852 = vsel %vm1845, %v1819, %v1248
      %v1853 = vsel %vm1845, %v1820, %v1250
      %v1854 = vsel %vm1845, %v1821, %v1252
      %v1855 = vsel %vm1845, %v1822, %v1254
      %v1856 = vsel %vm1845, %v1823, %v1256
      %v1857 = vsel %vm1845, %v1824, %v1258
      %v1858 = vsel %vm1845, %v1825, %v1260
      %v1859 = vsel %vm1845, %v1826, %v1262
      %v1860 = vsel %vm1845, %v1827, %v1264
      %v1861 = vsel %vm1845, %v1828, %v1266
      %v1862 = vsel %vm1845, %v1829, %v1268
      %v1863 = vsel %vm1845, %v1830, %v1270
      %v1864 = vsel %vm1845, %v1831, %v1272
      %v1865 = vsel %vm1845, %v1832, %v1274
      %v1866 = vsel %vm1845, %v1833, %v1276
      %v1867 = vsel %vm1845, %v1834, %v1278
      %v1868 = vsel %vm1845, %v1835, %v1280
      %v1869 = vsel %vm1845, %v1836, %v1282
      %v1870 = vsel %vm1845, %v1837, %v1284
      %v1871 = vsel %vm1845, %v1838, %v1286
      %v1872 = vsel %vm1845, %v1839, %v1288
      %v1873 = vsel %vm1845, %v1840, %v1290
      %v1874 = vsel %vm1845, %v1841, %v1292
      %v1875 = vsel %vm1845, %v1842, %v1294
      %v1876 = vsel %vm1845, %v1843, %v1296
      %v1877 = vsel %vm1845, %v1844, %v1298
      %vm1878 = vcmask 195584
      %v1879 = vsel %vm1878, %v1846, %v1364
      %v1880 = vsel %vm1878, %v1847, %v1366
      %v1881 = vsel %vm1878, %v1848, %v1368
      %v1882 = vsel %vm1878, %v1849, %v1370
      %v1883 = vsel %vm1878, %v1850, %v1372
      %v1884 = vsel %vm1878, %v1851, %v1374
      %v1885 = vsel %vm1878, %v1852, %v1376
      %v1886 = vsel %vm1878, %v1853, %v1378
      %v1887 = vsel %vm1878, %v1854, %v1380
      %v1888 = vsel %vm1878, %v1855, %v1382
      %v1889 = vsel %vm1878, %v1856, %v1384
      %v1890 = vsel %vm1878, %v1857, %v1386
      %v1891 = vsel %vm1878, %v1858, %v1388
      %v1892 = vsel %vm1878, %v1859, %v1390
      %v1893 = vsel %vm1878, %v1860, %v1392
      %v1894 = vsel %vm1878, %v1861, %v1394
      %v1895 = vsel %vm1878, %v1862, %v1396
      %v1896 = vsel %vm1878, %v1863, %v1398
      %v1897 = vsel %vm1878, %v1864, %v1400
      %v1898 = vsel %vm1878, %v1865, %v1402
      %v1899 = vsel %vm1878, %v1866, %v1404
      %v1900 = vsel %vm1878, %v1867, %v1406
      %v1901 = vsel %vm1878, %v1868, %v1408
      %v1902 = vsel %vm1878, %v1869, %v1410
      %v1903 = vsel %vm1878, %v1870, %v1412
      %v1904 = vsel %vm1878, %v1871, %v1414
      %v1905 = vsel %vm1878, %v1872, %v1416
      %v1906 = vsel %vm1878, %v1873, %v1418
      %v1907 = vsel %vm1878, %v1874, %v1420
      %v1908 = vsel %vm1878, %v1875, %v1422
      %v1909 = vsel %vm1878, %v1876, %v1424
      %v1910 = vsel %vm1878, %v1877, %v1426
      %vm1911 = vcmask 228352
      %v1912 = vsel %vm1911, %v1879, %v1492
      %v1913 = vsel %vm1911, %v1880, %v1494
      %v1914 = vsel %vm1911, %v1881, %v1496
      %v1915 = vsel %vm1911, %v1882, %v1498
      %v1916 = vsel %vm1911, %v1883, %v1500
      %v1917 = vsel %vm1911, %v1884, %v1502
      %v1918 = vsel %vm1911, %v1885, %v1504
      %v1919 = vsel %vm1911, %v1886, %v1506
      %v1920 = vsel %vm1911, %v1887, %v1508
      %v1921 = vsel %vm1911, %v1888, %v1510
      %v1922 = vsel %vm1911, %v1889, %v1512
      %v1923 = vsel %vm1911, %v1890, %v1514
      %v1924 = vsel %vm1911, %v1891, %v1516
      %v1925 = vsel %vm1911, %v1892, %v1518
      %v1926 = vsel %vm1911, %v1893, %v1520
      %v1927 = vsel %vm1911, %v1894, %v1522
      %v1928 = vsel %vm1911, %v1895, %v1524
      %v1929 = vsel %vm1911, %v1896, %v1526
      %v1930 = vsel %vm1911, %v1897, %v1528
      %v1931 = vsel %vm1911, %v1898, %v1530
      %v1932 = vsel %vm1911, %v1899, %v1532
      %v1933 = vsel %vm1911, %v1900, %v1534
      %v1934 = vsel %vm1911, %v1901, %v1536
      %v1935 = vsel %vm1911, %v1902, %v1538
      %v1936 = vsel %vm1911, %v1903, %v1540
      %v1937 = vsel %vm1911, %v1904, %v1542
      %v1938 = vsel %vm1911, %v1905, %v1544
      %v1939 = vsel %vm1911, %v1906, %v1546
      %v1940 = vsel %vm1911, %v1907, %v1548
      %v1941 = vsel %vm1911, %v1908, %v1550
      %v1942 = vsel %vm1911, %v1909, %v1552
      %v1943 = vsel %vm1911, %v1910, %v1554
      %vm1944 = vcmask 261120
      %v1945 = vsel %vm1944, %v1912, %v1620
      %v1946 = vsel %vm1944, %v1913, %v1622
      %v1947 = vsel %vm1944, %v1914, %v1624
      %v1948 = vsel %vm1944, %v1915, %v1626
      %v1949 = vsel %vm1944, %v1916, %v1628
      %v1950 = vsel %vm1944, %v1917, %v1630
      %v1951 = vsel %vm1944, %v1918, %v1632
      %v1952 = vsel %vm1944, %v1919, %v1634
      %v1953 = vsel %vm1944, %v1920, %v1636
      %v1954 = vsel %vm1944, %v1921, %v1638
      %v1955 = vsel %vm1944, %v1922, %v1640
      %v1956 = vsel %vm1944, %v1923, %v1642
      %v1957 = vsel %vm1944, %v1924, %v1644
      %v1958 = vsel %vm1944, %v1925, %v1646
      %v1959 = vsel %vm1944, %v1926, %v1648
      %v1960 = vsel %vm1944, %v1927, %v1650
      %v1961 = vsel %vm1944, %v1928, %v1652
      %v1962 = vsel %vm1944, %v1929, %v1654
      %v1963 = vsel %vm1944, %v1930, %v1656
      %v1964 = vsel %vm1944, %v1931, %v1658
      %v1965 = vsel %vm1944, %v1932, %v1660
      %v1966 = vsel %vm1944, %v1933, %v1662
      %v1967 = vsel %vm1944, %v1934, %v1664
      %v1968 = vsel %vm1944, %v1935, %v1666
      %v1969 = vsel %vm1944, %v1936, %v1668
      %v1970 = vsel %vm1944, %v1937, %v1670
      %v1971 = vsel %vm1944, %v1938, %v1672
      %v1972 = vsel %vm1944, %v1939, %v1674
      %v1973 = vsel %vm1944, %v1940, %v1676
      %v1974 = vsel %vm1944, %v1941, %v1678
      %v1975 = vsel %vm1944, %v1942, %v1680
      %v1976 = vsel %vm1944, %v1943, %v1682
      %v1977 = vld [vmem:[%s1] sm:$0xff]
      %v1978 = vld [vmem:[%s1 + $0x8] sm:$0xff]
      %v1979 = vld [vmem:[%s1 + $0x10] sm:$0xff]
      %v1980 = vld [vmem:[%s1 + $0x18] sm:$0xff]
      %v1981 = vld [vmem:[%s1 + $0x20] sm:$0xf]
      %v1982 = vld [vmem:[%s2] sm:$0x1]
      %v1984 = vlaneseq
      %v1985 = vshrl.u32 %v1984, 7
      %v1986 = vsub.s32 0, %v1985
      %v1987 = vrot.slane %v1982, %v1986
      %vm1989 = vcmask 293888
      %v1991 = vsel %vm1989, %v1945, 0
      %v1994 = vsel %vm1989, %v1946, 0
      %v1997 = vsel %vm1989, %v1947, 0
      %v2000 = vsel %vm1989, %v1948, 0
      %v2003 = vsel %vm1989, %v1949, 0
      %v2006 = vsel %vm1989, %v1950, 0
      %v2009 = vsel %vm1989, %v1951, 0
      %v2012 = vsel %vm1989, %v1952, 0
      %v2015 = vsel %vm1989, %v1953, 0
      %v2018 = vsel %vm1989, %v1954, 0
      %v2021 = vsel %vm1989, %v1955, 0
      %v2024 = vsel %vm1989, %v1956, 0
      %v2027 = vsel %vm1989, %v1957, 0
      %v2030 = vsel %vm1989, %v1958, 0
      %v2033 = vsel %vm1989, %v1959, 0
      %v2036 = vsel %vm1989, %v1960, 0
      %v2039 = vsel %vm1989, %v1961, 0
      %v2042 = vsel %vm1989, %v1962, 0
      %v2045 = vsel %vm1989, %v1963, 0
      %v2048 = vsel %vm1989, %v1964, 0
      %v2051 = vsel %vm1989, %v1965, 0
      %v2054 = vsel %vm1989, %v1966, 0
      %v2057 = vsel %vm1989, %v1967, 0
      %v2060 = vsel %vm1989, %v1968, 0
      %v2063 = vsel %vm1989, %v1969, 0
      %v2066 = vsel %vm1989, %v1970, 0
      %v2069 = vsel %vm1989, %v1971, 0
      %v2072 = vsel %vm1989, %v1972, 0
      %v2075 = vsel %vm1989, %v1973, 0
      %v2078 = vsel %vm1989, %v1974, 0
      %v2081 = vsel %vm1989, %v1975, 0
      %v2084 = vsel %vm1989, %v1976, 0
      %vm2086 = vcmask 1043456
      %v2088 = vsel %vm2086, %v1981, 0
      %2090 = vmatprep.subr.mxu0 0.0
      %2091 = vmatpush1.msra.mxu0 0.0
      %2092 = vmatprep.subr.mxu0 0.0
      %2093 = vmatpush1.msra.mxu0 0.0
      %2094 = vmatprep.subr.mxu0 0.0
      %2095 = vmatpush1.msra.mxu0 0.0
      %2096 = vmatprep.subr.mxu0 0.0
      %2097 = vmatpush1.msra.mxu0 0.0
      %2098 = vmatprep.subr.mxu0 0.0
      %2099 = vmatpush1.msra.mxu0 0.0
      %2100 = vmatprep.subr.mxu0 0.0
      %2101 = vmatpush1.msra.mxu0 0.0
      %2102 = vmatprep.subr.mxu0 0.0
      %2103 = vmatpush1.msra.mxu0 0.0
      %2104 = vmatprep.subr.mxu0 0.0
      %2105 = vmatpush1.msra.mxu0 0.0
      %2106 = vmatprep.subr.mxu0 0.0
      %2107 = vmatpush1.msra.mxu0 0.0
      %2108 = vmatprep.subr.mxu0 0.0
      %2109 = vmatpush1.msra.mxu0 0.0
      %2110 = vmatprep.subr.mxu0 0.0
      %2111 = vmatpush1.msra.mxu0 0.0
      %2112 = vmatprep.subr.mxu0 0.0
      %2113 = vmatpush1.msra.mxu0 %v2088
      %2114 = vmatprep.subr.mxu0 0.0
      %2115 = vmatpush1.msra.mxu0 %v1980
      %2116 = vmatprep.subr.mxu0 0.0
      %2117 = vmatpush1.msra.mxu0 %v1979
      %2118 = vmatprep.subr.mxu0 0.0
      %2119 = vmatpush1.msra.mxu0 %v1978
      %2120 = vmatprep.subr.mxu0 0.0
      %2121 = vmatpush1.msra.mxu0 %v1977
      %2122 = vmatprep.subr.mxu0 0.0
      %2123 = vmatpush2.msra.mxu0 0.0
      %2124 = vmatprep.subr.mxu0 0.0
      %2125 = vmatpush2.msra.mxu0 0.0
      %2126 = vmatprep.subr.mxu0 0.0
      %2127 = vmatpush2.msra.mxu0 0.0
      %2128 = vmatprep.subr.mxu0 0.0
      %2129 = vmatpush2.msra.mxu0 0.0
      %2130 = vmatprep.subr.mxu0 0.0
      %2131 = vmatpush2.msra.mxu0 0.0
      %2132 = vmatprep.subr.mxu0 0.0
      %2133 = vmatpush2.msra.mxu0 0.0
      %2134 = vmatprep.subr.mxu0 0.0
      %2135 = vmatpush2.msra.mxu0 0.0
      %2136 = vmatprep.subr.mxu0 0.0
      %2137 = vmatpush2.msra.mxu0 0.0
      %2138 = vmatprep.subr.mxu0 0.0
      %2139 = vmatpush2.msra.mxu0 0.0
      %2140 = vmatprep.subr.mxu0 0.0
      %2141 = vmatpush2.msra.mxu0 0.0
      %2142 = vmatprep.subr.mxu0 0.0
      %2143 = vmatpush2.msra.mxu0 0.0
      %2144 = vmatprep.subr.mxu0 0.0
      %2145 = vmatpush2.msra.mxu0 0.0
      %2146 = vmatprep.subr.mxu0 0.0
      %2147 = vmatpush2.msra.mxu0 0.0
      %2148 = vmatprep.subr.mxu0 0.0
      %2149 = vmatpush2.msra.mxu0 0.0
      %2150 = vmatprep.subr.mxu0 0.0
      %2151 = vmatpush2.msra.mxu0 0.0
      %2152 = vmatprep.subr.mxu0 0.0
      %2153 = vmatpush2.msra.mxu0 0.0
      %2154 = vmatprep.mubr.f32.mxu0 0.0
      %2155 = vmatmul.mubr.f32.gmra.mxu0 %v1991
      %v2156 = vpop.f32.mrf.mxu0
      %v2157 = vadd.f32 %v1987, %v2156
      %v2158 = vpop.f32.mrf.mxu0
      %2159 = vmatprep.mubr.f32.mxu0 0.0
      %2160 = vmatmul.mubr.f32.gmra.mxu0 %v1994
      %v2161 = vpop.f32.mrf.mxu0
      %v2162 = vadd.f32 %v1987, %v2161
      %v2163 = vpop.f32.mrf.mxu0
      %2164 = vmatprep.mubr.f32.mxu0 0.0
      %2165 = vmatmul.mubr.f32.gmra.mxu0 %v1997
      %v2166 = vpop.f32.mrf.mxu0
      %v2167 = vadd.f32 %v1987, %v2166
      %v2168 = vpop.f32.mrf.mxu0
      %2169 = vmatprep.mubr.f32.mxu0 0.0
      %2170 = vmatmul.mubr.f32.gmra.mxu0 %v2000
      %v2171 = vpop.f32.mrf.mxu0
      %v2172 = vadd.f32 %v1987, %v2171
      %v2173 = vpop.f32.mrf.mxu0
      %2174 = vmatprep.mubr.f32.mxu0 0.0
      %2175 = vmatmul.mubr.f32.gmra.mxu0 %v2003
      %v2176 = vpop.f32.mrf.mxu0
      %v2177 = vadd.f32 %v1987, %v2176
      %v2178 = vpop.f32.mrf.mxu0
      %2179 = vmatprep.mubr.f32.mxu0 0.0
      %2180 = vmatmul.mubr.f32.gmra.mxu0 %v2006
      %v2181 = vpop.f32.mrf.mxu0
      %v2182 = vadd.f32 %v1987, %v2181
      %v2183 = vpop.f32.mrf.mxu0
      %2184 = vmatprep.mubr.f32.mxu0 0.0
      %2185 = vmatmul.mubr.f32.gmra.mxu0 %v2009
      %v2186 = vpop.f32.mrf.mxu0
      %v2187 = vadd.f32 %v1987, %v2186
      %v2188 = vpop.f32.mrf.mxu0
      %2189 = vmatprep.mubr.f32.mxu0 0.0
      %2190 = vmatmul.mubr.f32.gmra.mxu0 %v2012
      %v2191 = vpop.f32.mrf.mxu0
      %v2192 = vadd.f32 %v1987, %v2191
      %v2193 = vpop.f32.mrf.mxu0
      %2194 = vmatprep.mubr.f32.mxu0 0.0
      %2195 = vmatmul.mubr.f32.gmra.mxu0 %v2015
      %v2196 = vpop.f32.mrf.mxu0
      %v2197 = vadd.f32 %v1987, %v2196
      %v2198 = vpop.f32.mrf.mxu0
      %2199 = vmatprep.mubr.f32.mxu0 0.0
      %2200 = vmatmul.mubr.f32.gmra.mxu0 %v2018
      %v2201 = vpop.f32.mrf.mxu0
      %v2202 = vadd.f32 %v1987, %v2201
      %v2203 = vpop.f32.mrf.mxu0
      %2204 = vmatprep.mubr.f32.mxu0 0.0
      %2205 = vmatmul.mubr.f32.gmra.mxu0 %v2021
      %v2206 = vpop.f32.mrf.mxu0
      %v2207 = vadd.f32 %v1987, %v2206
      %v2208 = vpop.f32.mrf.mxu0
      %2209 = vmatprep.mubr.f32.mxu0 0.0
      %2210 = vmatmul.mubr.f32.gmra.mxu0 %v2024
      %v2211 = vpop.f32.mrf.mxu0
      %v2212 = vadd.f32 %v1987, %v2211
      %v2213 = vpop.f32.mrf.mxu0
      %2214 = vmatprep.mubr.f32.mxu0 0.0
      %2215 = vmatmul.mubr.f32.gmra.mxu0 %v2027
      %v2216 = vpop.f32.mrf.mxu0
      %v2217 = vadd.f32 %v1987, %v2216
      %v2218 = vpop.f32.mrf.mxu0
      %2219 = vmatprep.mubr.f32.mxu0 0.0
      %2220 = vmatmul.mubr.f32.gmra.mxu0 %v2030
      %v2221 = vpop.f32.mrf.mxu0
      %v2222 = vadd.f32 %v1987, %v2221
      %v2223 = vpop.f32.mrf.mxu0
      %2224 = vmatprep.mubr.f32.mxu0 0.0
      %2225 = vmatmul.mubr.f32.gmra.mxu0 %v2033
      %v2226 = vpop.f32.mrf.mxu0
      %v2227 = vadd.f32 %v1987, %v2226
      %v2228 = vpop.f32.mrf.mxu0
      %2229 = vmatprep.mubr.f32.mxu0 0.0
      %2230 = vmatmul.mubr.f32.gmra.mxu0 %v2036
      %v2231 = vpop.f32.mrf.mxu0
      %v2232 = vadd.f32 %v1987, %v2231
      %v2233 = vpop.f32.mrf.mxu0
      %2234 = vmatprep.mubr.f32.mxu0 0.0
      %2235 = vmatmul.mubr.f32.gmra.mxu0 %v2039
      %v2236 = vpop.f32.mrf.mxu0
      %v2237 = vadd.f32 %v1987, %v2236
      %v2238 = vpop.f32.mrf.mxu0
      %2239 = vmatprep.mubr.f32.mxu0 0.0
      %2240 = vmatmul.mubr.f32.gmra.mxu0 %v2042
      %v2241 = vpop.f32.mrf.mxu0
      %v2242 = vadd.f32 %v1987, %v2241
      %v2243 = vpop.f32.mrf.mxu0
      %2244 = vmatprep.mubr.f32.mxu0 0.0
      %2245 = vmatmul.mubr.f32.gmra.mxu0 %v2045
      %v2246 = vpop.f32.mrf.mxu0
      %v2247 = vadd.f32 %v1987, %v2246
      %v2248 = vpop.f32.mrf.mxu0
      %2249 = vmatprep.mubr.f32.mxu0 0.0
      %2250 = vmatmul.mubr.f32.gmra.mxu0 %v2048
      %v2251 = vpop.f32.mrf.mxu0
      %v2252 = vadd.f32 %v1987, %v2251
      %v2253 = vpop.f32.mrf.mxu0
      %2254 = vmatprep.mubr.f32.mxu0 0.0
      %2255 = vmatmul.mubr.f32.gmra.mxu0 %v2051
      %v2256 = vpop.f32.mrf.mxu0
      %v2257 = vadd.f32 %v1987, %v2256
      %v2258 = vpop.f32.mrf.mxu0
      %2259 = vmatprep.mubr.f32.mxu0 0.0
      %2260 = vmatmul.mubr.f32.gmra.mxu0 %v2054
      %v2261 = vpop.f32.mrf.mxu0
      %v2262 = vadd.f32 %v1987, %v2261
      %v2263 = vpop.f32.mrf.mxu0
      %2264 = vmatprep.mubr.f32.mxu0 0.0
      %2265 = vmatmul.mubr.f32.gmra.mxu0 %v2057
      %v2266 = vpop.f32.mrf.mxu0
      %v2267 = vadd.f32 %v1987, %v2266
      %v2268 = vpop.f32.mrf.mxu0
      %2269 = vmatprep.mubr.f32.mxu0 0.0
      %2270 = vmatmul.mubr.f32.gmra.mxu0 %v2060
      %v2271 = vpop.f32.mrf.mxu0
      %v2272 = vadd.f32 %v1987, %v2271
      %v2273 = vpop.f32.mrf.mxu0
      %2274 = vmatprep.mubr.f32.mxu0 0.0
      %2275 = vmatmul.mubr.f32.gmra.mxu0 %v2063
      %v2276 = vpop.f32.mrf.mxu0
      %v2277 = vadd.f32 %v1987, %v2276
      %v2278 = vpop.f32.mrf.mxu0
      %2279 = vmatprep.mubr.f32.mxu0 0.0
      %2280 = vmatmul.mubr.f32.gmra.mxu0 %v2066
      %v2281 = vpop.f32.mrf.mxu0
      %v2282 = vadd.f32 %v1987, %v2281
      %v2283 = vpop.f32.mrf.mxu0
      %2284 = vmatprep.mubr.f32.mxu0 0.0
      %2285 = vmatmul.mubr.f32.gmra.mxu0 %v2069
      %v2286 = vpop.f32.mrf.mxu0
      %v2287 = vadd.f32 %v1987, %v2286
      %v2288 = vpop.f32.mrf.mxu0
      %2289 = vmatprep.mubr.f32.mxu0 0.0
      %2290 = vmatmul.mubr.f32.gmra.mxu0 %v2072
      %v2291 = vpop.f32.mrf.mxu0
      %v2292 = vadd.f32 %v1987, %v2291
      %v2293 = vpop.f32.mrf.mxu0
      %2294 = vmatprep.mubr.f32.mxu0 0.0
      %2295 = vmatmul.mubr.f32.gmra.mxu0 %v2075
      %v2296 = vpop.f32.mrf.mxu0
      %v2297 = vadd.f32 %v1987, %v2296
      %v2298 = vpop.f32.mrf.mxu0
      %2299 = vmatprep.mubr.f32.mxu0 0.0
      %2300 = vmatmul.mubr.f32.gmra.mxu0 %v2078
      %v2301 = vpop.f32.mrf.mxu0
      %v2302 = vadd.f32 %v1987, %v2301
      %v2303 = vpop.f32.mrf.mxu0
      %2304 = vmatprep.mubr.f32.mxu0 0.0
      %2305 = vmatmul.mubr.f32.gmra.mxu0 %v2081
      %v2306 = vpop.f32.mrf.mxu0
      %v2307 = vadd.f32 %v1987, %v2306
      %v2308 = vpop.f32.mrf.mxu0
      %2309 = vmatprep.mubr.f32.mxu0 0.0
      %2310 = vmatmul.mubr.f32.gmra.mxu0 %v2084
      %v2311 = vpop.f32.mrf.mxu0
      %v2312 = vadd.f32 %v1987, %v2311
      %v2313 = vpop.f32.mrf.mxu0
      %2314 = vdwg.mxu0
      %vm2315 = vcmp.gt.f32.partialorder %v2157, 0.0
      %vm2316 = vcmp.gt.f32.partialorder %v2162, 0.0
      %vm2317 = vcmp.gt.f32.partialorder %v2167, 0.0
      %vm2318 = vcmp.gt.f32.partialorder %v2172, 0.0
      %vm2319 = vcmp.gt.f32.partialorder %v2177, 0.0
      %vm2320 = vcmp.gt.f32.partialorder %v2182, 0.0
      %vm2321 = vcmp.gt.f32.partialorder %v2187, 0.0
      %vm2322 = vcmp.gt.f32.partialorder %v2192, 0.0
      %vm2323 = vcmp.gt.f32.partialorder %v2197, 0.0
      %vm2324 = vcmp.gt.f32.partialorder %v2202, 0.0
      %vm2325 = vcmp.gt.f32.partialorder %v2207, 0.0
      %vm2326 = vcmp.gt.f32.partialorder %v2212, 0.0
      %vm2327 = vcmp.gt.f32.partialorder %v2217, 0.0
      %vm2328 = vcmp.gt.f32.partialorder %v2222, 0.0
      %vm2329 = vcmp.gt.f32.partialorder %v2227, 0.0
      %vm2330 = vcmp.gt.f32.partialorder %v2232, 0.0
      %vm2331 = vcmp.gt.f32.partialorder %v2237, 0.0
      %vm2332 = vcmp.gt.f32.partialorder %v2242, 0.0
      %vm2333 = vcmp.gt.f32.partialorder %v2247, 0.0
      %vm2334 = vcmp.gt.f32.partialorder %v2252, 0.0
      %vm2335 = vcmp.gt.f32.partialorder %v2257, 0.0
      %vm2336 = vcmp.gt.f32.partialorder %v2262, 0.0
      %vm2337 = vcmp.gt.f32.partialorder %v2267, 0.0
      %vm2338 = vcmp.gt.f32.partialorder %v2272, 0.0
      %vm2339 = vcmp.gt.f32.partialorder %v2277, 0.0
      %vm2340 = vcmp.gt.f32.partialorder %v2282, 0.0
      %vm2341 = vcmp.gt.f32.partialorder %v2287, 0.0
      %vm2342 = vcmp.gt.f32.partialorder %v2292, 0.0
      %vm2343 = vcmp.gt.f32.partialorder %v2297, 0.0
      %vm2344 = vcmp.gt.f32.partialorder %v2302, 0.0
      %vm2345 = vcmp.gt.f32.partialorder %v2307, 0.0
      %vm2346 = vcmp.gt.f32.partialorder %v2312, 0.0
      %v2347 = vmin.f32 %v2157, 0.0
      %v2348 = vmin.f32 %v2162, 0.0
      %v2349 = vmin.f32 %v2167, 0.0
      %v2350 = vmin.f32 %v2172, 0.0
      %v2351 = vmin.f32 %v2177, 0.0
      %v2352 = vmin.f32 %v2182, 0.0
      %v2353 = vmin.f32 %v2187, 0.0
      %v2354 = vmin.f32 %v2192, 0.0
      %v2355 = vmin.f32 %v2197, 0.0
      %v2356 = vmin.f32 %v2202, 0.0
      %v2357 = vmin.f32 %v2207, 0.0
      %v2358 = vmin.f32 %v2212, 0.0
      %v2359 = vmin.f32 %v2217, 0.0
      %v2360 = vmin.f32 %v2222, 0.0
      %v2361 = vmin.f32 %v2227, 0.0
      %v2362 = vmin.f32 %v2232, 0.0
      %v2363 = vmin.f32 %v2237, 0.0
      %v2364 = vmin.f32 %v2242, 0.0
      %v2365 = vmin.f32 %v2247, 0.0
      %v2366 = vmin.f32 %v2252, 0.0
      %v2367 = vmin.f32 %v2257, 0.0
      %v2368 = vmin.f32 %v2262, 0.0
      %v2369 = vmin.f32 %v2267, 0.0
      %v2370 = vmin.f32 %v2272, 0.0
      %v2371 = vmin.f32 %v2277, 0.0
      %v2372 = vmin.f32 %v2282, 0.0
      %v2373 = vmin.f32 %v2287, 0.0
      %v2374 = vmin.f32 %v2292, 0.0
      %v2375 = vmin.f32 %v2297, 0.0
      %v2376 = vmin.f32 %v2302, 0.0
      %v2377 = vmin.f32 %v2307, 0.0
      %v2378 = vmin.f32 %v2312, 0.0
      %v2379 = vmul.f32 %v2347, 1.442695
      %v2380 = vpow.pop %v2379
      %v2381 = vmul.f32 %v2348, 1.442695
      %v2382 = vpow.pop %v2381
      %v2383 = vmul.f32 %v2349, 1.442695
      %v2384 = vpow.pop %v2383
      %v2385 = vmul.f32 %v2350, 1.442695
      %v2386 = vpow.pop %v2385
      %v2387 = vmul.f32 %v2351, 1.442695
      %v2388 = vpow.pop %v2387
      %v2389 = vmul.f32 %v2352, 1.442695
      %v2390 = vpow.pop %v2389
      %v2391 = vmul.f32 %v2353, 1.442695
      %v2392 = vpow.pop %v2391
      %v2393 = vmul.f32 %v2354, 1.442695
      %v2394 = vpow.pop %v2393
      %v2395 = vmul.f32 %v2355, 1.442695
      %v2396 = vpow.pop %v2395
      %v2397 = vmul.f32 %v2356, 1.442695
      %v2398 = vpow.pop %v2397
      %v2399 = vmul.f32 %v2357, 1.442695
      %v2400 = vpow.pop %v2399
      %v2401 = vmul.f32 %v2358, 1.442695
      %v2402 = vpow.pop %v2401
      %v2403 = vmul.f32 %v2359, 1.442695
      %v2404 = vpow.pop %v2403
      %v2405 = vmul.f32 %v2360, 1.442695
      %v2406 = vpow.pop %v2405
      %v2407 = vmul.f32 %v2361, 1.442695
      %v2408 = vpow.pop %v2407
      %v2409 = vmul.f32 %v2362, 1.442695
      %v2410 = vpow.pop %v2409
      %v2411 = vmul.f32 %v2363, 1.442695
      %v2412 = vpow.pop %v2411
      %v2413 = vmul.f32 %v2364, 1.442695
      %v2414 = vpow.pop %v2413
      %v2415 = vmul.f32 %v2365, 1.442695
      %v2416 = vpow.pop %v2415
      %v2417 = vmul.f32 %v2366, 1.442695
      %v2418 = vpow.pop %v2417
      %v2419 = vmul.f32 %v2367, 1.442695
      %v2420 = vpow.pop %v2419
      %v2421 = vmul.f32 %v2368, 1.442695
      %v2422 = vpow.pop %v2421
      %v2423 = vmul.f32 %v2369, 1.442695
      %v2424 = vpow.pop %v2423
      %v2425 = vmul.f32 %v2370, 1.442695
      %v2426 = vpow.pop %v2425
      %v2427 = vmul.f32 %v2371, 1.442695
      %v2428 = vpow.pop %v2427
      %v2429 = vmul.f32 %v2372, 1.442695
      %v2430 = vpow.pop %v2429
      %v2431 = vmul.f32 %v2373, 1.442695
      %v2432 = vpow.pop %v2431
      %v2433 = vmul.f32 %v2374, 1.442695
      %v2434 = vpow.pop %v2433
      %v2435 = vmul.f32 %v2375, 1.442695
      %v2436 = vpow.pop %v2435
      %v2437 = vmul.f32 %v2376, 1.442695
      %v2438 = vpow.pop %v2437
      %v2439 = vmul.f32 %v2377, 1.442695
      %v2440 = vpow.pop %v2439
      %v2441 = vmul.f32 %v2378, 1.442695
      %v2442 = vpow.pop %v2441
      %v2443 = vsub.f32 %v2380, 1.0
      %v2444 = vsub.f32 %v2382, 1.0
      %v2445 = vsub.f32 %v2384, 1.0
      %v2446 = vsub.f32 %v2386, 1.0
      %v2447 = vsub.f32 %v2388, 1.0
      %v2448 = vsub.f32 %v2390, 1.0
      %v2449 = vsub.f32 %v2392, 1.0
      %v2450 = vsub.f32 %v2394, 1.0
      %v2451 = vsub.f32 %v2396, 1.0
      %v2452 = vsub.f32 %v2398, 1.0
      %v2453 = vsub.f32 %v2400, 1.0
      %v2454 = vsub.f32 %v2402, 1.0
      %v2455 = vsub.f32 %v2404, 1.0
      %v2456 = vsub.f32 %v2406, 1.0
      %v2457 = vsub.f32 %v2408, 1.0
      %v2458 = vsub.f32 %v2410, 1.0
      %v2459 = vsub.f32 %v2412, 1.0
      %v2460 = vsub.f32 %v2414, 1.0
      %v2461 = vsub.f32 %v2416, 1.0
      %v2462 = vsub.f32 %v2418, 1.0
      %v2463 = vsub.f32 %v2420, 1.0
      %v2464 = vsub.f32 %v2422, 1.0
      %v2465 = vsub.f32 %v2424, 1.0
      %v2466 = vsub.f32 %v2426, 1.0
      %v2467 = vsub.f32 %v2428, 1.0
      %v2468 = vsub.f32 %v2430, 1.0
      %v2469 = vsub.f32 %v2432, 1.0
      %v2470 = vsub.f32 %v2434, 1.0
      %v2471 = vsub.f32 %v2436, 1.0
      %v2472 = vsub.f32 %v2438, 1.0
      %v2473 = vsub.f32 %v2440, 1.0
      %v2474 = vsub.f32 %v2442, 1.0
      %v2475 = vsel %vm2315, %v2157, %v2443
      %v2476 = vsel %vm2316, %v2162, %v2444
      %v2477 = vsel %vm2317, %v2167, %v2445
      %v2478 = vsel %vm2318, %v2172, %v2446
      %v2479 = vsel %vm2319, %v2177, %v2447
      %v2480 = vsel %vm2320, %v2182, %v2448
      %v2481 = vsel %vm2321, %v2187, %v2449
      %v2482 = vsel %vm2322, %v2192, %v2450
      %v2483 = vsel %vm2323, %v2197, %v2451
      %v2484 = vsel %vm2324, %v2202, %v2452
      %v2485 = vsel %vm2325, %v2207, %v2453
      %v2486 = vsel %vm2326, %v2212, %v2454
      %v2487 = vsel %vm2327, %v2217, %v2455
      %v2488 = vsel %vm2328, %v2222, %v2456
      %v2489 = vsel %vm2329, %v2227, %v2457
      %v2490 = vsel %vm2330, %v2232, %v2458
      %v2491 = vsel %vm2331, %v2237, %v2459
      %v2492 = vsel %vm2332, %v2242, %v2460
      %v2493 = vsel %vm2333, %v2247, %v2461
      %v2494 = vsel %vm2334, %v2252, %v2462
      %v2495 = vsel %vm2335, %v2257, %v2463
      %v2496 = vsel %vm2336, %v2262, %v2464
      %v2497 = vsel %vm2337, %v2267, %v2465
      %v2498 = vsel %vm2338, %v2272, %v2466
      %v2499 = vsel %vm2339, %v2277, %v2467
      %v2500 = vsel %vm2340, %v2282, %v2468
      %v2501 = vsel %vm2341, %v2287, %v2469
      %v2502 = vsel %vm2342, %v2292, %v2470
      %v2503 = vsel %vm2343, %v2297, %v2471
      %v2504 = vsel %vm2344, %v2302, %v2472
      %v2505 = vsel %vm2345, %v2307, %v2473
      %v2506 = vsel %vm2346, %v2312, %v2474
      %s2507 = scalar_lea.vmem [#allocation3], 24
      %2508 = vst.msk [vmem:[%s2507 + $0x1] sm:$0xff] %vm281, %v2475
      %2509 = vst.msk [vmem:[%s2507 + $0x9] sm:$0xff] %vm281, %v2476
      %2510 = vst.msk [vmem:[%s2507 + $0x19] sm:$0xff] %vm281, %v2477
      %2511 = vst.msk [vmem:[%s2507 + $0x21] sm:$0xff] %vm281, %v2478
      %2512 = vst.msk [vmem:[%s2507 + $0x31] sm:$0xff] %vm281, %v2479
      %2513 = vst.msk [vmem:[%s2507 + $0x39] sm:$0xff] %vm281, %v2480
      %2514 = vst.msk [vmem:[%s2507 + $0x49] sm:$0xff] %vm281, %v2481
      %2515 = vst.msk [vmem:[%s2507 + $0x51] sm:$0xff] %vm281, %v2482
      %2516 = vst.msk [vmem:[%s2507 + $0x61] sm:$0xff] %vm281, %v2483
      %2517 = vst.msk [vmem:[%s2507 + $0x69] sm:$0xff] %vm281, %v2484
      %2518 = vst.msk [vmem:[%s2507 + $0x79] sm:$0xff] %vm281, %v2485
      %2519 = vst.msk [vmem:[%s2507 + $0x81] sm:$0xff] %vm281, %v2486
      %2520 = vst.msk [vmem:[%s2507 + $0x91] sm:$0xff] %vm281, %v2487
      %2521 = vst.msk [vmem:[%s2507 + $0x99] sm:$0xff] %vm281, %v2488
      %2522 = vst.msk [vmem:[%s2507 + $0xa9] sm:$0xff] %vm281, %v2489
      %2523 = vst.msk [vmem:[%s2507 + $0xb1] sm:$0xff] %vm281, %v2490
      %2524 = vst.msk [vmem:[%s2507 + $0xc1] sm:$0xff] %vm281, %v2491
      %2525 = vst.msk [vmem:[%s2507 + $0xc9] sm:$0xff] %vm281, %v2492
      %2526 = vst.msk [vmem:[%s2507 + $0xd9] sm:$0xff] %vm281, %v2493
      %2527 = vst.msk [vmem:[%s2507 + $0xe1] sm:$0xff] %vm281, %v2494
      %2528 = vst.msk [vmem:[%s2507 + $0xf1] sm:$0xff] %vm281, %v2495
      %2529 = vst.msk [vmem:[%s2507 + $0xf9] sm:$0xff] %vm281, %v2496
      %2530 = vst.msk [vmem:[%s2507 + $0x109] sm:$0xff] %vm281, %v2497
      %2531 = vst.msk [vmem:[%s2507 + $0x111] sm:$0xff] %vm281, %v2498
      %2532 = vst.msk [vmem:[%s2507 + $0x121] sm:$0xff] %vm281, %v2499
      %2533 = vst.msk [vmem:[%s2507 + $0x129] sm:$0xff] %vm281, %v2500
      %2534 = vst.msk [vmem:[%s2507 + $0x139] sm:$0xff] %vm281, %v2501
      %2535 = vst.msk [vmem:[%s2507 + $0x141] sm:$0xff] %vm281, %v2502
      %2536 = vst.msk [vmem:[%s2507 + $0x151] sm:$0xff] %vm281, %v2503
      %2537 = vst.msk [vmem:[%s2507 + $0x159] sm:$0xff] %vm281, %v2504
      %2538 = vst.msk [vmem:[%s2507 + $0x169] sm:$0xff] %vm281, %v2505
      %2539 = vst.msk [vmem:[%s2507 + $0x171] sm:$0xff] %vm281, %v2506
      %v2540 = vld [vmem:[#allocation3] sm:$0xff]
      %v2541 = vld [vmem:[#allocation3 + $0x8] sm:$0xff]
      %v2542 = vld [vmem:[#allocation3 + $0x18] sm:$0xff]
      %v2543 = vld [vmem:[#allocation3 + $0x20] sm:$0xff]
      %v2544 = vld [vmem:[#allocation3 + $0x30] sm:$0xff]
      %v2545 = vld [vmem:[#allocation3 + $0x38] sm:$0xff]
      %v2546 = vld [vmem:[#allocation3 + $0x48] sm:$0xff]
      %v2547 = vld [vmem:[#allocation3 + $0x50] sm:$0xff]
      %v2548 = vld [vmem:[#allocation3 + $0x60] sm:$0xff]
      %v2549 = vld [vmem:[#allocation3 + $0x68] sm:$0xff]
      %v2550 = vld [vmem:[#allocation3 + $0x78] sm:$0xff]
      %v2551 = vld [vmem:[#allocation3 + $0x80] sm:$0xff]
      %v2552 = vld [vmem:[#allocation3 + $0x90] sm:$0xff]
      %v2553 = vld [vmem:[#allocation3 + $0x98] sm:$0xff]
      %v2554 = vld [vmem:[#allocation3 + $0xa8] sm:$0xff]
      %v2555 = vld [vmem:[#allocation3 + $0xb0] sm:$0xff]
      %v2556 = vld [vmem:[#allocation3 + $0xc0] sm:$0xff]
      %v2557 = vld [vmem:[#allocation3 + $0xc8] sm:$0xff]
      %v2558 = vld [vmem:[#allocation3 + $0xd8] sm:$0xff]
      %v2559 = vld [vmem:[#allocation3 + $0xe0] sm:$0xff]
      %v2560 = vld [vmem:[#allocation3 + $0xf0] sm:$0xff]
      %v2561 = vld [vmem:[#allocation3 + $0xf8] sm:$0xff]
      %v2562 = vld [vmem:[#allocation3 + $0x108] sm:$0xff]
      %v2563 = vld [vmem:[#allocation3 + $0x110] sm:$0xff]
      %v2564 = vld [vmem:[#allocation3 + $0x120] sm:$0xff]
      %v2565 = vld [vmem:[#allocation3 + $0x128] sm:$0xff]
      %v2566 = vld [vmem:[#allocation3 + $0x138] sm:$0xff]
      %v2567 = vld [vmem:[#allocation3 + $0x140] sm:$0xff]
      %v2568 = vld [vmem:[#allocation3 + $0x150] sm:$0xff]
      %v2569 = vld [vmem:[#allocation3 + $0x158] sm:$0xff]
      %v2570 = vld [vmem:[#allocation3 + $0x168] sm:$0xff]
      %v2571 = vld [vmem:[#allocation3 + $0x170] sm:$0xff]
      %v2572 = vld [vmem:[#allocation3 + $0x1] sm:$0xff]
      %v2573 = vld [vmem:[#allocation3 + $0x9] sm:$0xff]
      %v2574 = vld [vmem:[#allocation3 + $0x19] sm:$0xff]
      %v2575 = vld [vmem:[#allocation3 + $0x21] sm:$0xff]
      %v2576 = vld [vmem:[#allocation3 + $0x31] sm:$0xff]
      %v2577 = vld [vmem:[#allocation3 + $0x39] sm:$0xff]
      %v2578 = vld [vmem:[#allocation3 + $0x49] sm:$0xff]
      %v2579 = vld [vmem:[#allocation3 + $0x51] sm:$0xff]
      %v2580 = vld [vmem:[#allocation3 + $0x61] sm:$0xff]
      %v2581 = vld [vmem:[#allocation3 + $0x69] sm:$0xff]
      %v2582 = vld [vmem:[#allocation3 + $0x79] sm:$0xff]
      %v2583 = vld [vmem:[#allocation3 + $0x81] sm:$0xff]
      %v2584 = vld [vmem:[#allocation3 + $0x91] sm:$0xff]
      %v2585 = vld [vmem:[#allocation3 + $0x99] sm:$0xff]
      %v2586 = vld [vmem:[#allocation3 + $0xa9] sm:$0xff]
      %v2587 = vld [vmem:[#allocation3 + $0xb1] sm:$0xff]
      %v2588 = vld [vmem:[#allocation3 + $0xc1] sm:$0xff]
      %v2589 = vld [vmem:[#allocation3 + $0xc9] sm:$0xff]
      %v2590 = vld [vmem:[#allocation3 + $0xd9] sm:$0xff]
      %v2591 = vld [vmem:[#allocation3 + $0xe1] sm:$0xff]
      %v2592 = vld [vmem:[#allocation3 + $0xf1] sm:$0xff]
      %v2593 = vld [vmem:[#allocation3 + $0xf9] sm:$0xff]
      %v2594 = vld [vmem:[#allocation3 + $0x109] sm:$0xff]
      %v2595 = vld [vmem:[#allocation3 + $0x111] sm:$0xff]
      %v2596 = vld [vmem:[#allocation3 + $0x121] sm:$0xff]
      %v2597 = vld [vmem:[#allocation3 + $0x129] sm:$0xff]
      %v2598 = vld [vmem:[#allocation3 + $0x139] sm:$0xff]
      %v2599 = vld [vmem:[#allocation3 + $0x141] sm:$0xff]
      %v2600 = vld [vmem:[#allocation3 + $0x151] sm:$0xff]
      %v2601 = vld [vmem:[#allocation3 + $0x159] sm:$0xff]
      %v2602 = vld [vmem:[#allocation3 + $0x169] sm:$0xff]
      %v2603 = vld [vmem:[#allocation3 + $0x171] sm:$0xff]
      %v2604 = vld [vmem:[#allocation3 + $0x2] sm:$0xff]
      %v2605 = vld [vmem:[#allocation3 + $0xa] sm:$0xff]
      %v2606 = vld [vmem:[#allocation3 + $0x1a] sm:$0xff]
      %v2607 = vld [vmem:[#allocation3 + $0x22] sm:$0xff]
      %v2608 = vld [vmem:[#allocation3 + $0x32] sm:$0xff]
      %v2609 = vld [vmem:[#allocation3 + $0x3a] sm:$0xff]
      %v2610 = vld [vmem:[#allocation3 + $0x4a] sm:$0xff]
      %v2611 = vld [vmem:[#allocation3 + $0x52] sm:$0xff]
      %v2612 = vld [vmem:[#allocation3 + $0x62] sm:$0xff]
      %v2613 = vld [vmem:[#allocation3 + $0x6a] sm:$0xff]
      %v2614 = vld [vmem:[#allocation3 + $0x7a] sm:$0xff]
      %v2615 = vld [vmem:[#allocation3 + $0x82] sm:$0xff]
      %v2616 = vld [vmem:[#allocation3 + $0x92] sm:$0xff]
      %v2617 = vld [vmem:[#allocation3 + $0x9a] sm:$0xff]
      %v2618 = vld [vmem:[#allocation3 + $0xaa] sm:$0xff]
      %v2619 = vld [vmem:[#allocation3 + $0xb2] sm:$0xff]
      %v2620 = vld [vmem:[#allocation3 + $0xc2] sm:$0xff]
      %v2621 = vld [vmem:[#allocation3 + $0xca] sm:$0xff]
      %v2622 = vld [vmem:[#allocation3 + $0xda] sm:$0xff]
      %v2623 = vld [vmem:[#allocation3 + $0xe2] sm:$0xff]
      %v2624 = vld [vmem:[#allocation3 + $0xf2] sm:$0xff]
      %v2625 = vld [vmem:[#allocation3 + $0xfa] sm:$0xff]
      %v2626 = vld [vmem:[#allocation3 + $0x10a] sm:$0xff]
      %v2627 = vld [vmem:[#allocation3 + $0x112] sm:$0xff]
      %v2628 = vld [vmem:[#allocation3 + $0x122] sm:$0xff]
      %v2629 = vld [vmem:[#allocation3 + $0x12a] sm:$0xff]
      %v2630 = vld [vmem:[#allocation3 + $0x13a] sm:$0xff]
      %v2631 = vld [vmem:[#allocation3 + $0x142] sm:$0xff]
      %v2632 = vld [vmem:[#allocation3 + $0x152] sm:$0xff]
      %v2633 = vld [vmem:[#allocation3 + $0x15a] sm:$0xff]
      %v2634 = vld [vmem:[#allocation3 + $0x16a] sm:$0xff]
      %v2635 = vld [vmem:[#allocation3 + $0x172] sm:$0xff]
      %v2636 = vld [vmem:[%s2507] sm:$0xff]
      %v2637 = vld [vmem:[%s2507 + $0x8] sm:$0xff]
      %v2638 = vld [vmem:[%s2507 + $0x18] sm:$0xff]
      %v2639 = vld [vmem:[%s2507 + $0x20] sm:$0xff]
      %v2640 = vld [vmem:[%s2507 + $0x30] sm:$0xff]
      %v2641 = vld [vmem:[%s2507 + $0x38] sm:$0xff]
      %v2642 = vld [vmem:[%s2507 + $0x48] sm:$0xff]
      %v2643 = vld [vmem:[%s2507 + $0x50] sm:$0xff]
      %v2644 = vld [vmem:[%s2507 + $0x60] sm:$0xff]
      %v2645 = vld [vmem:[%s2507 + $0x68] sm:$0xff]
      %v2646 = vld [vmem:[%s2507 + $0x78] sm:$0xff]
      %v2647 = vld [vmem:[%s2507 + $0x80] sm:$0xff]
      %v2648 = vld [vmem:[%s2507 + $0x90] sm:$0xff]
      %v2649 = vld [vmem:[%s2507 + $0x98] sm:$0xff]
      %v2650 = vld [vmem:[%s2507 + $0xa8] sm:$0xff]
      %v2651 = vld [vmem:[%s2507 + $0xb0] sm:$0xff]
      %v2652 = vld [vmem:[%s2507 + $0xc0] sm:$0xff]
      %v2653 = vld [vmem:[%s2507 + $0xc8] sm:$0xff]
      %v2654 = vld [vmem:[%s2507 + $0xd8] sm:$0xff]
      %v2655 = vld [vmem:[%s2507 + $0xe0] sm:$0xff]
      %v2656 = vld [vmem:[%s2507 + $0xf0] sm:$0xff]
      %v2657 = vld [vmem:[%s2507 + $0xf8] sm:$0xff]
      %v2658 = vld [vmem:[%s2507 + $0x108] sm:$0xff]
      %v2659 = vld [vmem:[%s2507 + $0x110] sm:$0xff]
      %v2660 = vld [vmem:[%s2507 + $0x120] sm:$0xff]
      %v2661 = vld [vmem:[%s2507 + $0x128] sm:$0xff]
      %v2662 = vld [vmem:[%s2507 + $0x138] sm:$0xff]
      %v2663 = vld [vmem:[%s2507 + $0x140] sm:$0xff]
      %v2664 = vld [vmem:[%s2507 + $0x150] sm:$0xff]
      %v2665 = vld [vmem:[%s2507 + $0x158] sm:$0xff]
      %v2666 = vld [vmem:[%s2507 + $0x168] sm:$0xff]
      %v2667 = vld [vmem:[%s2507 + $0x170] sm:$0xff]
      %v2668 = vld [vmem:[%s2507 + $0x1] sm:$0xff]
      %v2669 = vld [vmem:[%s2507 + $0x9] sm:$0xff]
      %v2670 = vld [vmem:[%s2507 + $0x19] sm:$0xff]
      %v2671 = vld [vmem:[%s2507 + $0x21] sm:$0xff]
      %v2672 = vld [vmem:[%s2507 + $0x31] sm:$0xff]
      %v2673 = vld [vmem:[%s2507 + $0x39] sm:$0xff]
      %v2674 = vld [vmem:[%s2507 + $0x49] sm:$0xff]
      %v2675 = vld [vmem:[%s2507 + $0x51] sm:$0xff]
      %v2676 = vld [vmem:[%s2507 + $0x61] sm:$0xff]
      %v2677 = vld [vmem:[%s2507 + $0x69] sm:$0xff]
      %v2678 = vld [vmem:[%s2507 + $0x79] sm:$0xff]
      %v2679 = vld [vmem:[%s2507 + $0x81] sm:$0xff]
      %v2680 = vld [vmem:[%s2507 + $0x91] sm:$0xff]
      %v2681 = vld [vmem:[%s2507 + $0x99] sm:$0xff]
      %v2682 = vld [vmem:[%s2507 + $0xa9] sm:$0xff]
      %v2683 = vld [vmem:[%s2507 + $0xb1] sm:$0xff]
      %v2684 = vld [vmem:[%s2507 + $0xc1] sm:$0xff]
      %v2685 = vld [vmem:[%s2507 + $0xc9] sm:$0xff]
      %v2686 = vld [vmem:[%s2507 + $0xd9] sm:$0xff]
      %v2687 = vld [vmem:[%s2507 + $0xe1] sm:$0xff]
      %v2688 = vld [vmem:[%s2507 + $0xf1] sm:$0xff]
      %v2689 = vld [vmem:[%s2507 + $0xf9] sm:$0xff]
      %v2690 = vld [vmem:[%s2507 + $0x109] sm:$0xff]
      %v2691 = vld [vmem:[%s2507 + $0x111] sm:$0xff]
      %v2692 = vld [vmem:[%s2507 + $0x121] sm:$0xff]
      %v2693 = vld [vmem:[%s2507 + $0x129] sm:$0xff]
      %v2694 = vld [vmem:[%s2507 + $0x139] sm:$0xff]
      %v2695 = vld [vmem:[%s2507 + $0x141] sm:$0xff]
      %v2696 = vld [vmem:[%s2507 + $0x151] sm:$0xff]
      %v2697 = vld [vmem:[%s2507 + $0x159] sm:$0xff]
      %v2698 = vld [vmem:[%s2507 + $0x169] sm:$0xff]
      %v2699 = vld [vmem:[%s2507 + $0x171] sm:$0xff]
      %v2700 = vld [vmem:[%s2507 + $0x2] sm:$0xff]
      %v2701 = vld [vmem:[%s2507 + $0xa] sm:$0xff]
      %v2702 = vld [vmem:[%s2507 + $0x1a] sm:$0xff]
      %v2703 = vld [vmem:[%s2507 + $0x22] sm:$0xff]
      %v2704 = vld [vmem:[%s2507 + $0x32] sm:$0xff]
      %v2705 = vld [vmem:[%s2507 + $0x3a] sm:$0xff]
      %v2706 = vld [vmem:[%s2507 + $0x4a] sm:$0xff]
      %v2707 = vld [vmem:[%s2507 + $0x52] sm:$0xff]
      %v2708 = vld [vmem:[%s2507 + $0x62] sm:$0xff]
      %v2709 = vld [vmem:[%s2507 + $0x6a] sm:$0xff]
      %v2710 = vld [vmem:[%s2507 + $0x7a] sm:$0xff]
      %v2711 = vld [vmem:[%s2507 + $0x82] sm:$0xff]
      %v2712 = vld [vmem:[%s2507 + $0x92] sm:$0xff]
      %v2713 = vld [vmem:[%s2507 + $0x9a] sm:$0xff]
      %v2714 = vld [vmem:[%s2507 + $0xaa] sm:$0xff]
      %v2715 = vld [vmem:[%s2507 + $0xb2] sm:$0xff]
      %v2716 = vld [vmem:[%s2507 + $0xc2] sm:$0xff]
      %v2717 = vld [vmem:[%s2507 + $0xca] sm:$0xff]
      %v2718 = vld [vmem:[%s2507 + $0xda] sm:$0xff]
      %v2719 = vld [vmem:[%s2507 + $0xe2] sm:$0xff]
      %v2720 = vld [vmem:[%s2507 + $0xf2] sm:$0xff]
      %v2721 = vld [vmem:[%s2507 + $0xfa] sm:$0xff]
      %v2722 = vld [vmem:[%s2507 + $0x10a] sm:$0xff]
      %v2723 = vld [vmem:[%s2507 + $0x112] sm:$0xff]
      %v2724 = vld [vmem:[%s2507 + $0x122] sm:$0xff]
      %v2725 = vld [vmem:[%s2507 + $0x12a] sm:$0xff]
      %v2726 = vld [vmem:[%s2507 + $0x13a] sm:$0xff]
      %v2727 = vld [vmem:[%s2507 + $0x142] sm:$0xff]
      %v2728 = vld [vmem:[%s2507 + $0x152] sm:$0xff]
      %v2729 = vld [vmem:[%s2507 + $0x15a] sm:$0xff]
      %v2730 = vld [vmem:[%s2507 + $0x16a] sm:$0xff]
      %v2731 = vld [vmem:[%s2507 + $0x172] sm:$0xff]
      %s2732 = scalar_lea.vmem [#allocation3], 48
      %v2733 = vld [vmem:[%s2732] sm:$0xff]
      %v2734 = vld [vmem:[%s2732 + $0x8] sm:$0xff]
      %v2735 = vld [vmem:[%s2732 + $0x18] sm:$0xff]
      %v2736 = vld [vmem:[%s2732 + $0x20] sm:$0xff]
      %v2737 = vld [vmem:[%s2732 + $0x30] sm:$0xff]
      %v2738 = vld [vmem:[%s2732 + $0x38] sm:$0xff]
      %v2739 = vld [vmem:[%s2732 + $0x48] sm:$0xff]
      %v2740 = vld [vmem:[%s2732 + $0x50] sm:$0xff]
      %v2741 = vld [vmem:[%s2732 + $0x60] sm:$0xff]
      %v2742 = vld [vmem:[%s2732 + $0x68] sm:$0xff]
      %v2743 = vld [vmem:[%s2732 + $0x78] sm:$0xff]
      %v2744 = vld [vmem:[%s2732 + $0x80] sm:$0xff]
      %v2745 = vld [vmem:[%s2732 + $0x90] sm:$0xff]
      %v2746 = vld [vmem:[%s2732 + $0x98] sm:$0xff]
      %v2747 = vld [vmem:[%s2732 + $0xa8] sm:$0xff]
      %v2748 = vld [vmem:[%s2732 + $0xb0] sm:$0xff]
      %v2749 = vld [vmem:[%s2732 + $0xc0] sm:$0xff]
      %v2750 = vld [vmem:[%s2732 + $0xc8] sm:$0xff]
      %v2751 = vld [vmem:[%s2732 + $0xd8] sm:$0xff]
      %v2752 = vld [vmem:[%s2732 + $0xe0] sm:$0xff]
      %v2753 = vld [vmem:[%s2732 + $0xf0] sm:$0xff]
      %v2754 = vld [vmem:[%s2732 + $0xf8] sm:$0xff]
      %v2755 = vld [vmem:[%s2732 + $0x108] sm:$0xff]
      %v2756 = vld [vmem:[%s2732 + $0x110] sm:$0xff]
      %v2757 = vld [vmem:[%s2732 + $0x120] sm:$0xff]
      %v2758 = vld [vmem:[%s2732 + $0x128] sm:$0xff]
      %v2759 = vld [vmem:[%s2732 + $0x138] sm:$0xff]
      %v2760 = vld [vmem:[%s2732 + $0x140] sm:$0xff]
      %v2761 = vld [vmem:[%s2732 + $0x150] sm:$0xff]
      %v2762 = vld [vmem:[%s2732 + $0x158] sm:$0xff]
      %v2763 = vld [vmem:[%s2732 + $0x168] sm:$0xff]
      %v2764 = vld [vmem:[%s2732 + $0x170] sm:$0xff]
      %v2765 = vld [vmem:[%s2732 + $0x1] sm:$0xff]
      %v2766 = vld [vmem:[%s2732 + $0x9] sm:$0xff]
      %v2767 = vld [vmem:[%s2732 + $0x19] sm:$0xff]
      %v2768 = vld [vmem:[%s2732 + $0x21] sm:$0xff]
      %v2769 = vld [vmem:[%s2732 + $0x31] sm:$0xff]
      %v2770 = vld [vmem:[%s2732 + $0x39] sm:$0xff]
      %v2771 = vld [vmem:[%s2732 + $0x49] sm:$0xff]
      %v2772 = vld [vmem:[%s2732 + $0x51] sm:$0xff]
      %v2773 = vld [vmem:[%s2732 + $0x61] sm:$0xff]
      %v2774 = vld [vmem:[%s2732 + $0x69] sm:$0xff]
      %v2775 = vld [vmem:[%s2732 + $0x79] sm:$0xff]
      %v2776 = vld [vmem:[%s2732 + $0x81] sm:$0xff]
      %v2777 = vld [vmem:[%s2732 + $0x91] sm:$0xff]
      %v2778 = vld [vmem:[%s2732 + $0x99] sm:$0xff]
      %v2779 = vld [vmem:[%s2732 + $0xa9] sm:$0xff]
      %v2780 = vld [vmem:[%s2732 + $0xb1] sm:$0xff]
      %v2781 = vld [vmem:[%s2732 + $0xc1] sm:$0xff]
      %v2782 = vld [vmem:[%s2732 + $0xc9] sm:$0xff]
      %v2783 = vld [vmem:[%s2732 + $0xd9] sm:$0xff]
      %v2784 = vld [vmem:[%s2732 + $0xe1] sm:$0xff]
      %v2785 = vld [vmem:[%s2732 + $0xf1] sm:$0xff]
      %v2786 = vld [vmem:[%s2732 + $0xf9] sm:$0xff]
      %v2787 = vld [vmem:[%s2732 + $0x109] sm:$0xff]
      %v2788 = vld [vmem:[%s2732 + $0x111] sm:$0xff]
      %v2789 = vld [vmem:[%s2732 + $0x121] sm:$0xff]
      %v2790 = vld [vmem:[%s2732 + $0x129] sm:$0xff]
      %v2791 = vld [vmem:[%s2732 + $0x139] sm:$0xff]
      %v2792 = vld [vmem:[%s2732 + $0x141] sm:$0xff]
      %v2793 = vld [vmem:[%s2732 + $0x151] sm:$0xff]
      %v2794 = vld [vmem:[%s2732 + $0x159] sm:$0xff]
      %v2795 = vld [vmem:[%s2732 + $0x169] sm:$0xff]
      %v2796 = vld [vmem:[%s2732 + $0x171] sm:$0xff]
      %v2797 = vld [vmem:[%s2732 + $0x2] sm:$0xff]
      %v2798 = vld [vmem:[%s2732 + $0xa] sm:$0xff]
      %v2799 = vld [vmem:[%s2732 + $0x1a] sm:$0xff]
      %v2800 = vld [vmem:[%s2732 + $0x22] sm:$0xff]
      %v2801 = vld [vmem:[%s2732 + $0x32] sm:$0xff]
      %v2802 = vld [vmem:[%s2732 + $0x3a] sm:$0xff]
      %v2803 = vld [vmem:[%s2732 + $0x4a] sm:$0xff]
      %v2804 = vld [vmem:[%s2732 + $0x52] sm:$0xff]
      %v2805 = vld [vmem:[%s2732 + $0x62] sm:$0xff]
      %v2806 = vld [vmem:[%s2732 + $0x6a] sm:$0xff]
      %v2807 = vld [vmem:[%s2732 + $0x7a] sm:$0xff]
      %v2808 = vld [vmem:[%s2732 + $0x82] sm:$0xff]
      %v2809 = vld [vmem:[%s2732 + $0x92] sm:$0xff]
      %v2810 = vld [vmem:[%s2732 + $0x9a] sm:$0xff]
      %v2811 = vld [vmem:[%s2732 + $0xaa] sm:$0xff]
      %v2812 = vld [vmem:[%s2732 + $0xb2] sm:$0xff]
      %v2813 = vld [vmem:[%s2732 + $0xc2] sm:$0xff]
      %v2814 = vld [vmem:[%s2732 + $0xca] sm:$0xff]
      %v2815 = vld [vmem:[%s2732 + $0xda] sm:$0xff]
      %v2816 = vld [vmem:[%s2732 + $0xe2] sm:$0xff]
      %v2817 = vld [vmem:[%s2732 + $0xf2] sm:$0xff]
      %v2818 = vld [vmem:[%s2732 + $0xfa] sm:$0xff]
      %v2819 = vld [vmem:[%s2732 + $0x10a] sm:$0xff]
      %v2820 = vld [vmem:[%s2732 + $0x112] sm:$0xff]
      %v2821 = vld [vmem:[%s2732 + $0x122] sm:$0xff]
      %v2822 = vld [vmem:[%s2732 + $0x12a] sm:$0xff]
      %v2823 = vld [vmem:[%s2732 + $0x13a] sm:$0xff]
      %v2824 = vld [vmem:[%s2732 + $0x142] sm:$0xff]
      %v2825 = vld [vmem:[%s2732 + $0x152] sm:$0xff]
      %v2826 = vld [vmem:[%s2732 + $0x15a] sm:$0xff]
      %v2827 = vld [vmem:[%s2732 + $0x16a] sm:$0xff]
      %v2828 = vld [vmem:[%s2732 + $0x172] sm:$0xff]
      %2861 = vrot.lane.b32.xlu0 %v2572, 8
      %v2862 = vpop.permute.xlu0 %2861
      %2863 = vrot.lane.b32.xlu0 %v2573, 8
      %v2864 = vpop.permute.xlu0 %2863
      %2865 = vrot.lane.b32.xlu0 %v2574, 8
      %v2866 = vpop.permute.xlu0 %2865
      %2867 = vrot.lane.b32.xlu0 %v2575, 8
      %v2868 = vpop.permute.xlu0 %2867
      %2869 = vrot.lane.b32.xlu0 %v2576, 8
      %v2870 = vpop.permute.xlu0 %2869
      %2871 = vrot.lane.b32.xlu0 %v2577, 8
      %v2872 = vpop.permute.xlu0 %2871
      %2873 = vrot.lane.b32.xlu0 %v2578, 8
      %v2874 = vpop.permute.xlu0 %2873
      %2875 = vrot.lane.b32.xlu0 %v2579, 8
      %v2876 = vpop.permute.xlu0 %2875
      %2877 = vrot.lane.b32.xlu0 %v2580, 8
      %v2878 = vpop.permute.xlu0 %2877
      %2879 = vrot.lane.b32.xlu0 %v2581, 8
      %v2880 = vpop.permute.xlu0 %2879
      %2881 = vrot.lane.b32.xlu0 %v2582, 8
      %v2882 = vpop.permute.xlu0 %2881
      %2883 = vrot.lane.b32.xlu0 %v2583, 8
      %v2884 = vpop.permute.xlu0 %2883
      %2885 = vrot.lane.b32.xlu0 %v2584, 8
      %v2886 = vpop.permute.xlu0 %2885
      %2887 = vrot.lane.b32.xlu0 %v2585, 8
      %v2888 = vpop.permute.xlu0 %2887
      %2889 = vrot.lane.b32.xlu0 %v2586, 8
      %v2890 = vpop.permute.xlu0 %2889
      %2891 = vrot.lane.b32.xlu0 %v2587, 8
      %v2892 = vpop.permute.xlu0 %2891
      %2893 = vrot.lane.b32.xlu0 %v2588, 8
      %v2894 = vpop.permute.xlu0 %2893
      %2895 = vrot.lane.b32.xlu0 %v2589, 8
      %v2896 = vpop.permute.xlu0 %2895
      %2897 = vrot.lane.b32.xlu0 %v2590, 8
      %v2898 = vpop.permute.xlu0 %2897
      %2899 = vrot.lane.b32.xlu0 %v2591, 8
      %v2900 = vpop.permute.xlu0 %2899
      %2901 = vrot.lane.b32.xlu0 %v2592, 8
      %v2902 = vpop.permute.xlu0 %2901
      %2903 = vrot.lane.b32.xlu0 %v2593, 8
      %v2904 = vpop.permute.xlu0 %2903
      %2905 = vrot.lane.b32.xlu0 %v2594, 8
      %v2906 = vpop.permute.xlu0 %2905
      %2907 = vrot.lane.b32.xlu0 %v2595, 8
      %v2908 = vpop.permute.xlu0 %2907
      %2909 = vrot.lane.b32.xlu0 %v2596, 8
      %v2910 = vpop.permute.xlu0 %2909
      %2911 = vrot.lane.b32.xlu0 %v2597, 8
      %v2912 = vpop.permute.xlu0 %2911
      %2913 = vrot.lane.b32.xlu0 %v2598, 8
      %v2914 = vpop.permute.xlu0 %2913
      %2915 = vrot.lane.b32.xlu0 %v2599, 8
      %v2916 = vpop.permute.xlu0 %2915
      %2917 = vrot.lane.b32.xlu0 %v2600, 8
      %v2918 = vpop.permute.xlu0 %2917
      %2919 = vrot.lane.b32.xlu0 %v2601, 8
      %v2920 = vpop.permute.xlu0 %2919
      %2921 = vrot.lane.b32.xlu0 %v2602, 8
      %v2922 = vpop.permute.xlu0 %2921
      %2923 = vrot.lane.b32.xlu0 %v2603, 8
      %v2924 = vpop.permute.xlu0 %2923
      %2989 = vrot.lane.b32.xlu0 %v2604, 16
      %v2990 = vpop.permute.xlu0 %2989
      %2991 = vrot.lane.b32.xlu0 %v2605, 16
      %v2992 = vpop.permute.xlu0 %2991
      %2993 = vrot.lane.b32.xlu0 %v2606, 16
      %v2994 = vpop.permute.xlu0 %2993
      %2995 = vrot.lane.b32.xlu0 %v2607, 16
      %v2996 = vpop.permute.xlu0 %2995
      %2997 = vrot.lane.b32.xlu0 %v2608, 16
      %v2998 = vpop.permute.xlu0 %2997
      %2999 = vrot.lane.b32.xlu0 %v2609, 16
      %v3000 = vpop.permute.xlu0 %2999
      %3001 = vrot.lane.b32.xlu0 %v2610, 16
      %v3002 = vpop.permute.xlu0 %3001
      %3003 = vrot.lane.b32.xlu0 %v2611, 16
      %v3004 = vpop.permute.xlu0 %3003
      %3005 = vrot.lane.b32.xlu0 %v2612, 16
      %v3006 = vpop.permute.xlu0 %3005
      %3007 = vrot.lane.b32.xlu0 %v2613, 16
      %v3008 = vpop.permute.xlu0 %3007
      %3009 = vrot.lane.b32.xlu0 %v2614, 16
      %v3010 = vpop.permute.xlu0 %3009
      %3011 = vrot.lane.b32.xlu0 %v2615, 16
      %v3012 = vpop.permute.xlu0 %3011
      %3013 = vrot.lane.b32.xlu0 %v2616, 16
      %v3014 = vpop.permute.xlu0 %3013
      %3015 = vrot.lane.b32.xlu0 %v2617, 16
      %v3016 = vpop.permute.xlu0 %3015
      %3017 = vrot.lane.b32.xlu0 %v2618, 16
      %v3018 = vpop.permute.xlu0 %3017
      %3019 = vrot.lane.b32.xlu0 %v2619, 16
      %v3020 = vpop.permute.xlu0 %3019
      %3021 = vrot.lane.b32.xlu0 %v2620, 16
      %v3022 = vpop.permute.xlu0 %3021
      %3023 = vrot.lane.b32.xlu0 %v2621, 16
      %v3024 = vpop.permute.xlu0 %3023
      %3025 = vrot.lane.b32.xlu0 %v2622, 16
      %v3026 = vpop.permute.xlu0 %3025
      %3027 = vrot.lane.b32.xlu0 %v2623, 16
      %v3028 = vpop.permute.xlu0 %3027
      %3029 = vrot.lane.b32.xlu0 %v2624, 16
      %v3030 = vpop.permute.xlu0 %3029
      %3031 = vrot.lane.b32.xlu0 %v2625, 16
      %v3032 = vpop.permute.xlu0 %3031
      %3033 = vrot.lane.b32.xlu0 %v2626, 16
      %v3034 = vpop.permute.xlu0 %3033
      %3035 = vrot.lane.b32.xlu0 %v2627, 16
      %v3036 = vpop.permute.xlu0 %3035
      %3037 = vrot.lane.b32.xlu0 %v2628, 16
      %v3038 = vpop.permute.xlu0 %3037
      %3039 = vrot.lane.b32.xlu0 %v2629, 16
      %v3040 = vpop.permute.xlu0 %3039
      %3041 = vrot.lane.b32.xlu0 %v2630, 16
      %v3042 = vpop.permute.xlu0 %3041
      %3043 = vrot.lane.b32.xlu0 %v2631, 16
      %v3044 = vpop.permute.xlu0 %3043
      %3045 = vrot.lane.b32.xlu0 %v2632, 16
      %v3046 = vpop.permute.xlu0 %3045
      %3047 = vrot.lane.b32.xlu0 %v2633, 16
      %v3048 = vpop.permute.xlu0 %3047
      %3049 = vrot.lane.b32.xlu0 %v2634, 16
      %v3050 = vpop.permute.xlu0 %3049
      %3051 = vrot.lane.b32.xlu0 %v2635, 16
      %v3052 = vpop.permute.xlu0 %3051
      %3117 = vrot.lane.b32.xlu0 %v2636, 24
      %v3118 = vpop.permute.xlu0 %3117
      %3119 = vrot.lane.b32.xlu0 %v2637, 24
      %v3120 = vpop.permute.xlu0 %3119
      %3121 = vrot.lane.b32.xlu0 %v2638, 24
      %v3122 = vpop.permute.xlu0 %3121
      %3123 = vrot.lane.b32.xlu0 %v2639, 24
      %v3124 = vpop.permute.xlu0 %3123
      %3125 = vrot.lane.b32.xlu0 %v2640, 24
      %v3126 = vpop.permute.xlu0 %3125
      %3127 = vrot.lane.b32.xlu0 %v2641, 24
      %v3128 = vpop.permute.xlu0 %3127
      %3129 = vrot.lane.b32.xlu0 %v2642, 24
      %v3130 = vpop.permute.xlu0 %3129
      %3131 = vrot.lane.b32.xlu0 %v2643, 24
      %v3132 = vpop.permute.xlu0 %3131
      %3133 = vrot.lane.b32.xlu0 %v2644, 24
      %v3134 = vpop.permute.xlu0 %3133
      %3135 = vrot.lane.b32.xlu0 %v2645, 24
      %v3136 = vpop.permute.xlu0 %3135
      %3137 = vrot.lane.b32.xlu0 %v2646, 24
      %v3138 = vpop.permute.xlu0 %3137
      %3139 = vrot.lane.b32.xlu0 %v2647, 24
      %v3140 = vpop.permute.xlu0 %3139
      %3141 = vrot.lane.b32.xlu0 %v2648, 24
      %v3142 = vpop.permute.xlu0 %3141
      %3143 = vrot.lane.b32.xlu0 %v2649, 24
      %v3144 = vpop.permute.xlu0 %3143
      %3145 = vrot.lane.b32.xlu0 %v2650, 24
      %v3146 = vpop.permute.xlu0 %3145
      %3147 = vrot.lane.b32.xlu0 %v2651, 24
      %v3148 = vpop.permute.xlu0 %3147
      %3149 = vrot.lane.b32.xlu0 %v2652, 24
      %v3150 = vpop.permute.xlu0 %3149
      %3151 = vrot.lane.b32.xlu0 %v2653, 24
      %v3152 = vpop.permute.xlu0 %3151
      %3153 = vrot.lane.b32.xlu0 %v2654, 24
      %v3154 = vpop.permute.xlu0 %3153
      %3155 = vrot.lane.b32.xlu0 %v2655, 24
      %v3156 = vpop.permute.xlu0 %3155
      %3157 = vrot.lane.b32.xlu0 %v2656, 24
      %v3158 = vpop.permute.xlu0 %3157
      %3159 = vrot.lane.b32.xlu0 %v2657, 24
      %v3160 = vpop.permute.xlu0 %3159
      %3161 = vrot.lane.b32.xlu0 %v2658, 24
      %v3162 = vpop.permute.xlu0 %3161
      %3163 = vrot.lane.b32.xlu0 %v2659, 24
      %v3164 = vpop.permute.xlu0 %3163
      %3165 = vrot.lane.b32.xlu0 %v2660, 24
      %v3166 = vpop.permute.xlu0 %3165
      %3167 = vrot.lane.b32.xlu0 %v2661, 24
      %v3168 = vpop.permute.xlu0 %3167
      %3169 = vrot.lane.b32.xlu0 %v2662, 24
      %v3170 = vpop.permute.xlu0 %3169
      %3171 = vrot.lane.b32.xlu0 %v2663, 24
      %v3172 = vpop.permute.xlu0 %3171
      %3173 = vrot.lane.b32.xlu0 %v2664, 24
      %v3174 = vpop.permute.xlu0 %3173
      %3175 = vrot.lane.b32.xlu0 %v2665, 24
      %v3176 = vpop.permute.xlu0 %3175
      %3177 = vrot.lane.b32.xlu0 %v2666, 24
      %v3178 = vpop.permute.xlu0 %3177
      %3179 = vrot.lane.b32.xlu0 %v2667, 24
      %v3180 = vpop.permute.xlu0 %3179
      %3245 = vrot.lane.b32.xlu0 %v2668, 32
      %v3246 = vpop.permute.xlu0 %3245
      %3247 = vrot.lane.b32.xlu0 %v2669, 32
      %v3248 = vpop.permute.xlu0 %3247
      %3249 = vrot.lane.b32.xlu0 %v2670, 32
      %v3250 = vpop.permute.xlu0 %3249
      %3251 = vrot.lane.b32.xlu0 %v2671, 32
      %v3252 = vpop.permute.xlu0 %3251
      %3253 = vrot.lane.b32.xlu0 %v2672, 32
      %v3254 = vpop.permute.xlu0 %3253
      %3255 = vrot.lane.b32.xlu0 %v2673, 32
      %v3256 = vpop.permute.xlu0 %3255
      %3257 = vrot.lane.b32.xlu0 %v2674, 32
      %v3258 = vpop.permute.xlu0 %3257
      %3259 = vrot.lane.b32.xlu0 %v2675, 32
      %v3260 = vpop.permute.xlu0 %3259
      %3261 = vrot.lane.b32.xlu0 %v2676, 32
      %v3262 = vpop.permute.xlu0 %3261
      %3263 = vrot.lane.b32.xlu0 %v2677, 32
      %v3264 = vpop.permute.xlu0 %3263
      %3265 = vrot.lane.b32.xlu0 %v2678, 32
      %v3266 = vpop.permute.xlu0 %3265
      %3267 = vrot.lane.b32.xlu0 %v2679, 32
      %v3268 = vpop.permute.xlu0 %3267
      %3269 = vrot.lane.b32.xlu0 %v2680, 32
      %v3270 = vpop.permute.xlu0 %3269
      %3271 = vrot.lane.b32.xlu0 %v2681, 32
      %v3272 = vpop.permute.xlu0 %3271
      %3273 = vrot.lane.b32.xlu0 %v2682, 32
      %v3274 = vpop.permute.xlu0 %3273
      %3275 = vrot.lane.b32.xlu0 %v2683, 32
      %v3276 = vpop.permute.xlu0 %3275
      %3277 = vrot.lane.b32.xlu0 %v2684, 32
      %v3278 = vpop.permute.xlu0 %3277
      %3279 = vrot.lane.b32.xlu0 %v2685, 32
      %v3280 = vpop.permute.xlu0 %3279
      %3281 = vrot.lane.b32.xlu0 %v2686, 32
      %v3282 = vpop.permute.xlu0 %3281
      %3283 = vrot.lane.b32.xlu0 %v2687, 32
      %v3284 = vpop.permute.xlu0 %3283
      %3285 = vrot.lane.b32.xlu0 %v2688, 32
      %v3286 = vpop.permute.xlu0 %3285
      %3287 = vrot.lane.b32.xlu0 %v2689, 32
      %v3288 = vpop.permute.xlu0 %3287
      %3289 = vrot.lane.b32.xlu0 %v2690, 32
      %v3290 = vpop.permute.xlu0 %3289
      %3291 = vrot.lane.b32.xlu0 %v2691, 32
      %v3292 = vpop.permute.xlu0 %3291
      %3293 = vrot.lane.b32.xlu0 %v2692, 32
      %v3294 = vpop.permute.xlu0 %3293
      %3295 = vrot.lane.b32.xlu0 %v2693, 32
      %v3296 = vpop.permute.xlu0 %3295
      %3297 = vrot.lane.b32.xlu0 %v2694, 32
      %v3298 = vpop.permute.xlu0 %3297
      %3299 = vrot.lane.b32.xlu0 %v2695, 32
      %v3300 = vpop.permute.xlu0 %3299
      %3301 = vrot.lane.b32.xlu0 %v2696, 32
      %v3302 = vpop.permute.xlu0 %3301
      %3303 = vrot.lane.b32.xlu0 %v2697, 32
      %v3304 = vpop.permute.xlu0 %3303
      %3305 = vrot.lane.b32.xlu0 %v2698, 32
      %v3306 = vpop.permute.xlu0 %3305
      %3307 = vrot.lane.b32.xlu0 %v2699, 32
      %v3308 = vpop.permute.xlu0 %3307
      %3373 = vrot.lane.b32.xlu0 %v2700, 40
      %v3374 = vpop.permute.xlu0 %3373
      %3375 = vrot.lane.b32.xlu0 %v2701, 40
      %v3376 = vpop.permute.xlu0 %3375
      %3377 = vrot.lane.b32.xlu0 %v2702, 40
      %v3378 = vpop.permute.xlu0 %3377
      %3379 = vrot.lane.b32.xlu0 %v2703, 40
      %v3380 = vpop.permute.xlu0 %3379
      %3381 = vrot.lane.b32.xlu0 %v2704, 40
      %v3382 = vpop.permute.xlu0 %3381
      %3383 = vrot.lane.b32.xlu0 %v2705, 40
      %v3384 = vpop.permute.xlu0 %3383
      %3385 = vrot.lane.b32.xlu0 %v2706, 40
      %v3386 = vpop.permute.xlu0 %3385
      %3387 = vrot.lane.b32.xlu0 %v2707, 40
      %v3388 = vpop.permute.xlu0 %3387
      %3389 = vrot.lane.b32.xlu0 %v2708, 40
      %v3390 = vpop.permute.xlu0 %3389
      %3391 = vrot.lane.b32.xlu0 %v2709, 40
      %v3392 = vpop.permute.xlu0 %3391
      %3393 = vrot.lane.b32.xlu0 %v2710, 40
      %v3394 = vpop.permute.xlu0 %3393
      %3395 = vrot.lane.b32.xlu0 %v2711, 40
      %v3396 = vpop.permute.xlu0 %3395
      %3397 = vrot.lane.b32.xlu0 %v2712, 40
      %v3398 = vpop.permute.xlu0 %3397
      %3399 = vrot.lane.b32.xlu0 %v2713, 40
      %v3400 = vpop.permute.xlu0 %3399
      %3401 = vrot.lane.b32.xlu0 %v2714, 40
      %v3402 = vpop.permute.xlu0 %3401
      %3403 = vrot.lane.b32.xlu0 %v2715, 40
      %v3404 = vpop.permute.xlu0 %3403
      %3405 = vrot.lane.b32.xlu0 %v2716, 40
      %v3406 = vpop.permute.xlu0 %3405
      %3407 = vrot.lane.b32.xlu0 %v2717, 40
      %v3408 = vpop.permute.xlu0 %3407
      %3409 = vrot.lane.b32.xlu0 %v2718, 40
      %v3410 = vpop.permute.xlu0 %3409
      %3411 = vrot.lane.b32.xlu0 %v2719, 40
      %v3412 = vpop.permute.xlu0 %3411
      %3413 = vrot.lane.b32.xlu0 %v2720, 40
      %v3414 = vpop.permute.xlu0 %3413
      %3415 = vrot.lane.b32.xlu0 %v2721, 40
      %v3416 = vpop.permute.xlu0 %3415
      %3417 = vrot.lane.b32.xlu0 %v2722, 40
      %v3418 = vpop.permute.xlu0 %3417
      %3419 = vrot.lane.b32.xlu0 %v2723, 40
      %v3420 = vpop.permute.xlu0 %3419
      %3421 = vrot.lane.b32.xlu0 %v2724, 40
      %v3422 = vpop.permute.xlu0 %3421
      %3423 = vrot.lane.b32.xlu0 %v2725, 40
      %v3424 = vpop.permute.xlu0 %3423
      %3425 = vrot.lane.b32.xlu0 %v2726, 40
      %v3426 = vpop.permute.xlu0 %3425
      %3427 = vrot.lane.b32.xlu0 %v2727, 40
      %v3428 = vpop.permute.xlu0 %3427
      %3429 = vrot.lane.b32.xlu0 %v2728, 40
      %v3430 = vpop.permute.xlu0 %3429
      %3431 = vrot.lane.b32.xlu0 %v2729, 40
      %v3432 = vpop.permute.xlu0 %3431
      %3433 = vrot.lane.b32.xlu0 %v2730, 40
      %v3434 = vpop.permute.xlu0 %3433
      %3435 = vrot.lane.b32.xlu0 %v2731, 40
      %v3436 = vpop.permute.xlu0 %3435
      %3501 = vrot.lane.b32.xlu0 %v2733, 48
      %v3502 = vpop.permute.xlu0 %3501
      %3503 = vrot.lane.b32.xlu0 %v2734, 48
      %v3504 = vpop.permute.xlu0 %3503
      %3505 = vrot.lane.b32.xlu0 %v2735, 48
      %v3506 = vpop.permute.xlu0 %3505
      %3507 = vrot.lane.b32.xlu0 %v2736, 48
      %v3508 = vpop.permute.xlu0 %3507
      %3509 = vrot.lane.b32.xlu0 %v2737, 48
      %v3510 = vpop.permute.xlu0 %3509
      %3511 = vrot.lane.b32.xlu0 %v2738, 48
      %v3512 = vpop.permute.xlu0 %3511
      %3513 = vrot.lane.b32.xlu0 %v2739, 48
      %v3514 = vpop.permute.xlu0 %3513
      %3515 = vrot.lane.b32.xlu0 %v2740, 48
      %v3516 = vpop.permute.xlu0 %3515
      %3517 = vrot.lane.b32.xlu0 %v2741, 48
      %v3518 = vpop.permute.xlu0 %3517
      %3519 = vrot.lane.b32.xlu0 %v2742, 48
      %v3520 = vpop.permute.xlu0 %3519
      %3521 = vrot.lane.b32.xlu0 %v2743, 48
      %v3522 = vpop.permute.xlu0 %3521
      %3523 = vrot.lane.b32.xlu0 %v2744, 48
      %v3524 = vpop.permute.xlu0 %3523
      %3525 = vrot.lane.b32.xlu0 %v2745, 48
      %v3526 = vpop.permute.xlu0 %3525
      %3527 = vrot.lane.b32.xlu0 %v2746, 48
      %v3528 = vpop.permute.xlu0 %3527
      %3529 = vrot.lane.b32.xlu0 %v2747, 48
      %v3530 = vpop.permute.xlu0 %3529
      %3531 = vrot.lane.b32.xlu0 %v2748, 48
      %v3532 = vpop.permute.xlu0 %3531
      %3533 = vrot.lane.b32.xlu0 %v2749, 48
      %v3534 = vpop.permute.xlu0 %3533
      %3535 = vrot.lane.b32.xlu0 %v2750, 48
      %v3536 = vpop.permute.xlu0 %3535
      %3537 = vrot.lane.b32.xlu0 %v2751, 48
      %v3538 = vpop.permute.xlu0 %3537
      %3539 = vrot.lane.b32.xlu0 %v2752, 48
      %v3540 = vpop.permute.xlu0 %3539
      %3541 = vrot.lane.b32.xlu0 %v2753, 48
      %v3542 = vpop.permute.xlu0 %3541
      %3543 = vrot.lane.b32.xlu0 %v2754, 48
      %v3544 = vpop.permute.xlu0 %3543
      %3545 = vrot.lane.b32.xlu0 %v2755, 48
      %v3546 = vpop.permute.xlu0 %3545
      %3547 = vrot.lane.b32.xlu0 %v2756, 48
      %v3548 = vpop.permute.xlu0 %3547
      %3549 = vrot.lane.b32.xlu0 %v2757, 48
      %v3550 = vpop.permute.xlu0 %3549
      %3551 = vrot.lane.b32.xlu0 %v2758, 48
      %v3552 = vpop.permute.xlu0 %3551
      %3553 = vrot.lane.b32.xlu0 %v2759, 48
      %v3554 = vpop.permute.xlu0 %3553
      %3555 = vrot.lane.b32.xlu0 %v2760, 48
      %v3556 = vpop.permute.xlu0 %3555
      %3557 = vrot.lane.b32.xlu0 %v2761, 48
      %v3558 = vpop.permute.xlu0 %3557
      %3559 = vrot.lane.b32.xlu0 %v2762, 48
      %v3560 = vpop.permute.xlu0 %3559
      %3561 = vrot.lane.b32.xlu0 %v2763, 48
      %v3562 = vpop.permute.xlu0 %3561
      %3563 = vrot.lane.b32.xlu0 %v2764, 48
      %v3564 = vpop.permute.xlu0 %3563
      %3629 = vrot.lane.b32.xlu0 %v2765, 56
      %v3630 = vpop.permute.xlu0 %3629
      %3631 = vrot.lane.b32.xlu0 %v2766, 56
      %v3632 = vpop.permute.xlu0 %3631
      %3633 = vrot.lane.b32.xlu0 %v2767, 56
      %v3634 = vpop.permute.xlu0 %3633
      %3635 = vrot.lane.b32.xlu0 %v2768, 56
      %v3636 = vpop.permute.xlu0 %3635
      %3637 = vrot.lane.b32.xlu0 %v2769, 56
      %v3638 = vpop.permute.xlu0 %3637
      %3639 = vrot.lane.b32.xlu0 %v2770, 56
      %v3640 = vpop.permute.xlu0 %3639
      %3641 = vrot.lane.b32.xlu0 %v2771, 56
      %v3642 = vpop.permute.xlu0 %3641
      %3643 = vrot.lane.b32.xlu0 %v2772, 56
      %v3644 = vpop.permute.xlu0 %3643
      %3645 = vrot.lane.b32.xlu0 %v2773, 56
      %v3646 = vpop.permute.xlu0 %3645
      %3647 = vrot.lane.b32.xlu0 %v2774, 56
      %v3648 = vpop.permute.xlu0 %3647
      %3649 = vrot.lane.b32.xlu0 %v2775, 56
      %v3650 = vpop.permute.xlu0 %3649
      %3651 = vrot.lane.b32.xlu0 %v2776, 56
      %v3652 = vpop.permute.xlu0 %3651
      %3653 = vrot.lane.b32.xlu0 %v2777, 56
      %v3654 = vpop.permute.xlu0 %3653
      %3655 = vrot.lane.b32.xlu0 %v2778, 56
      %v3656 = vpop.permute.xlu0 %3655
      %3657 = vrot.lane.b32.xlu0 %v2779, 56
      %v3658 = vpop.permute.xlu0 %3657
      %3659 = vrot.lane.b32.xlu0 %v2780, 56
      %v3660 = vpop.permute.xlu0 %3659
      %3661 = vrot.lane.b32.xlu0 %v2781, 56
      %v3662 = vpop.permute.xlu0 %3661
      %3663 = vrot.lane.b32.xlu0 %v2782, 56
      %v3664 = vpop.permute.xlu0 %3663
      %3665 = vrot.lane.b32.xlu0 %v2783, 56
      %v3666 = vpop.permute.xlu0 %3665
      %3667 = vrot.lane.b32.xlu0 %v2784, 56
      %v3668 = vpop.permute.xlu0 %3667
      %3669 = vrot.lane.b32.xlu0 %v2785, 56
      %v3670 = vpop.permute.xlu0 %3669
      %3671 = vrot.lane.b32.xlu0 %v2786, 56
      %v3672 = vpop.permute.xlu0 %3671
      %3673 = vrot.lane.b32.xlu0 %v2787, 56
      %v3674 = vpop.permute.xlu0 %3673
      %3675 = vrot.lane.b32.xlu0 %v2788, 56
      %v3676 = vpop.permute.xlu0 %3675
      %3677 = vrot.lane.b32.xlu0 %v2789, 56
      %v3678 = vpop.permute.xlu0 %3677
      %3679 = vrot.lane.b32.xlu0 %v2790, 56
      %v3680 = vpop.permute.xlu0 %3679
      %3681 = vrot.lane.b32.xlu0 %v2791, 56
      %v3682 = vpop.permute.xlu0 %3681
      %3683 = vrot.lane.b32.xlu0 %v2792, 56
      %v3684 = vpop.permute.xlu0 %3683
      %3685 = vrot.lane.b32.xlu0 %v2793, 56
      %v3686 = vpop.permute.xlu0 %3685
      %3687 = vrot.lane.b32.xlu0 %v2794, 56
      %v3688 = vpop.permute.xlu0 %3687
      %3689 = vrot.lane.b32.xlu0 %v2795, 56
      %v3690 = vpop.permute.xlu0 %3689
      %3691 = vrot.lane.b32.xlu0 %v2796, 56
      %v3692 = vpop.permute.xlu0 %3691
      %3757 = vrot.lane.b32.xlu0 %v2797, 64
      %v3758 = vpop.permute.xlu0 %3757
      %3759 = vrot.lane.b32.xlu0 %v2798, 64
      %v3760 = vpop.permute.xlu0 %3759
      %3761 = vrot.lane.b32.xlu0 %v2799, 64
      %v3762 = vpop.permute.xlu0 %3761
      %3763 = vrot.lane.b32.xlu0 %v2800, 64
      %v3764 = vpop.permute.xlu0 %3763
      %3765 = vrot.lane.b32.xlu0 %v2801, 64
      %v3766 = vpop.permute.xlu0 %3765
      %3767 = vrot.lane.b32.xlu0 %v2802, 64
      %v3768 = vpop.permute.xlu0 %3767
      %3769 = vrot.lane.b32.xlu0 %v2803, 64
      %v3770 = vpop.permute.xlu0 %3769
      %3771 = vrot.lane.b32.xlu0 %v2804, 64
      %v3772 = vpop.permute.xlu0 %3771
      %3773 = vrot.lane.b32.xlu0 %v2805, 64
      %v3774 = vpop.permute.xlu0 %3773
      %3775 = vrot.lane.b32.xlu0 %v2806, 64
      %v3776 = vpop.permute.xlu0 %3775
      %3777 = vrot.lane.b32.xlu0 %v2807, 64
      %v3778 = vpop.permute.xlu0 %3777
      %3779 = vrot.lane.b32.xlu0 %v2808, 64
      %v3780 = vpop.permute.xlu0 %3779
      %3781 = vrot.lane.b32.xlu0 %v2809, 64
      %v3782 = vpop.permute.xlu0 %3781
      %3783 = vrot.lane.b32.xlu0 %v2810, 64
      %v3784 = vpop.permute.xlu0 %3783
      %3785 = vrot.lane.b32.xlu0 %v2811, 64
      %v3786 = vpop.permute.xlu0 %3785
      %3787 = vrot.lane.b32.xlu0 %v2812, 64
      %v3788 = vpop.permute.xlu0 %3787
      %3789 = vrot.lane.b32.xlu0 %v2813, 64
      %v3790 = vpop.permute.xlu0 %3789
      %3791 = vrot.lane.b32.xlu0 %v2814, 64
      %v3792 = vpop.permute.xlu0 %3791
      %3793 = vrot.lane.b32.xlu0 %v2815, 64
      %v3794 = vpop.permute.xlu0 %3793
      %3795 = vrot.lane.b32.xlu0 %v2816, 64
      %v3796 = vpop.permute.xlu0 %3795
      %3797 = vrot.lane.b32.xlu0 %v2817, 64
      %v3798 = vpop.permute.xlu0 %3797
      %3799 = vrot.lane.b32.xlu0 %v2818, 64
      %v3800 = vpop.permute.xlu0 %3799
      %3801 = vrot.lane.b32.xlu0 %v2819, 64
      %v3802 = vpop.permute.xlu0 %3801
      %3803 = vrot.lane.b32.xlu0 %v2820, 64
      %v3804 = vpop.permute.xlu0 %3803
      %3805 = vrot.lane.b32.xlu0 %v2821, 64
      %v3806 = vpop.permute.xlu0 %3805
      %3807 = vrot.lane.b32.xlu0 %v2822, 64
      %v3808 = vpop.permute.xlu0 %3807
      %3809 = vrot.lane.b32.xlu0 %v2823, 64
      %v3810 = vpop.permute.xlu0 %3809
      %3811 = vrot.lane.b32.xlu0 %v2824, 64
      %v3812 = vpop.permute.xlu0 %3811
      %3813 = vrot.lane.b32.xlu0 %v2825, 64
      %v3814 = vpop.permute.xlu0 %3813
      %3815 = vrot.lane.b32.xlu0 %v2826, 64
      %v3816 = vpop.permute.xlu0 %3815
      %3817 = vrot.lane.b32.xlu0 %v2827, 64
      %v3818 = vpop.permute.xlu0 %3817
      %3819 = vrot.lane.b32.xlu0 %v2828, 64
      %v3820 = vpop.permute.xlu0 %3819
      %v3853 = vsel %vm281, %v2540, %v2862
      %v3854 = vsel %vm281, %v2541, %v2864
      %v3855 = vsel %vm281, %v2542, %v2866
      %v3856 = vsel %vm281, %v2543, %v2868
      %v3857 = vsel %vm281, %v2544, %v2870
      %v3858 = vsel %vm281, %v2545, %v2872
      %v3859 = vsel %vm281, %v2546, %v2874
      %v3860 = vsel %vm281, %v2547, %v2876
      %v3861 = vsel %vm281, %v2548, %v2878
      %v3862 = vsel %vm281, %v2549, %v2880
      %v3863 = vsel %vm281, %v2550, %v2882
      %v3864 = vsel %vm281, %v2551, %v2884
      %v3865 = vsel %vm281, %v2552, %v2886
      %v3866 = vsel %vm281, %v2553, %v2888
      %v3867 = vsel %vm281, %v2554, %v2890
      %v3868 = vsel %vm281, %v2555, %v2892
      %v3869 = vsel %vm281, %v2556, %v2894
      %v3870 = vsel %vm281, %v2557, %v2896
      %v3871 = vsel %vm281, %v2558, %v2898
      %v3872 = vsel %vm281, %v2559, %v2900
      %v3873 = vsel %vm281, %v2560, %v2902
      %v3874 = vsel %vm281, %v2561, %v2904
      %v3875 = vsel %vm281, %v2562, %v2906
      %v3876 = vsel %vm281, %v2563, %v2908
      %v3877 = vsel %vm281, %v2564, %v2910
      %v3878 = vsel %vm281, %v2565, %v2912
      %v3879 = vsel %vm281, %v2566, %v2914
      %v3880 = vsel %vm281, %v2567, %v2916
      %v3881 = vsel %vm281, %v2568, %v2918
      %v3882 = vsel %vm281, %v2569, %v2920
      %v3883 = vsel %vm281, %v2570, %v2922
      %v3884 = vsel %vm281, %v2571, %v2924
      %v3885 = vsel %vm1812, %v3853, %v2990
      %v3886 = vsel %vm1812, %v3854, %v2992
      %v3887 = vsel %vm1812, %v3855, %v2994
      %v3888 = vsel %vm1812, %v3856, %v2996
      %v3889 = vsel %vm1812, %v3857, %v2998
      %v3890 = vsel %vm1812, %v3858, %v3000
      %v3891 = vsel %vm1812, %v3859, %v3002
      %v3892 = vsel %vm1812, %v3860, %v3004
      %v3893 = vsel %vm1812, %v3861, %v3006
      %v3894 = vsel %vm1812, %v3862, %v3008
      %v3895 = vsel %vm1812, %v3863, %v3010
      %v3896 = vsel %vm1812, %v3864, %v3012
      %v3897 = vsel %vm1812, %v3865, %v3014
      %v3898 = vsel %vm1812, %v3866, %v3016
      %v3899 = vsel %vm1812, %v3867, %v3018
      %v3900 = vsel %vm1812, %v3868, %v3020
      %v3901 = vsel %vm1812, %v3869, %v3022
      %v3902 = vsel %vm1812, %v3870, %v3024
      %v3903 = vsel %vm1812, %v3871, %v3026
      %v3904 = vsel %vm1812, %v3872, %v3028
      %v3905 = vsel %vm1812, %v3873, %v3030
      %v3906 = vsel %vm1812, %v3874, %v3032
      %v3907 = vsel %vm1812, %v3875, %v3034
      %v3908 = vsel %vm1812, %v3876, %v3036
      %v3909 = vsel %vm1812, %v3877, %v3038
      %v3910 = vsel %vm1812, %v3878, %v3040
      %v3911 = vsel %vm1812, %v3879, %v3042
      %v3912 = vsel %vm1812, %v3880, %v3044
      %v3913 = vsel %vm1812, %v3881, %v3046
      %v3914 = vsel %vm1812, %v3882, %v3048
      %v3915 = vsel %vm1812, %v3883, %v3050
      %v3916 = vsel %vm1812, %v3884, %v3052
      %v3917 = vsel %vm1878, %v3885, %v3118
      %v3918 = vsel %vm1878, %v3886, %v3120
      %v3919 = vsel %vm1878, %v3887, %v3122
      %v3920 = vsel %vm1878, %v3888, %v3124
      %v3921 = vsel %vm1878, %v3889, %v3126
      %v3922 = vsel %vm1878, %v3890, %v3128
      %v3923 = vsel %vm1878, %v3891, %v3130
      %v3924 = vsel %vm1878, %v3892, %v3132
      %v3925 = vsel %vm1878, %v3893, %v3134
      %v3926 = vsel %vm1878, %v3894, %v3136
      %v3927 = vsel %vm1878, %v3895, %v3138
      %v3928 = vsel %vm1878, %v3896, %v3140
      %v3929 = vsel %vm1878, %v3897, %v3142
      %v3930 = vsel %vm1878, %v3898, %v3144
      %v3931 = vsel %vm1878, %v3899, %v3146
      %v3932 = vsel %vm1878, %v3900, %v3148
      %v3933 = vsel %vm1878, %v3901, %v3150
      %v3934 = vsel %vm1878, %v3902, %v3152
      %v3935 = vsel %vm1878, %v3903, %v3154
      %v3936 = vsel %vm1878, %v3904, %v3156
      %v3937 = vsel %vm1878, %v3905, %v3158
      %v3938 = vsel %vm1878, %v3906, %v3160
      %v3939 = vsel %vm1878, %v3907, %v3162
      %v3940 = vsel %vm1878, %v3908, %v3164
      %v3941 = vsel %vm1878, %v3909, %v3166
      %v3942 = vsel %vm1878, %v3910, %v3168
      %v3943 = vsel %vm1878, %v3911, %v3170
      %v3944 = vsel %vm1878, %v3912, %v3172
      %v3945 = vsel %vm1878, %v3913, %v3174
      %v3946 = vsel %vm1878, %v3914, %v3176
      %v3947 = vsel %vm1878, %v3915, %v3178
      %v3948 = vsel %vm1878, %v3916, %v3180
      %v3949 = vsel %vm1944, %v3917, %v3246
      %v3950 = vsel %vm1944, %v3918, %v3248
      %v3951 = vsel %vm1944, %v3919, %v3250
      %v3952 = vsel %vm1944, %v3920, %v3252
      %v3953 = vsel %vm1944, %v3921, %v3254
      %v3954 = vsel %vm1944, %v3922, %v3256
      %v3955 = vsel %vm1944, %v3923, %v3258
      %v3956 = vsel %vm1944, %v3924, %v3260
      %v3957 = vsel %vm1944, %v3925, %v3262
      %v3958 = vsel %vm1944, %v3926, %v3264
      %v3959 = vsel %vm1944, %v3927, %v3266
      %v3960 = vsel %vm1944, %v3928, %v3268
      %v3961 = vsel %vm1944, %v3929, %v3270
      %v3962 = vsel %vm1944, %v3930, %v3272
      %v3963 = vsel %vm1944, %v3931, %v3274
      %v3964 = vsel %vm1944, %v3932, %v3276
      %v3965 = vsel %vm1944, %v3933, %v3278
      %v3966 = vsel %vm1944, %v3934, %v3280
      %v3967 = vsel %vm1944, %v3935, %v3282
      %v3968 = vsel %vm1944, %v3936, %v3284
      %v3969 = vsel %vm1944, %v3937, %v3286
      %v3970 = vsel %vm1944, %v3938, %v3288
      %v3971 = vsel %vm1944, %v3939, %v3290
      %v3972 = vsel %vm1944, %v3940, %v3292
      %v3973 = vsel %vm1944, %v3941, %v3294
      %v3974 = vsel %vm1944, %v3942, %v3296
      %v3975 = vsel %vm1944, %v3943, %v3298
      %v3976 = vsel %vm1944, %v3944, %v3300
      %v3977 = vsel %vm1944, %v3945, %v3302
      %v3978 = vsel %vm1944, %v3946, %v3304
      %v3979 = vsel %vm1944, %v3947, %v3306
      %v3980 = vsel %vm1944, %v3948, %v3308
      %vm3981 = vcmask 326656
      %v3982 = vsel %vm3981, %v3949, %v3374
      %v3983 = vsel %vm3981, %v3950, %v3376
      %v3984 = vsel %vm3981, %v3951, %v3378
      %v3985 = vsel %vm3981, %v3952, %v3380
      %v3986 = vsel %vm3981, %v3953, %v3382
      %v3987 = vsel %vm3981, %v3954, %v3384
      %v3988 = vsel %vm3981, %v3955, %v3386
      %v3989 = vsel %vm3981, %v3956, %v3388
      %v3990 = vsel %vm3981, %v3957, %v3390
      %v3991 = vsel %vm3981, %v3958, %v3392
      %v3992 = vsel %vm3981, %v3959, %v3394
      %v3993 = vsel %vm3981, %v3960, %v3396
      %v3994 = vsel %vm3981, %v3961, %v3398
      %v3995 = vsel %vm3981, %v3962, %v3400
      %v3996 = vsel %vm3981, %v3963, %v3402
      %v3997 = vsel %vm3981, %v3964, %v3404
      %v3998 = vsel %vm3981, %v3965, %v3406
      %v3999 = vsel %vm3981, %v3966, %v3408
      %v4000 = vsel %vm3981, %v3967, %v3410
      %v4001 = vsel %vm3981, %v3968, %v3412
      %v4002 = vsel %vm3981, %v3969, %v3414
      %v4003 = vsel %vm3981, %v3970, %v3416
      %v4004 = vsel %vm3981, %v3971, %v3418
      %v4005 = vsel %vm3981, %v3972, %v3420
      %v4006 = vsel %vm3981, %v3973, %v3422
      %v4007 = vsel %vm3981, %v3974, %v3424
      %v4008 = vsel %vm3981, %v3975, %v3426
      %v4009 = vsel %vm3981, %v3976, %v3428
      %v4010 = vsel %vm3981, %v3977, %v3430
      %v4011 = vsel %vm3981, %v3978, %v3432
      %v4012 = vsel %vm3981, %v3979, %v3434
      %v4013 = vsel %vm3981, %v3980, %v3436
      %vm4014 = vcmask 392192
      %v4015 = vsel %vm4014, %v3982, %v3502
      %v4016 = vsel %vm4014, %v3983, %v3504
      %v4017 = vsel %vm4014, %v3984, %v3506
      %v4018 = vsel %vm4014, %v3985, %v3508
      %v4019 = vsel %vm4014, %v3986, %v3510
      %v4020 = vsel %vm4014, %v3987, %v3512
      %v4021 = vsel %vm4014, %v3988, %v3514
      %v4022 = vsel %vm4014, %v3989, %v3516
      %v4023 = vsel %vm4014, %v3990, %v3518
      %v4024 = vsel %vm4014, %v3991, %v3520
      %v4025 = vsel %vm4014, %v3992, %v3522
      %v4026 = vsel %vm4014, %v3993, %v3524
      %v4027 = vsel %vm4014, %v3994, %v3526
      %v4028 = vsel %vm4014, %v3995, %v3528
      %v4029 = vsel %vm4014, %v3996, %v3530
      %v4030 = vsel %vm4014, %v3997, %v3532
      %v4031 = vsel %vm4014, %v3998, %v3534
      %v4032 = vsel %vm4014, %v3999, %v3536
      %v4033 = vsel %vm4014, %v4000, %v3538
      %v4034 = vsel %vm4014, %v4001, %v3540
      %v4035 = vsel %vm4014, %v4002, %v3542
      %v4036 = vsel %vm4014, %v4003, %v3544
      %v4037 = vsel %vm4014, %v4004, %v3546
      %v4038 = vsel %vm4014, %v4005, %v3548
      %v4039 = vsel %vm4014, %v4006, %v3550
      %v4040 = vsel %vm4014, %v4007, %v3552
      %v4041 = vsel %vm4014, %v4008, %v3554
      %v4042 = vsel %vm4014, %v4009, %v3556
      %v4043 = vsel %vm4014, %v4010, %v3558
      %v4044 = vsel %vm4014, %v4011, %v3560
      %v4045 = vsel %vm4014, %v4012, %v3562
      %v4046 = vsel %vm4014, %v4013, %v3564
      %vm4047 = vcmask 457728
      %v4048 = vsel %vm4047, %v4015, %v3630
      %v4049 = vsel %vm4047, %v4016, %v3632
      %v4050 = vsel %vm4047, %v4017, %v3634
      %v4051 = vsel %vm4047, %v4018, %v3636
      %v4052 = vsel %vm4047, %v4019, %v3638
      %v4053 = vsel %vm4047, %v4020, %v3640
      %v4054 = vsel %vm4047, %v4021, %v3642
      %v4055 = vsel %vm4047, %v4022, %v3644
      %v4056 = vsel %vm4047, %v4023, %v3646
      %v4057 = vsel %vm4047, %v4024, %v3648
      %v4058 = vsel %vm4047, %v4025, %v3650
      %v4059 = vsel %vm4047, %v4026, %v3652
      %v4060 = vsel %vm4047, %v4027, %v3654
      %v4061 = vsel %vm4047, %v4028, %v3656
      %v4062 = vsel %vm4047, %v4029, %v3658
      %v4063 = vsel %vm4047, %v4030, %v3660
      %v4064 = vsel %vm4047, %v4031, %v3662
      %v4065 = vsel %vm4047, %v4032, %v3664
      %v4066 = vsel %vm4047, %v4033, %v3666
      %v4067 = vsel %vm4047, %v4034, %v3668
      %v4068 = vsel %vm4047, %v4035, %v3670
      %v4069 = vsel %vm4047, %v4036, %v3672
      %v4070 = vsel %vm4047, %v4037, %v3674
      %v4071 = vsel %vm4047, %v4038, %v3676
      %v4072 = vsel %vm4047, %v4039, %v3678
      %v4073 = vsel %vm4047, %v4040, %v3680
      %v4074 = vsel %vm4047, %v4041, %v3682
      %v4075 = vsel %vm4047, %v4042, %v3684
      %v4076 = vsel %vm4047, %v4043, %v3686
      %v4077 = vsel %vm4047, %v4044, %v3688
      %v4078 = vsel %vm4047, %v4045, %v3690
      %v4079 = vsel %vm4047, %v4046, %v3692
      %vm4080 = vcmask 523264
      %v4081 = vsel %vm4080, %v4048, %v3758
      %v4082 = vsel %vm4080, %v4049, %v3760
      %v4083 = vsel %vm4080, %v4050, %v3762
      %v4084 = vsel %vm4080, %v4051, %v3764
      %v4085 = vsel %vm4080, %v4052, %v3766
      %v4086 = vsel %vm4080, %v4053, %v3768
      %v4087 = vsel %vm4080, %v4054, %v3770
      %v4088 = vsel %vm4080, %v4055, %v3772
      %v4089 = vsel %vm4080, %v4056, %v3774
      %v4090 = vsel %vm4080, %v4057, %v3776
      %v4091 = vsel %vm4080, %v4058, %v3778
      %v4092 = vsel %vm4080, %v4059, %v3780
      %v4093 = vsel %vm4080, %v4060, %v3782
      %v4094 = vsel %vm4080, %v4061, %v3784
      %v4095 = vsel %vm4080, %v4062, %v3786
      %v4096 = vsel %vm4080, %v4063, %v3788
      %v4097 = vsel %vm4080, %v4064, %v3790
      %v4098 = vsel %vm4080, %v4065, %v3792
      %v4099 = vsel %vm4080, %v4066, %v3794
      %v4100 = vsel %vm4080, %v4067, %v3796
      %v4101 = vsel %vm4080, %v4068, %v3798
      %v4102 = vsel %vm4080, %v4069, %v3800
      %v4103 = vsel %vm4080, %v4070, %v3802
      %v4104 = vsel %vm4080, %v4071, %v3804
      %v4105 = vsel %vm4080, %v4072, %v3806
      %v4106 = vsel %vm4080, %v4073, %v3808
      %v4107 = vsel %vm4080, %v4074, %v3810
      %v4108 = vsel %vm4080, %v4075, %v3812
      %v4109 = vsel %vm4080, %v4076, %v3814
      %v4110 = vsel %vm4080, %v4077, %v3816
      %v4111 = vsel %vm4080, %v4078, %v3818
      %v4112 = vsel %vm4080, %v4079, %v3820
      %v4113 = vld [vmem:[%s3] sm:$0xff]
      %v4114 = vld [vmem:[%s4] sm:$0xff]
      %4116 = vset.pattern.permute.xlu0 0
      %4117 = vperm.xlu0 %4116, %v4114
      %v4118 = vpop.permute.xlu0 %4117
      %vm4120 = vcmask 588800
      %v4122 = vsel %vm4120, %v4113, 0
      %v4125 = vsel %vm4120, %v4081, 0
      %v4128 = vsel %vm4120, %v4082, 0
      %v4131 = vsel %vm4120, %v4083, 0
      %v4134 = vsel %vm4120, %v4084, 0
      %v4137 = vsel %vm4120, %v4085, 0
      %v4140 = vsel %vm4120, %v4086, 0
      %v4143 = vsel %vm4120, %v4087, 0
      %v4146 = vsel %vm4120, %v4088, 0
      %v4149 = vsel %vm4120, %v4089, 0
      %v4152 = vsel %vm4120, %v4090, 0
      %v4155 = vsel %vm4120, %v4091, 0
      %v4158 = vsel %vm4120, %v4092, 0
      %v4161 = vsel %vm4120, %v4093, 0
      %v4164 = vsel %vm4120, %v4094, 0
      %v4167 = vsel %vm4120, %v4095, 0
      %v4170 = vsel %vm4120, %v4096, 0
      %v4173 = vsel %vm4120, %v4097, 0
      %v4176 = vsel %vm4120, %v4098, 0
      %v4179 = vsel %vm4120, %v4099, 0
      %v4182 = vsel %vm4120, %v4100, 0
      %v4185 = vsel %vm4120, %v4101, 0
      %v4188 = vsel %vm4120, %v4102, 0
      %v4191 = vsel %vm4120, %v4103, 0
      %v4194 = vsel %vm4120, %v4104, 0
      %v4197 = vsel %vm4120, %v4105, 0
      %v4200 = vsel %vm4120, %v4106, 0
      %v4203 = vsel %vm4120, %v4107, 0
      %v4206 = vsel %vm4120, %v4108, 0
      %v4209 = vsel %vm4120, %v4109, 0
      %v4212 = vsel %vm4120, %v4110, 0
      %v4215 = vsel %vm4120, %v4111, 0
      %v4218 = vsel %vm4120, %v4112, 0
      %4220 = vmatprep.subr.mxu0 0.0
      %4221 = vmatpush1.xpose.msra.mxu0 %v4170
      %4222 = vmatprep.subr.mxu0 0.0
      %4223 = vmatpush1.xpose.msra.mxu0 %v4167
      %4224 = vmatprep.subr.mxu0 0.0
      %4225 = vmatpush1.xpose.msra.mxu0 %v4164
      %4226 = vmatprep.subr.mxu0 0.0
      %4227 = vmatpush1.xpose.msra.mxu0 %v4161
      %4228 = vmatprep.subr.mxu0 0.0
      %4229 = vmatpush1.xpose.msra.mxu0 %v4158
      %4230 = vmatprep.subr.mxu0 0.0
      %4231 = vmatpush1.xpose.msra.mxu0 %v4155
      %4232 = vmatprep.subr.mxu0 0.0
      %4233 = vmatpush1.xpose.msra.mxu0 %v4152
      %4234 = vmatprep.subr.mxu0 0.0
      %4235 = vmatpush1.xpose.msra.mxu0 %v4149
      %4236 = vmatprep.subr.mxu0 0.0
      %4237 = vmatpush1.xpose.msra.mxu0 %v4146
      %4238 = vmatprep.subr.mxu0 0.0
      %4239 = vmatpush1.xpose.msra.mxu0 %v4143
      %4240 = vmatprep.subr.mxu0 0.0
      %4241 = vmatpush1.xpose.msra.mxu0 %v4140
      %4242 = vmatprep.subr.mxu0 0.0
      %4243 = vmatpush1.xpose.msra.mxu0 %v4137
      %4244 = vmatprep.subr.mxu0 0.0
      %4245 = vmatpush1.xpose.msra.mxu0 %v4134
      %4246 = vmatprep.subr.mxu0 0.0
      %4247 = vmatpush1.xpose.msra.mxu0 %v4131
      %4248 = vmatprep.subr.mxu0 0.0
      %4249 = vmatpush1.xpose.msra.mxu0 %v4128
      %4250 = vmatprep.subr.mxu0 0.0
      %4251 = vmatpush1.xpose.msra.mxu0 %v4125
      %4252 = vmatprep.subr.mxu0 0.0
      %4253 = vmatpush2.xpose.msra.mxu0 %v4218
      %4254 = vmatprep.subr.mxu0 0.0
      %4255 = vmatpush2.xpose.msra.mxu0 %v4215
      %4256 = vmatprep.subr.mxu0 0.0
      %4257 = vmatpush2.xpose.msra.mxu0 %v4212
      %4258 = vmatprep.subr.mxu0 0.0
      %4259 = vmatpush2.xpose.msra.mxu0 %v4209
      %4260 = vmatprep.subr.mxu0 0.0
      %4261 = vmatpush2.xpose.msra.mxu0 %v4206
      %4262 = vmatprep.subr.mxu0 0.0
      %4263 = vmatpush2.xpose.msra.mxu0 %v4203
      %4264 = vmatprep.subr.mxu0 0.0
      %4265 = vmatpush2.xpose.msra.mxu0 %v4200
      %4266 = vmatprep.subr.mxu0 0.0
      %4267 = vmatpush2.xpose.msra.mxu0 %v4197
      %4268 = vmatprep.subr.mxu0 0.0
      %4269 = vmatpush2.xpose.msra.mxu0 %v4194
      %4270 = vmatprep.subr.mxu0 0.0
      %4271 = vmatpush2.xpose.msra.mxu0 %v4191
      %4272 = vmatprep.subr.mxu0 0.0
      %4273 = vmatpush2.xpose.msra.mxu0 %v4188
      %4274 = vmatprep.subr.mxu0 0.0
      %4275 = vmatpush2.xpose.msra.mxu0 %v4185
      %4276 = vmatprep.subr.mxu0 0.0
      %4277 = vmatpush2.xpose.msra.mxu0 %v4182
      %4278 = vmatprep.subr.mxu0 0.0
      %4279 = vmatpush2.xpose.msra.mxu0 %v4179
      %4280 = vmatprep.subr.mxu0 0.0
      %4281 = vmatpush2.xpose.msra.mxu0 %v4176
      %4282 = vmatprep.subr.mxu0 0.0
      %4283 = vmatpush2.xpose.msra.mxu0 %v4173
      %4284 = vmatprep.mubr.f32.mxu0 0.0
      %4285 = vmatmul.mubr.f32.gmra.mxu0 %v4122
      %v4286 = vpop.f32.mrf.mxu0
      %v4287 = vadd.f32 %v4118, %v4286
      %v4288 = vpop.f32.mrf.mxu0
      %v4289 = vadd.f32 %v4118, %v4288
      %4290 = vdwg.mxu0
      %vm4291 = vcmp.gt.f32.partialorder %v4287, 0.0
      %vm4292 = vcmp.gt.f32.partialorder %v4289, 0.0
      %v4293 = vmin.f32 %v4287, 0.0
      %v4294 = vmin.f32 %v4289, 0.0
      %v4295 = vmul.f32 %v4293, 1.442695
      %v4296 = vpow.pop %v4295
      %v4297 = vmul.f32 %v4294, 1.442695
      %v4298 = vpow.pop %v4297
      %v4299 = vsub.f32 %v4296, 1.0
      %v4300 = vsub.f32 %v4298, 1.0
      %v4301 = vsel %vm4291, %v4287, %v4299
      %v4302 = vsel %vm4292, %v4289, %v4300
      %4303 = vst [vmem:[%s224] sm:$0xff] %v4301
      %4304 = vst [vmem:[%s224 + $0x8] sm:$0xff] %v4302
      %p4305 = scmp.lt.s32.totalorder %s16, 1
      %s4306 = scalar_select %p4305, %s16, 1
      %s4307 = smul.addr %s4306, 2
      %s4308 = smul.addr %s4307, 8
      %s4309 = scalar_lea.vmem %s5, %s4308
      // Predicated region
      $region41: #{conv_block_forward.1} parent=39 // pred_check
        %p4310 = pneg %p144
      $region42: #{conv_block_forward.1} parent=39 // pred_check_branch
        %4312 = sbr.rel (%p4310) target = $region44
      $region43: #{conv_block_forward.1} parent=39 // pred_region
        _
      $region44: #{conv_block_forward.1} parent=39 // pred_fallthru
        _
    $region40: #{conv_block_forward.1} parent=5 // pred_fallthru
      _
    %p4313 = scmp.le.s32.totalorder 2, %s11
    // Predicated region
    $region45: #{conv_block_forward.1} parent=5 // pred_check
      %p4314 = pneg %p4313
    $region46: #{conv_block_forward.1} parent=5 // pred_check_branch
      %4316 = sbr.rel (%p4314) target = $region48
    $region47: #{conv_block_forward.1} parent=5 // pred_region
      %s4317 = ssub.s32 %s11, 2
      // Predicated region
      $region49: #{conv_block_forward.1} parent=47 // pred_check
        %p4318 = pneg %p150
      $region50: #{conv_block_forward.1} parent=47 // pred_check_branch
        %4320 = sbr.rel (%p4318) target = $region52
      $region51: #{conv_block_forward.1} parent=47 // pred_region
        %p4321 = scmp.lt.s32.totalorder %s17, 1
        %s4322 = scalar_select %p4321, %s17, 1
        %s4323 = smul.addr %s4322, 2
        %s4324 = smul.addr %s4323, 8
        %s4325 = scalar_lea.vmem %s5, %s4324
      $region52: #{conv_block_forward.1} parent=47 // pred_fallthru
        _
    $region48: #{conv_block_forward.1} parent=5 // pred_fallthru
      _
  $region6: #{conv_block_forward.1} parent=0 // loop_footer
    %s15 = sadd.s32 1, %s11
  $region7: #{conv_block_forward.1} parent=0 // loop_footer_branch
    %10 = sbr.rel target = $region3
  $region8: #{conv_block_forward.1} parent=0 // loop_exit
    _

</llo_original>
